<compile_context>
chip_gen: v7x
topology: tpu7x:2x2x1
jax: 0.10.0
libtpu: 0.0.40
codegen_flags: <defaults>
</compile_context>

<pallas_src>
import functools

import jax
import jax.numpy as jnp
from jax import lax
from jax.experimental import pallas as pl
from jax.experimental.pallas import tpu as pltpu


def emb_mlp_kernel(idx_ref, emb_ref, w1_ref, b1_ref, w2_ref, b2_ref, out_ref,
                   flat_ref, *, input_n, emb_dim):
    """One batch tile of EMBMLP: embed -> flatten -> Linear+ReLU -> Linear."""
    tb = idx_ref.shape[0]
    num_emb = emb_ref.shape[0]

    emb = emb_ref[...]                                          # (num_emb, D) bf16
    iota = lax.broadcasted_iota(jnp.int32, (tb, num_emb), 1)    # hoisted out of loop

    # Embedding gather as one-hot @ table (exact: 0/1 selection of bf16 rows,
    # f32 accumulation touches at most one nonzero product per row).  Results
    # are written straight into the flattened-activation scratch so the
    # (input_n, emb_dim) -> (input_n*emb_dim) flatten costs nothing.
    #
    # NOTE(perf, large tables / v7x): when the table no longer fits VMEM,
    # replace this one-hot gather with a scalar-prefetch / manual-DMA row
    # gather (PrefetchScalarGridSpec + pl.Element), and single-buffer the
    # constant table/weight operands (pipeline_mode=pl.Buffered(1)) to halve
    # their resident VMEM.  Not needed at these shapes.
    for j in range(input_n):                                    # static unroll, input_n small
        onehot = (iota == idx_ref[:, j:j + 1]).astype(jnp.bfloat16)      # (tb, num_emb)
        e_j = jnp.dot(onehot, emb, preferred_element_type=jnp.float32)   # (tb, D), exact
        flat_ref[:, j * emb_dim:(j + 1) * emb_dim] = e_j

    # Layer 1: single K = input_n*emb_dim contraction (bf16 operands, f32 acc).
    flat = flat_ref[...].astype(jnp.bfloat16)                   # lossless (values are bf16)
    h1 = jnp.dot(flat, w1_ref[...], preferred_element_type=jnp.float32) + b1_ref[...]
    h1 = jnp.maximum(h1, 0.0).astype(jnp.bfloat16)              # ReLU

    # Layer 2 (final activation = Identity).  Output columns were zero-padded
    # to a lane-dense multiple of 128 in the wrapper.
    out = jnp.dot(h1, w2_ref[...], preferred_element_type=jnp.float32) + b2_ref[...]
    out_ref[...] = out.astype(out_ref.dtype)


def emb_mlp_forward(idx, emb, w1, b1, w2, b2, *, tb=128):
    """Pallas-backed EMBMLP forward.

    idx: (B, input_n) int32 (assumed in [0, num_emb); OOB -> zero embedding).
    emb: (num_emb, emb_dim) f32, w1: (input_n*emb_dim, H1), w2: (H1, H2).
    tb:  batch tile (multiple of 8; 128 is a good v5e default, 256 for v6e/v7x).
    """
    B, N = idx.shape
    num_emb, emb_dim = emb.shape
    in_dim, H1 = w1.shape
    H2 = w2.shape[1]
    assert in_dim == N * emb_dim

    # Batch tile: multiple of 8, no bigger than (rounded-up) B.
    tb = max(8, min(tb, ((B + 7) // 8) * 8))
    tb = (tb // 8) * 8
    grid = (pl.cdiv(B, tb),)

    # bf16 operands; accumulation stays f32 inside the kernel.
    emb_bf = emb.astype(jnp.bfloat16)
    w1_bf = w1.astype(jnp.bfloat16)
    w2_bf = w2.astype(jnp.bfloat16)

    # Lane-dense output: pad final layer columns to a multiple of 128.
    H2p = max(128, ((H2 + 127) // 128) * 128)
    w2_p = jnp.zeros((H1, H2p), jnp.bfloat16).at[:, :H2].set(w2_bf)
    b2_p = jnp.zeros((1, H2p), jnp.float32).at[:, :H2].set(b2.astype(jnp.float32))
    b1_2d = b1.reshape(1, H1).astype(jnp.float32)

    kernel = functools.partial(emb_mlp_kernel, input_n=N, emb_dim=emb_dim)

    flops = 2 * B * (N * num_emb * emb_dim + in_dim * H1 + H1 * H2p)
    bytes_accessed = (
        idx.size * 4 + B * H2p * 4
        + grid[0] * (emb_bf.size * 2 + w1_bf.size * 2 + H1 * 4
                     + w2_p.size * 2 + H2p * 4))
    cost = pl.CostEstimate(flops=flops, transcendentals=0,
                           bytes_accessed=bytes_accessed)

    out_padded = pl.pallas_call(
        kernel,
        out_shape=jax.ShapeDtypeStruct((B, H2p), jnp.float32),
        grid=grid,
        in_specs=[
            pl.BlockSpec((tb, N), lambda i: (i, 0)),              # indices tile
            pl.BlockSpec((num_emb, emb_dim), lambda i: (0, 0)),   # embedding table (bf16)
            pl.BlockSpec((in_dim, H1), lambda i: (0, 0)),         # W1 (bf16)
            pl.BlockSpec((1, H1), lambda i: (0, 0)),              # b1 (f32)
            pl.BlockSpec((H1, H2p), lambda i: (0, 0)),            # W2 padded (bf16)
            pl.BlockSpec((1, H2p), lambda i: (0, 0)),             # b2 padded (f32)
        ],
        out_specs=pl.BlockSpec((tb, H2p), lambda i: (i, 0)),      # lane-dense output
        scratch_shapes=[pltpu.VMEM((tb, in_dim), jnp.float32)],   # flattened activations
        compiler_params=pltpu.CompilerParams(
            dimension_semantics=("parallel",),
            vmem_limit_bytes=32 * 1024 * 1024),
        cost_estimate=cost,
    )(idx.astype(jnp.int32), emb_bf, w1_bf, b1_2d, w2_p, b2_p)

    return out_padded[:, :H2]


if __name__ == "__main__":
    # EMBMLP(input_n=8, num_emb=64, emb_dim=16, padding_idx=0, hiddens=(32, 16))
    B, N, num_emb, emb_dim = 256, 8, 64, 16
    hiddens = (32, 16)
    padding_idx = 0
    in_dim = N * emb_dim
    H1, H2 = hiddens

    key = jax.random.PRNGKey(0)
    k_idx, k_emb, k_w1, k_b1, k_w2, k_b2 = jax.random.split(key, 6)

    idx = jax.random.randint(k_idx, (B, N), 0, num_emb, dtype=jnp.int32)

    # nn.Embedding init (N(0,1)), padding_idx row zeroed.
    emb = jax.random.normal(k_emb, (num_emb, emb_dim), jnp.float32)
    emb = emb.at[padding_idx].set(0.0)

    # nn.Linear-style uniform(-1/sqrt(fan_in), 1/sqrt(fan_in)) init, deterministic.
    lim1 = float(in_dim) ** -0.5
    w1 = jax.random.uniform(k_w1, (in_dim, H1), jnp.float32, -lim1, lim1)
    b1 = jax.random.uniform(k_b1, (H1,), jnp.float32, -lim1, lim1)
    lim2 = float(H1) ** -0.5
    w2 = jax.random.uniform(k_w2, (H1, H2), jnp.float32, -lim2, lim2)
    b2 = jax.random.uniform(k_b2, (H2,), jnp.float32, -lim2, lim2)

    out = jax.block_until_ready(emb_mlp_forward(idx, emb, w1, b1, w2, b2, tb=128))
    assert out.shape == (B, H2), out.shape

    # Reference 1: same bf16-rounded operands, f32 math (apples-to-apples).
    emb_q = emb.astype(jnp.bfloat16).astype(jnp.float32)
    w1_q = w1.astype(jnp.bfloat16).astype(jnp.float32)
    w2_q = w2.astype(jnp.bfloat16).astype(jnp.float32)
    h1 = jnp.maximum(
        jnp.dot(emb_q[idx].reshape(B, -1), w1_q, precision="highest") + b1, 0.0)
    h1 = h1.astype(jnp.bfloat16).astype(jnp.float32)
    ref_bf16 = jnp.dot(h1, w2_q, precision="highest") + b2
    assert jnp.allclose(out, ref_bf16, rtol=2e-2, atol=2e-2), "mismatch vs bf16 reference"

    # Reference 2: the original full-f32 module forward (looser tol: bf16 quantization).
    ref_f32 = jnp.maximum(
        jnp.dot(emb[idx].reshape(B, -1), w1, precision="highest") + b1, 0.0)
    ref_f32 = jnp.dot(ref_f32, w2, precision="highest") + b2
    assert jnp.allclose(out, ref_f32, rtol=5e-2, atol=5e-2), "mismatch vs f32 reference"

    print("KERNEL_OK")
</pallas_src>

<mosaic_0001>
module attributes {stable_mosaic.version = 11 : i64} {
  func.func @emb_mlp_kernel(%arg0: i32, %arg1: memref<128x8xi32, #tpu.memory_space<vmem>>, %arg2: memref<64x16xbf16, #tpu.memory_space<vmem>>, %arg3: memref<128x32xbf16, #tpu.memory_space<vmem>>, %arg4: memref<1x32xf32, #tpu.memory_space<vmem>>, %arg5: memref<32x128xbf16, #tpu.memory_space<vmem>>, %arg6: memref<1x128xf32, #tpu.memory_space<vmem>>, %arg7: memref<128x128xf32, #tpu.memory_space<vmem>>, %arg8: memref<128x128xf32, #tpu.memory_space<vmem>>) attributes {dimension_semantics = [#tpu.dimension_semantics<parallel>], iteration_bounds = array<i64: 2>, scalar_prefetch = 0 : i64, scratch_operands = 1 : i64, tpu.core_type = #tpu.core_type<tc>, window_params = [{transform_indices = @transform_0, window_bounds = array<i64: 128, 8>}, {pipeline_mode = #tpu.pipeline_mode<synchronous>, transform_indices = @transform_1, window_bounds = array<i64: 64, 16>}, {pipeline_mode = #tpu.pipeline_mode<synchronous>, transform_indices = @transform_2, window_bounds = array<i64: 128, 32>}, {pipeline_mode = #tpu.pipeline_mode<synchronous>, transform_indices = @transform_3, window_bounds = array<i64: 1, 32>}, {pipeline_mode = #tpu.pipeline_mode<synchronous>, transform_indices = @transform_4, window_bounds = array<i64: 32, 128>}, {pipeline_mode = #tpu.pipeline_mode<synchronous>, transform_indices = @transform_5, window_bounds = array<i64: 1, 128>}, {transform_indices = @transform_6, window_bounds = array<i64: 128, 128>}]} {
    %c0 = arith.constant 0 : index
    %c0_0 = arith.constant 0 : index
    %0 = vector.load %arg2[%c0, %c0_0] : memref<64x16xbf16, #tpu.memory_space<vmem>>, vector<64x16xbf16>
    %1 = tpu.iota {dimensions = array<i32: 1>} : vector<128x64xi32>
    %c0_1 = arith.constant 0 : index
    %c0_2 = arith.constant 0 : index
    %2 = vector.load %arg1[%c0_1, %c0_2] : memref<128x8xi32, #tpu.memory_space<vmem>>, vector<128x1xi32>
    %3 = vector.broadcast %2 : vector<128x1xi32> to vector<128x64xi32>
    %4 = arith.cmpi eq, %1, %3 : vector<128x64xi32>
    %5 = arith.extui %4 : vector<128x64xi1> to vector<128x64xi32>
    %6 = arith.sitofp %5 : vector<128x64xi32> to vector<128x64xf32>
    %7 = arith.truncf %6 : vector<128x64xf32> to vector<128x64xbf16>
    %cst = arith.constant dense<0.000000e+00> : vector<128x16xf32>
    %8 = tpu.matmul %7, %0, %cst {dimension_numbers = #tpu.dot_dimension_numbers<[1], [0], [0], [1], [0, 0, 1, 1], [], []>} : vector<128x64xbf16>, vector<64x16xbf16>, vector<128x16xf32> -> vector<128x16xf32>
    %c0_3 = arith.constant 0 : index
    %c0_4 = arith.constant 0 : index
    %9 = vector.load %arg8[%c0_3, %c0_4] : memref<128x128xf32, #tpu.memory_space<vmem>>, vector<128x16xf32>
    tpu.vector_store %arg8[%c0_3, %c0_4], %8 {strides = array<i32>} : memref<128x128xf32, #tpu.memory_space<vmem>>, vector<128x16xf32>,
    %c0_5 = arith.constant 0 : index
    %c1 = arith.constant 1 : index
    %10 = vector.load %arg1[%c0_5, %c1] : memref<128x8xi32, #tpu.memory_space<vmem>>, vector<128x1xi32>
    %11 = vector.broadcast %10 : vector<128x1xi32> to vector<128x64xi32>
    %12 = arith.cmpi eq, %1, %11 : vector<128x64xi32>
    %13 = arith.extui %12 : vector<128x64xi1> to vector<128x64xi32>
    %14 = arith.sitofp %13 : vector<128x64xi32> to vector<128x64xf32>
    %15 = arith.truncf %14 : vector<128x64xf32> to vector<128x64xbf16>
    %cst_6 = arith.constant dense<0.000000e+00> : vector<128x16xf32>
    %16 = tpu.matmul %15, %0, %cst_6 {dimension_numbers = #tpu.dot_dimension_numbers<[1], [0], [0], [1], [0, 0, 1, 1], [], []>} : vector<128x64xbf16>, vector<64x16xbf16>, vector<128x16xf32> -> vector<128x16xf32>
    %c0_7 = arith.constant 0 : index
    %c16 = arith.constant 16 : index
    %17 = vector.load %arg8[%c0_7, %c16] : memref<128x128xf32, #tpu.memory_space<vmem>>, vector<128x16xf32>
    tpu.vector_store %arg8[%c0_7, %c16], %16 {strides = array<i32>} : memref<128x128xf32, #tpu.memory_space<vmem>>, vector<128x16xf32>,
    %c0_8 = arith.constant 0 : index
    %c2 = arith.constant 2 : index
    %18 = vector.load %arg1[%c0_8, %c2] : memref<128x8xi32, #tpu.memory_space<vmem>>, vector<128x1xi32>
    %19 = vector.broadcast %18 : vector<128x1xi32> to vector<128x64xi32>
    %20 = arith.cmpi eq, %1, %19 : vector<128x64xi32>
    %21 = arith.extui %20 : vector<128x64xi1> to vector<128x64xi32>
    %22 = arith.sitofp %21 : vector<128x64xi32> to vector<128x64xf32>
    %23 = arith.truncf %22 : vector<128x64xf32> to vector<128x64xbf16>
    %cst_9 = arith.constant dense<0.000000e+00> : vector<128x16xf32>
    %24 = tpu.matmul %23, %0, %cst_9 {dimension_numbers = #tpu.dot_dimension_numbers<[1], [0], [0], [1], [0, 0, 1, 1], [], []>} : vector<128x64xbf16>, vector<64x16xbf16>, vector<128x16xf32> -> vector<128x16xf32>
    %c0_10 = arith.constant 0 : index
    %c32 = arith.constant 32 : index
    %25 = vector.load %arg8[%c0_10, %c32] : memref<128x128xf32, #tpu.memory_space<vmem>>, vector<128x16xf32>
    tpu.vector_store %arg8[%c0_10, %c32], %24 {strides = array<i32>} : memref<128x128xf32, #tpu.memory_space<vmem>>, vector<128x16xf32>,
    %c0_11 = arith.constant 0 : index
    %c3 = arith.constant 3 : index
    %26 = vector.load %arg1[%c0_11, %c3] : memref<128x8xi32, #tpu.memory_space<vmem>>, vector<128x1xi32>
    %27 = vector.broadcast %26 : vector<128x1xi32> to vector<128x64xi32>
    %28 = arith.cmpi eq, %1, %27 : vector<128x64xi32>
    %29 = arith.extui %28 : vector<128x64xi1> to vector<128x64xi32>
    %30 = arith.sitofp %29 : vector<128x64xi32> to vector<128x64xf32>
    %31 = arith.truncf %30 : vector<128x64xf32> to vector<128x64xbf16>
    %cst_12 = arith.constant dense<0.000000e+00> : vector<128x16xf32>
    %32 = tpu.matmul %31, %0, %cst_12 {dimension_numbers = #tpu.dot_dimension_numbers<[1], [0], [0], [1], [0, 0, 1, 1], [], []>} : vector<128x64xbf16>, vector<64x16xbf16>, vector<128x16xf32> -> vector<128x16xf32>
    %c0_13 = arith.constant 0 : index
    %c48 = arith.constant 48 : index
    %33 = vector.load %arg8[%c0_13, %c48] : memref<128x128xf32, #tpu.memory_space<vmem>>, vector<128x16xf32>
    tpu.vector_store %arg8[%c0_13, %c48], %32 {strides = array<i32>} : memref<128x128xf32, #tpu.memory_space<vmem>>, vector<128x16xf32>,
    %c0_14 = arith.constant 0 : index
    %c4 = arith.constant 4 : index
    %34 = vector.load %arg1[%c0_14, %c4] : memref<128x8xi32, #tpu.memory_space<vmem>>, vector<128x1xi32>
    %35 = vector.broadcast %34 : vector<128x1xi32> to vector<128x64xi32>
    %36 = arith.cmpi eq, %1, %35 : vector<128x64xi32>
    %37 = arith.extui %36 : vector<128x64xi1> to vector<128x64xi32>
    %38 = arith.sitofp %37 : vector<128x64xi32> to vector<128x64xf32>
    %39 = arith.truncf %38 : vector<128x64xf32> to vector<128x64xbf16>
    %cst_15 = arith.constant dense<0.000000e+00> : vector<128x16xf32>
    %40 = tpu.matmul %39, %0, %cst_15 {dimension_numbers = #tpu.dot_dimension_numbers<[1], [0], [0], [1], [0, 0, 1, 1], [], []>} : vector<128x64xbf16>, vector<64x16xbf16>, vector<128x16xf32> -> vector<128x16xf32>
    %c0_16 = arith.constant 0 : index
    %c64 = arith.constant 64 : index
    %41 = vector.load %arg8[%c0_16, %c64] : memref<128x128xf32, #tpu.memory_space<vmem>>, vector<128x16xf32>
    tpu.vector_store %arg8[%c0_16, %c64], %40 {strides = array<i32>} : memref<128x128xf32, #tpu.memory_space<vmem>>, vector<128x16xf32>,
    %c0_17 = arith.constant 0 : index
    %c5 = arith.constant 5 : index
    %42 = vector.load %arg1[%c0_17, %c5] : memref<128x8xi32, #tpu.memory_space<vmem>>, vector<128x1xi32>
    %43 = vector.broadcast %42 : vector<128x1xi32> to vector<128x64xi32>
    %44 = arith.cmpi eq, %1, %43 : vector<128x64xi32>
    %45 = arith.extui %44 : vector<128x64xi1> to vector<128x64xi32>
    %46 = arith.sitofp %45 : vector<128x64xi32> to vector<128x64xf32>
    %47 = arith.truncf %46 : vector<128x64xf32> to vector<128x64xbf16>
    %cst_18 = arith.constant dense<0.000000e+00> : vector<128x16xf32>
    %48 = tpu.matmul %47, %0, %cst_18 {dimension_numbers = #tpu.dot_dimension_numbers<[1], [0], [0], [1], [0, 0, 1, 1], [], []>} : vector<128x64xbf16>, vector<64x16xbf16>, vector<128x16xf32> -> vector<128x16xf32>
    %c0_19 = arith.constant 0 : index
    %c80 = arith.constant 80 : index
    %49 = vector.load %arg8[%c0_19, %c80] : memref<128x128xf32, #tpu.memory_space<vmem>>, vector<128x16xf32>
    tpu.vector_store %arg8[%c0_19, %c80], %48 {strides = array<i32>} : memref<128x128xf32, #tpu.memory_space<vmem>>, vector<128x16xf32>,
    %c0_20 = arith.constant 0 : index
    %c6 = arith.constant 6 : index
    %50 = vector.load %arg1[%c0_20, %c6] : memref<128x8xi32, #tpu.memory_space<vmem>>, vector<128x1xi32>
    %51 = vector.broadcast %50 : vector<128x1xi32> to vector<128x64xi32>
    %52 = arith.cmpi eq, %1, %51 : vector<128x64xi32>
    %53 = arith.extui %52 : vector<128x64xi1> to vector<128x64xi32>
    %54 = arith.sitofp %53 : vector<128x64xi32> to vector<128x64xf32>
    %55 = arith.truncf %54 : vector<128x64xf32> to vector<128x64xbf16>
    %cst_21 = arith.constant dense<0.000000e+00> : vector<128x16xf32>
    %56 = tpu.matmul %55, %0, %cst_21 {dimension_numbers = #tpu.dot_dimension_numbers<[1], [0], [0], [1], [0, 0, 1, 1], [], []>} : vector<128x64xbf16>, vector<64x16xbf16>, vector<128x16xf32> -> vector<128x16xf32>
    %c0_22 = arith.constant 0 : index
    %c96 = arith.constant 96 : index
    %57 = vector.load %arg8[%c0_22, %c96] : memref<128x128xf32, #tpu.memory_space<vmem>>, vector<128x16xf32>
    tpu.vector_store %arg8[%c0_22, %c96], %56 {strides = array<i32>} : memref<128x128xf32, #tpu.memory_space<vmem>>, vector<128x16xf32>,
    %c0_23 = arith.constant 0 : index
    %c7 = arith.constant 7 : index
    %58 = vector.load %arg1[%c0_23, %c7] : memref<128x8xi32, #tpu.memory_space<vmem>>, vector<128x1xi32>
    %59 = vector.broadcast %58 : vector<128x1xi32> to vector<128x64xi32>
    %60 = arith.cmpi eq, %1, %59 : vector<128x64xi32>
    %61 = arith.extui %60 : vector<128x64xi1> to vector<128x64xi32>
    %62 = arith.sitofp %61 : vector<128x64xi32> to vector<128x64xf32>
    %63 = arith.truncf %62 : vector<128x64xf32> to vector<128x64xbf16>
    %cst_24 = arith.constant dense<0.000000e+00> : vector<128x16xf32>
    %64 = tpu.matmul %63, %0, %cst_24 {dimension_numbers = #tpu.dot_dimension_numbers<[1], [0], [0], [1], [0, 0, 1, 1], [], []>} : vector<128x64xbf16>, vector<64x16xbf16>, vector<128x16xf32> -> vector<128x16xf32>
    %c0_25 = arith.constant 0 : index
    %c112 = arith.constant 112 : index
    %65 = vector.load %arg8[%c0_25, %c112] : memref<128x128xf32, #tpu.memory_space<vmem>>, vector<128x16xf32>
    tpu.vector_store %arg8[%c0_25, %c112], %64 {strides = array<i32>} : memref<128x128xf32, #tpu.memory_space<vmem>>, vector<128x16xf32>,
    %c0_26 = arith.constant 0 : index
    %c0_27 = arith.constant 0 : index
    %66 = vector.load %arg8[%c0_26, %c0_27] : memref<128x128xf32, #tpu.memory_space<vmem>>, vector<128x128xf32>
    %67 = arith.truncf %66 : vector<128x128xf32> to vector<128x128xbf16>
    %c0_28 = arith.constant 0 : index
    %c0_29 = arith.constant 0 : index
    %68 = vector.load %arg3[%c0_28, %c0_29] : memref<128x32xbf16, #tpu.memory_space<vmem>>, vector<128x32xbf16>
    %cst_30 = arith.constant dense<0.000000e+00> : vector<128x32xf32>
    %69 = tpu.matmul %67, %68, %cst_30 {dimension_numbers = #tpu.dot_dimension_numbers<[1], [0], [0], [1], [0, 0, 1, 1], [], []>} : vector<128x128xbf16>, vector<128x32xbf16>, vector<128x32xf32> -> vector<128x32xf32>
    %c0_31 = arith.constant 0 : index
    %c0_32 = arith.constant 0 : index
    %70 = vector.load %arg4[%c0_31, %c0_32] : memref<1x32xf32, #tpu.memory_space<vmem>>, vector<1x32xf32>
    %71 = vector.broadcast %70 : vector<1x32xf32> to vector<128x32xf32>
    %72 = arith.addf %69, %71 : vector<128x32xf32>
    %cst_33 = arith.constant 0.000000e+00 : f32
    %73 = vector.broadcast %cst_33 : f32 to vector<128x32xf32>
    %74 = arith.maximumf %72, %73 : vector<128x32xf32>
    %75 = arith.truncf %74 : vector<128x32xf32> to vector<128x32xbf16>
    %c0_34 = arith.constant 0 : index
    %c0_35 = arith.constant 0 : index
    %76 = vector.load %arg5[%c0_34, %c0_35] : memref<32x128xbf16, #tpu.memory_space<vmem>>, vector<32x128xbf16>
    %cst_36 = arith.constant dense<0.000000e+00> : vector<128x128xf32>
    %77 = tpu.matmul %75, %76, %cst_36 {dimension_numbers = #tpu.dot_dimension_numbers<[1], [0], [0], [1], [0, 0, 1, 1], [], []>} : vector<128x32xbf16>, vector<32x128xbf16>, vector<128x128xf32> -> vector<128x128xf32>
    %c0_37 = arith.constant 0 : index
    %c0_38 = arith.constant 0 : index
    %78 = vector.load %arg6[%c0_37, %c0_38] : memref<1x128xf32, #tpu.memory_space<vmem>>, vector<1x128xf32>
    %79 = vector.broadcast %78 : vector<1x128xf32> to vector<128x128xf32>
    %80 = arith.addf %77, %79 : vector<128x128xf32>
    %c0_39 = arith.constant 0 : index
    %c0_40 = arith.constant 0 : index
    %81 = vector.load %arg7[%c0_39, %c0_40] : memref<128x128xf32, #tpu.memory_space<vmem>>, vector<128x128xf32>
    tpu.vector_store %arg7[%c0_39, %c0_40], %80 {strides = array<i32>} : memref<128x128xf32, #tpu.memory_space<vmem>>, vector<128x128xf32>,
    return
  }
  func.func @transform_0(%arg0: i32) -> (i32, i32) {
    %c0_i32 = arith.constant 0 : i32
    %c0_i32_0 = arith.constant 0 : i32
    return %arg0, %c0_i32 : i32, i32
  }
  func.func @transform_1(%arg0: i32) -> (i32, i32) {
    %c0_i32 = arith.constant 0 : i32
    %c0_i32_0 = arith.constant 0 : i32
    %c0_i32_1 = arith.constant 0 : i32
    return %c0_i32, %c0_i32_0 : i32, i32
  }
  func.func @transform_2(%arg0: i32) -> (i32, i32) {
    %c0_i32 = arith.constant 0 : i32
    %c0_i32_0 = arith.constant 0 : i32
    %c0_i32_1 = arith.constant 0 : i32
    return %c0_i32, %c0_i32_0 : i32, i32
  }
  func.func @transform_3(%arg0: i32) -> (i32, i32) {
    %c0_i32 = arith.constant 0 : i32
    %c0_i32_0 = arith.constant 0 : i32
    %c0_i32_1 = arith.constant 0 : i32
    return %c0_i32, %c0_i32_0 : i32, i32
  }
  func.func @transform_4(%arg0: i32) -> (i32, i32) {
    %c0_i32 = arith.constant 0 : i32
    %c0_i32_0 = arith.constant 0 : i32
    %c0_i32_1 = arith.constant 0 : i32
    return %c0_i32, %c0_i32_0 : i32, i32
  }
  func.func @transform_5(%arg0: i32) -> (i32, i32) {
    %c0_i32 = arith.constant 0 : i32
    %c0_i32_0 = arith.constant 0 : i32
    %c0_i32_1 = arith.constant 0 : i32
    return %c0_i32, %c0_i32_0 : i32, i32
  }
  func.func @transform_6(%arg0: i32) -> (i32, i32) {
    %c0_i32 = arith.constant 0 : i32
    %c0_i32_0 = arith.constant 0 : i32
    return %arg0, %c0_i32 : i32, i32
  }
}

</mosaic_0001>

<llo_original>
// kernel: tpu_custom_call.1
$region0: #{tpu_custom_call.1}
  #allocation0 [shape = 'u32[]', space=smem, size = 0x4, offset = 0x4, fixed_abs, tag = 'smem constant byte address 0x4 - core index']
  #allocation1 [shape = 'u32[144,128]{1,0:T(1,128)}', space=vmem, size = 0x12000, scoped, tag = 'internal scratch']
  #allocation2 [shape = 'f32[128,128]{1,0:T(8,128)}', space=vmem, size = 0x10000, scoped, tag = 'scratch operand']
  %s0 = inlined_call_operand.vmem [shape: s32[256,8], index: 0, kind: input, shape index: {}]
  %s1 = inlined_call_operand.vmem [shape: bf16[64,16], index: 1, kind: input, shape index: {}]
  %s2 = inlined_call_operand.vmem [shape: bf16[128,32], index: 2, kind: input, shape index: {}]
  %s3 = inlined_call_operand.vmem [shape: f32[1,32], index: 3, kind: input, shape index: {}]
  %s4 = inlined_call_operand.vmem [shape: bf16[32,128], index: 4, kind: input, shape index: {}]
  %s5 = inlined_call_operand.vmem [shape: f32[1,128], index: 5, kind: input, shape index: {}]
  %s6 = inlined_call_operand.hbm [shape: f32[256,128], index: 6, kind: output, shape index: {}]
  %s7 = sld [smem:[#allocation0]]
  $region57: #{tpu_custom_call.1} parent=0
    _
  %s9 = ssub.s32 1, %s7
  %s10 = scalar_select 0, %s9, %s7
  $region1: #{tpu_custom_call.1} parent=0
    #allocation3 [shape = 'u8[131072]{0}', space=vmem, size = 0x20000, scoped, tag = 'output window, operand 0']
    #allocation4 [shape = 's32[2]{0}', space=sflag, size = 0x8, scoped, tag = 'scoped memory for tpu_custom_call.1']
    %11 = vsyncpa [#allocation4], 0
    %s12 = scalar_lea.sflag [#allocation4], 1
    %13 = vsyncpa %s12, 0
    loop: start=0, step=1, limit=4
    $region2: #{tpu_custom_call.1} parent=1 // loop_pre_header
      _
    $region3: #{tpu_custom_call.1} parent=1 // loop_header
      %s15 = sphi 0, %s19
      %p16 = scmp.ge.s32.totalorder %s15, 4
      %s25 = sphi 0, %s27
      %s28 = sphi 0, %s25
      %s29 = sphi 0, %s28
      %s45 = sphi 0, %s29
      %s49 = sphi 0, %s49
      %s51 = sphi 0, %s49
      %s52 = sphi 0, %s51
      %s66 = sphi 0, %s52
      %s70 = sphi 0, %s70
      %s72 = sphi 0, %s70
      %s73 = sphi 0, %s72
      %s87 = sphi 0, %s73
      %s91 = sphi 0, %s91
      %s93 = sphi 0, %s91
      %s94 = sphi 0, %s93
      %s108 = sphi 0, %s94
      %s112 = sphi 0, %s112
      %s114 = sphi 0, %s112
      %s115 = sphi 0, %s114
      %s129 = sphi 0, %s115
      %s133 = sphi 0, %s133
      %s135 = sphi 0, %s133
      %s136 = sphi 0, %s135
      %s150 = sphi 0, %s136
      %s156 = sphi 0, %s158
      %s159 = sphi 0, %s156
      %s160 = sphi 0, %s159
      %s176 = sphi 0, %s160
    $region4: #{tpu_custom_call.1} parent=1 // loop_header_branch
      %18 = sbr.rel (%p16) target = $region8
    $region5: #{tpu_custom_call.1} parent=1 // loop_body
      %s20 = ssub.s32 %s15, 1
      %s21 = ssub.s32 %s15, 2
      %s22 = sadd.s32 %s15, 1
      %s23 = ssub.s32 %s15, %s22
      %p24 = scmp.eq.s32.totalorder %s23, 0
      %s26 = sadd.s32 %s25, 1
      %s27 = scalar_select %p24, %s25, %s26
      %p30 = pneg %p24
      %p31 = scmp.eq.s32.totalorder %s15, 1
      %p32 = por %p30, %p31
      %p33 = scmp.ne.s32.totalorder %s25, %s28
      %p34 = scmp.eq.s32.totalorder %s15, 0
      %p35 = por %p33, %p34
      %p36 = scmp.ne.s32.totalorder %s25, %s28
      %p37 = scmp.eq.s32.totalorder %s20, 1
      %p38 = por %p36, %p37
      %p39 = scmp.ne.s32.totalorder %s28, %s29
      %p40 = scmp.eq.s32.totalorder %s20, 0
      %p41 = por %p39, %p40
      %p42 = scmp.ne.s32.totalorder %s28, %s29
      %p43 = scmp.eq.s32.totalorder %s21, 1
      %p44 = por %p42, %p43
      %p46 = scmp.ne.s32.totalorder %s29, %s45
      %p47 = scmp.eq.s32.totalorder %s21, 0
      %p48 = por %p46, %p47
      %s50 = sadd.s32 %s49, 1
      %p53 = scmp.eq.s32.totalorder %s15, 1
      %p54 = scmp.ne.s32.totalorder %s49, %s51
      %p55 = scmp.eq.s32.totalorder %s15, 0
      %p56 = por %p54, %p55
      %p57 = scmp.ne.s32.totalorder %s49, %s51
      %p58 = scmp.eq.s32.totalorder %s20, 1
      %p59 = por %p57, %p58
      %p60 = scmp.ne.s32.totalorder %s51, %s52
      %p61 = scmp.eq.s32.totalorder %s20, 0
      %p62 = por %p60, %p61
      %p63 = scmp.ne.s32.totalorder %s51, %s52
      %p64 = scmp.eq.s32.totalorder %s21, 1
      %p65 = por %p63, %p64
      %p67 = scmp.ne.s32.totalorder %s52, %s66
      %p68 = scmp.eq.s32.totalorder %s21, 0
      %p69 = por %p67, %p68
      %s71 = sadd.s32 %s70, 1
      %p74 = scmp.eq.s32.totalorder %s15, 1
      %p75 = scmp.ne.s32.totalorder %s70, %s72
      %p76 = scmp.eq.s32.totalorder %s15, 0
      %p77 = por %p75, %p76
      %p78 = scmp.ne.s32.totalorder %s70, %s72
      %p79 = scmp.eq.s32.totalorder %s20, 1
      %p80 = por %p78, %p79
      %p81 = scmp.ne.s32.totalorder %s72, %s73
      %p82 = scmp.eq.s32.totalorder %s20, 0
      %p83 = por %p81, %p82
      %p84 = scmp.ne.s32.totalorder %s72, %s73
      %p85 = scmp.eq.s32.totalorder %s21, 1
      %p86 = por %p84, %p85
      %p88 = scmp.ne.s32.totalorder %s73, %s87
      %p89 = scmp.eq.s32.totalorder %s21, 0
      %p90 = por %p88, %p89
      %s92 = sadd.s32 %s91, 1
      %p95 = scmp.eq.s32.totalorder %s15, 1
      %p96 = scmp.ne.s32.totalorder %s91, %s93
      %p97 = scmp.eq.s32.totalorder %s15, 0
      %p98 = por %p96, %p97
      %p99 = scmp.ne.s32.totalorder %s91, %s93
      %p100 = scmp.eq.s32.totalorder %s20, 1
      %p101 = por %p99, %p100
      %p102 = scmp.ne.s32.totalorder %s93, %s94
      %p103 = scmp.eq.s32.totalorder %s20, 0
      %p104 = por %p102, %p103
      %p105 = scmp.ne.s32.totalorder %s93, %s94
      %p106 = scmp.eq.s32.totalorder %s21, 1
      %p107 = por %p105, %p106
      %p109 = scmp.ne.s32.totalorder %s94, %s108
      %p110 = scmp.eq.s32.totalorder %s21, 0
      %p111 = por %p109, %p110
      %s113 = sadd.s32 %s112, 1
      %p116 = scmp.eq.s32.totalorder %s15, 1
      %p117 = scmp.ne.s32.totalorder %s112, %s114
      %p118 = scmp.eq.s32.totalorder %s15, 0
      %p119 = por %p117, %p118
      %p120 = scmp.ne.s32.totalorder %s112, %s114
      %p121 = scmp.eq.s32.totalorder %s20, 1
      %p122 = por %p120, %p121
      %p123 = scmp.ne.s32.totalorder %s114, %s115
      %p124 = scmp.eq.s32.totalorder %s20, 0
      %p125 = por %p123, %p124
      %p126 = scmp.ne.s32.totalorder %s114, %s115
      %p127 = scmp.eq.s32.totalorder %s21, 1
      %p128 = por %p126, %p127
      %p130 = scmp.ne.s32.totalorder %s115, %s129
      %p131 = scmp.eq.s32.totalorder %s21, 0
      %p132 = por %p130, %p131
      %s134 = sadd.s32 %s133, 1
      %p137 = scmp.eq.s32.totalorder %s15, 1
      %p138 = scmp.ne.s32.totalorder %s133, %s135
      %p139 = scmp.eq.s32.totalorder %s15, 0
      %p140 = por %p138, %p139
      %p141 = scmp.ne.s32.totalorder %s133, %s135
      %p142 = scmp.eq.s32.totalorder %s20, 1
      %p143 = por %p141, %p142
      %p144 = scmp.ne.s32.totalorder %s135, %s136
      %p145 = scmp.eq.s32.totalorder %s20, 0
      %p146 = por %p144, %p145
      %p147 = scmp.ne.s32.totalorder %s135, %s136
      %p148 = scmp.eq.s32.totalorder %s21, 1
      %p149 = por %p147, %p148
      %p151 = scmp.ne.s32.totalorder %s136, %s150
      %p152 = scmp.eq.s32.totalorder %s21, 0
      %p153 = por %p151, %p152
      %s154 = ssub.s32 %s15, %s22
      %p155 = scmp.eq.s32.totalorder %s154, 0
      %s157 = sadd.s32 %s156, 1
      %s158 = scalar_select %p155, %s156, %s157
      %p161 = pneg %p155
      %p162 = scmp.eq.s32.totalorder %s15, 1
      %p163 = por %p161, %p162
      %p164 = scmp.ne.s32.totalorder %s156, %s159
      %p165 = scmp.eq.s32.totalorder %s15, 0
      %p166 = por %p164, %p165
      %p167 = scmp.ne.s32.totalorder %s156, %s159
      %p168 = scmp.eq.s32.totalorder %s20, 1
      %p169 = por %p167, %p168
      %p170 = scmp.ne.s32.totalorder %s159, %s160
      %p171 = scmp.eq.s32.totalorder %s20, 0
      %p172 = por %p170, %p171
      %p173 = scmp.ne.s32.totalorder %s159, %s160
      %p174 = scmp.eq.s32.totalorder %s21, 1
      %p175 = por %p173, %p174
      %p177 = scmp.ne.s32.totalorder %s160, %s176
      %p178 = scmp.eq.s32.totalorder %s21, 0
      %p179 = por %p177, %p178
      %p180 = scmp.le.s32.totalorder 1, %s15
      %p181 = scmp.lt.s32.totalorder %s15, 3
      %p182 = pnand %p180, %p181
      %p183 = pneg %p182
      // Predicated region
      $region9: #{tpu_custom_call.1} parent=5 // pred_check
        _
      $region10: #{tpu_custom_call.1} parent=5 // pred_check_branch
        %185 = sbr.rel (%p182) target = $region12
      $region11: #{tpu_custom_call.1} parent=5 // pred_region
        %s186 = ssub.s32 %s15, 1
        // Predicated region
        $region13: #{tpu_custom_call.1} parent=11 // pred_check
          %p187 = pneg %p62
        $region14: #{tpu_custom_call.1} parent=11 // pred_check_branch
          %189 = sbr.rel (%p187) target = $region16
        $region15: #{tpu_custom_call.1} parent=11 // pred_region
          _
        $region16: #{tpu_custom_call.1} parent=11 // pred_fallthru
          _
        // Predicated region
        $region17: #{tpu_custom_call.1} parent=11 // pred_check
          %p190 = pneg %p83
        $region18: #{tpu_custom_call.1} parent=11 // pred_check_branch
          %192 = sbr.rel (%p190) target = $region20
        $region19: #{tpu_custom_call.1} parent=11 // pred_region
          _
        $region20: #{tpu_custom_call.1} parent=11 // pred_fallthru
          _
        // Predicated region
        $region21: #{tpu_custom_call.1} parent=11 // pred_check
          %p193 = pneg %p104
        $region22: #{tpu_custom_call.1} parent=11 // pred_check_branch
          %195 = sbr.rel (%p193) target = $region24
        $region23: #{tpu_custom_call.1} parent=11 // pred_region
          _
        $region24: #{tpu_custom_call.1} parent=11 // pred_fallthru
          _
        // Predicated region
        $region25: #{tpu_custom_call.1} parent=11 // pred_check
          %p196 = pneg %p125
        $region26: #{tpu_custom_call.1} parent=11 // pred_check_branch
          %198 = sbr.rel (%p196) target = $region28
        $region27: #{tpu_custom_call.1} parent=11 // pred_region
          _
        $region28: #{tpu_custom_call.1} parent=11 // pred_fallthru
          _
        // Predicated region
        $region29: #{tpu_custom_call.1} parent=11 // pred_check
          %p199 = pneg %p146
        $region30: #{tpu_custom_call.1} parent=11 // pred_check_branch
          %201 = sbr.rel (%p199) target = $region32
        $region31: #{tpu_custom_call.1} parent=11 // pred_region
          _
        $region32: #{tpu_custom_call.1} parent=11 // pred_fallthru
          _
      $region12: #{tpu_custom_call.1} parent=5 // pred_fallthru
        _
      %p202 = scmp.lt.s32.totalorder %s15, 2
      // Predicated region
      $region33: #{tpu_custom_call.1} parent=5 // pred_check
        %p203 = pneg %p202
      $region34: #{tpu_custom_call.1} parent=5 // pred_check_branch
        %205 = sbr.rel (%p203) target = $region36
      $region35: #{tpu_custom_call.1} parent=5 // pred_region
        // Predicated region
        $region37: #{tpu_custom_call.1} parent=35 // pred_check
          %p206 = pneg %p35
        $region38: #{tpu_custom_call.1} parent=35 // pred_check_branch
          %208 = sbr.rel (%p206) target = $region40
        $region39: #{tpu_custom_call.1} parent=35 // pred_region
          %s209 = smul.u32 16, %s15
          %p210 = scmp.lt.s32.totalorder %s209, 31
          %s211 = scalar_select %p210, %s209, 31
          %s212 = smul.addr %s211, 8
          %s213 = scalar_lea.vmem %s0, %s212
          %s214 = smul.u32 16, %s15
        $region40: #{tpu_custom_call.1} parent=35 // pred_fallthru
          _
      $region36: #{tpu_custom_call.1} parent=5 // pred_fallthru
        _
      %p215 = scmp.le.s32.totalorder 1, %s15
      %p216 = scmp.lt.s32.totalorder %s15, 3
      %p217 = pnand %p215, %p216
      %p218 = pneg %p217
      // Predicated region
      $region41: #{tpu_custom_call.1} parent=5 // pred_check
        _
      $region42: #{tpu_custom_call.1} parent=5 // pred_check_branch
        %220 = sbr.rel (%p217) target = $region44
      $region43: #{tpu_custom_call.1} parent=5 // pred_region
        %s221 = ssub.s32 %s15, 1
        %s222 = smul.u32 16, %s20
        %p223 = scmp.lt.s32.totalorder %s222, 31
        %s224 = scalar_select %p223, %s222, 31
        %s225 = smul.addr %s224, 8
        %s226 = scalar_lea.vmem %s0, %s225
        %p227 = pneg %p41
        %p228 = pneg %p38
        %p229 = pneg %p62
        %p230 = pneg %p59
        %p231 = pneg %p83
        %p232 = pneg %p80
        %p233 = pneg %p104
        %p234 = pneg %p101
        %p235 = pneg %p125
        %p236 = pneg %p122
        %p237 = pneg %p146
        %p238 = pneg %p143
        %p239 = pneg %p172
        %p240 = pneg %p169
        %s241 = sand.u32 %s159, 1
        %s242 = scalar_lea.sflag [#allocation4], %s241
        %s243 = sand.u32 %s159, 1
        %s244 = smul.addr %s243, 128
        %s245 = scalar_lea.vmem [#allocation3], %s244
        %s246 = smul.u32 16, %s20
        %p247 = scmp.lt.s32.totalorder %s246, 31
        %s248 = scalar_select %p247, %s246, 31
        %s249 = smul.addr %s248, 8
        %s250 = scalar_lea.vmem %s0, %s249
        %s251 = smul.u32 16, %s20
        %s252 = smul.u32 16, %s20
        %v254 = vld [vmem:[%s1] sm:$0xf]
        %v255 = vld [vmem:[%s1 + $0x4] sm:$0xf]
        %v256 = vld [vmem:[%s1 + $0x8] sm:$0xf]
        %v257 = vld [vmem:[%s1 + $0xc] sm:$0xf]
        %v258 = vld [vmem:[%s1 + $0x10] sm:$0xf]
        %v259 = vld [vmem:[%s1 + $0x14] sm:$0xf]
        %v260 = vld [vmem:[%s1 + $0x18] sm:$0xf]
        %v261 = vld [vmem:[%s1 + $0x1c] sm:$0xf]
        %v262 = vlaneseq
        %v263 = vand.u32 %v262, 127
        %v264 = vld [vmem:[%s250] sm:$0xff]
        %v265 = vld [vmem:[%s250 + $0x8] sm:$0xff]
        %v266 = vld [vmem:[%s250 + $0x10] sm:$0xff]
        %v267 = vld [vmem:[%s250 + $0x18] sm:$0xff]
        %v268 = vld [vmem:[%s250 + $0x20] sm:$0xff]
        %v269 = vld [vmem:[%s250 + $0x28] sm:$0xff]
        %v270 = vld [vmem:[%s250 + $0x30] sm:$0xff]
        %v271 = vld [vmem:[%s250 + $0x38] sm:$0xff]
        %v272 = vld [vmem:[%s250 + $0x40] sm:$0xff]
        %v273 = vld [vmem:[%s250 + $0x48] sm:$0xff]
        %v274 = vld [vmem:[%s250 + $0x50] sm:$0xff]
        %v275 = vld [vmem:[%s250 + $0x58] sm:$0xff]
        %v276 = vld [vmem:[%s250 + $0x60] sm:$0xff]
        %v277 = vld [vmem:[%s250 + $0x68] sm:$0xff]
        %v278 = vld [vmem:[%s250 + $0x70] sm:$0xff]
        %v279 = vld [vmem:[%s250 + $0x78] sm:$0xff]
        %280 = vset.pattern.permute.xlu0 0
        %281 = vperm.xlu0 %280, %v264
        %v282 = vpop.permute.xlu0 %281
        %283 = vset.pattern.permute.xlu0 0
        %284 = vperm.xlu0 %283, %v265
        %v285 = vpop.permute.xlu0 %284
        %286 = vset.pattern.permute.xlu0 0
        %287 = vperm.xlu0 %286, %v266
        %v288 = vpop.permute.xlu0 %287
        %289 = vset.pattern.permute.xlu0 0
        %290 = vperm.xlu0 %289, %v267
        %v291 = vpop.permute.xlu0 %290
        %292 = vset.pattern.permute.xlu0 0
        %293 = vperm.xlu0 %292, %v268
        %v294 = vpop.permute.xlu0 %293
        %295 = vset.pattern.permute.xlu0 0
        %296 = vperm.xlu0 %295, %v269
        %v297 = vpop.permute.xlu0 %296
        %298 = vset.pattern.permute.xlu0 0
        %299 = vperm.xlu0 %298, %v270
        %v300 = vpop.permute.xlu0 %299
        %301 = vset.pattern.permute.xlu0 0
        %302 = vperm.xlu0 %301, %v271
        %v303 = vpop.permute.xlu0 %302
        %304 = vset.pattern.permute.xlu0 0
        %305 = vperm.xlu0 %304, %v272
        %v306 = vpop.permute.xlu0 %305
        %307 = vset.pattern.permute.xlu0 0
        %308 = vperm.xlu0 %307, %v273
        %v309 = vpop.permute.xlu0 %308
        %310 = vset.pattern.permute.xlu0 0
        %311 = vperm.xlu0 %310, %v274
        %v312 = vpop.permute.xlu0 %311
        %313 = vset.pattern.permute.xlu0 0
        %314 = vperm.xlu0 %313, %v275
        %v315 = vpop.permute.xlu0 %314
        %316 = vset.pattern.permute.xlu0 0
        %317 = vperm.xlu0 %316, %v276
        %v318 = vpop.permute.xlu0 %317
        %319 = vset.pattern.permute.xlu0 0
        %320 = vperm.xlu0 %319, %v277
        %v321 = vpop.permute.xlu0 %320
        %322 = vset.pattern.permute.xlu0 0
        %323 = vperm.xlu0 %322, %v278
        %v324 = vpop.permute.xlu0 %323
        %325 = vset.pattern.permute.xlu0 0
        %326 = vperm.xlu0 %325, %v279
        %v327 = vpop.permute.xlu0 %326
        %vm328 = vcmp.eq.s32.totalorder %v263, %v282
        %vm329 = vcmp.eq.s32.totalorder %v263, %v285
        %vm330 = vcmp.eq.s32.totalorder %v263, %v288
        %vm331 = vcmp.eq.s32.totalorder %v263, %v291
        %vm332 = vcmp.eq.s32.totalorder %v263, %v294
        %vm333 = vcmp.eq.s32.totalorder %v263, %v297
        %vm334 = vcmp.eq.s32.totalorder %v263, %v300
        %vm335 = vcmp.eq.s32.totalorder %v263, %v303
        %vm336 = vcmp.eq.s32.totalorder %v263, %v306
        %vm337 = vcmp.eq.s32.totalorder %v263, %v309
        %vm338 = vcmp.eq.s32.totalorder %v263, %v312
        %vm339 = vcmp.eq.s32.totalorder %v263, %v315
        %vm340 = vcmp.eq.s32.totalorder %v263, %v318
        %vm341 = vcmp.eq.s32.totalorder %v263, %v321
        %vm342 = vcmp.eq.s32.totalorder %v263, %v324
        %vm343 = vcmp.eq.s32.totalorder %v263, %v327
        %v344 = vsel %vm328, 1, 0
        %v345 = vsel %vm329, 1, 0
        %v346 = vsel %vm330, 1, 0
        %v347 = vsel %vm331, 1, 0
        %v348 = vsel %vm332, 1, 0
        %v349 = vsel %vm333, 1, 0
        %v350 = vsel %vm334, 1, 0
        %v351 = vsel %vm335, 1, 0
        %v352 = vsel %vm336, 1, 0
        %v353 = vsel %vm337, 1, 0
        %v354 = vsel %vm338, 1, 0
        %v355 = vsel %vm339, 1, 0
        %v356 = vsel %vm340, 1, 0
        %v357 = vsel %vm341, 1, 0
        %v358 = vsel %vm342, 1, 0
        %v359 = vsel %vm343, 1, 0
        %v360 = vcvt.s32.f32 %v344
        %v361 = vcvt.s32.f32 %v345
        %v362 = vcvt.s32.f32 %v346
        %v363 = vcvt.s32.f32 %v347
        %v364 = vcvt.s32.f32 %v348
        %v365 = vcvt.s32.f32 %v349
        %v366 = vcvt.s32.f32 %v350
        %v367 = vcvt.s32.f32 %v351
        %v368 = vcvt.s32.f32 %v352
        %v369 = vcvt.s32.f32 %v353
        %v370 = vcvt.s32.f32 %v354
        %v371 = vcvt.s32.f32 %v355
        %v372 = vcvt.s32.f32 %v356
        %v373 = vcvt.s32.f32 %v357
        %v374 = vcvt.s32.f32 %v358
        %v375 = vcvt.s32.f32 %v359
        %v376 = vpack.c.bf16 %v361, %v360
        %v377 = vpack.c.bf16 %v363, %v362
        %v378 = vpack.c.bf16 %v365, %v364
        %v379 = vpack.c.bf16 %v367, %v366
        %v380 = vpack.c.bf16 %v369, %v368
        %v381 = vpack.c.bf16 %v371, %v370
        %v382 = vpack.c.bf16 %v373, %v372
        %v383 = vpack.c.bf16 %v375, %v374
        %v392 = vunpack.c.l.b16 %v254
        %v393 = vunpack.c.l.b16 %v255
        %v394 = vunpack.c.l.b16 %v256
        %v395 = vunpack.c.l.b16 %v257
        %v396 = vunpack.c.l.b16 %v258
        %v397 = vunpack.c.l.b16 %v259
        %v398 = vunpack.c.l.b16 %v260
        %v399 = vunpack.c.l.b16 %v261
        %v400 = vpack.c.b16 %v393, %v392
        %v401 = vpack.c.b16 %v395, %v394
        %v402 = vpack.c.b16 %v397, %v396
        %v403 = vpack.c.b16 %v399, %v398
        %vm408 = vcmask 523264
        %v410 = vsel %vm408, %v376, 0
        %v413 = vsel %vm408, %v377, 0
        %v416 = vsel %vm408, %v378, 0
        %v419 = vsel %vm408, %v379, 0
        %v422 = vsel %vm408, %v380, 0
        %v425 = vsel %vm408, %v381, 0
        %v428 = vsel %vm408, %v382, 0
        %v431 = vsel %vm408, %v383, 0
        %433 = vmatprep.subr.bf16.mxu0 0
        %434 = vmatpush1.bf16.msra.mxu0 %v400
        %435 = vmatprep.subr.bf16.mxu0 0
        %436 = vmatpush1.bf16.msra.mxu0 %v401
        %437 = vmatprep.subr.bf16.mxu0 0
        %438 = vmatpush1.bf16.msra.mxu0 %v402
        %439 = vmatprep.subr.bf16.mxu0 0
        %440 = vmatpush1.bf16.msra.mxu0 %v403
        %441 = vmatprep.subr.bf16.mxu0 0
        %442 = vmatpush1.bf16.msra.mxu0 0
        %443 = vmatprep.subr.bf16.mxu0 0
        %444 = vmatpush1.bf16.msra.mxu0 0
        %445 = vmatprep.subr.bf16.mxu0 0
        %446 = vmatpush1.bf16.msra.mxu0 0
        %447 = vmatprep.subr.bf16.mxu0 0
        %448 = vmatpush1.bf16.msra.mxu0 0
        %449 = vmatprep.subr.bf16.mxu0 0
        %450 = vmatpush1.bf16.msra.mxu0 0
        %451 = vmatprep.subr.bf16.mxu0 0
        %452 = vmatpush1.bf16.msra.mxu0 0
        %453 = vmatprep.subr.bf16.mxu0 0
        %454 = vmatpush1.bf16.msra.mxu0 0
        %455 = vmatprep.subr.bf16.mxu0 0
        %456 = vmatpush1.bf16.msra.mxu0 0
        %457 = vmatprep.subr.bf16.mxu0 0
        %458 = vmatpush1.bf16.msra.mxu0 0
        %459 = vmatprep.subr.bf16.mxu0 0
        %460 = vmatpush1.bf16.msra.mxu0 0
        %461 = vmatprep.subr.bf16.mxu0 0
        %462 = vmatpush1.bf16.msra.mxu0 0
        %463 = vmatprep.subr.bf16.mxu0 0
        %464 = vmatpush1.bf16.msra.mxu0 0
        %465 = vmatprep.mubr.bf16.mxu0 0
        %466 = vmatmul.mubr.bf16.gmra.mrb[0].mxu0 %v410
        %v467 = vpop.f32.mrb[0].mxu0
        %v468 = vadd.f32 0.0, %v467
        %v469 = vpop.f32.mrb[0].mxu0
        %v470 = vpop.f32.mrb[0].mxu0
        %v471 = vadd.f32 0.0, %v470
        %v472 = vpop.f32.mrb[0].mxu0
        %473 = vmatprep.mubr.bf16.mxu0 0
        %474 = vmatmul.mubr.bf16.gmra.mrb[0].mxu0 %v413
        %v475 = vpop.f32.mrb[0].mxu0
        %v476 = vadd.f32 0.0, %v475
        %v477 = vpop.f32.mrb[0].mxu0
        %v478 = vpop.f32.mrb[0].mxu0
        %v479 = vadd.f32 0.0, %v478
        %v480 = vpop.f32.mrb[0].mxu0
        %481 = vmatprep.mubr.bf16.mxu0 0
        %482 = vmatmul.mubr.bf16.gmra.mrb[0].mxu0 %v416
        %v483 = vpop.f32.mrb[0].mxu0
        %v484 = vadd.f32 0.0, %v483
        %v485 = vpop.f32.mrb[0].mxu0
        %v486 = vpop.f32.mrb[0].mxu0
        %v487 = vadd.f32 0.0, %v486
        %v488 = vpop.f32.mrb[0].mxu0
        %489 = vmatprep.mubr.bf16.mxu0 0
        %490 = vmatmul.mubr.bf16.gmra.mrb[0].mxu0 %v419
        %v491 = vpop.f32.mrb[0].mxu0
        %v492 = vadd.f32 0.0, %v491
        %v493 = vpop.f32.mrb[0].mxu0
        %v494 = vpop.f32.mrb[0].mxu0
        %v495 = vadd.f32 0.0, %v494
        %v496 = vpop.f32.mrb[0].mxu0
        %497 = vmatprep.mubr.bf16.mxu0 0
        %498 = vmatmul.mubr.bf16.gmra.mrb[0].mxu0 %v422
        %v499 = vpop.f32.mrb[0].mxu0
        %v500 = vadd.f32 0.0, %v499
        %v501 = vpop.f32.mrb[0].mxu0
        %v502 = vpop.f32.mrb[0].mxu0
        %v503 = vadd.f32 0.0, %v502
        %v504 = vpop.f32.mrb[0].mxu0
        %505 = vmatprep.mubr.bf16.mxu0 0
        %506 = vmatmul.mubr.bf16.gmra.mrb[0].mxu0 %v425
        %v507 = vpop.f32.mrb[0].mxu0
        %v508 = vadd.f32 0.0, %v507
        %v509 = vpop.f32.mrb[0].mxu0
        %v510 = vpop.f32.mrb[0].mxu0
        %v511 = vadd.f32 0.0, %v510
        %v512 = vpop.f32.mrb[0].mxu0
        %513 = vmatprep.mubr.bf16.mxu0 0
        %514 = vmatmul.mubr.bf16.gmra.mrb[0].mxu0 %v428
        %v515 = vpop.f32.mrb[0].mxu0
        %v516 = vadd.f32 0.0, %v515
        %v517 = vpop.f32.mrb[0].mxu0
        %v518 = vpop.f32.mrb[0].mxu0
        %v519 = vadd.f32 0.0, %v518
        %v520 = vpop.f32.mrb[0].mxu0
        %521 = vmatprep.mubr.bf16.mxu0 0
        %522 = vmatmul.mubr.bf16.gmra.mrb[0].mxu0 %v431
        %v523 = vpop.f32.mrb[0].mxu0
        %v524 = vadd.f32 0.0, %v523
        %v525 = vpop.f32.mrb[0].mxu0
        %v526 = vpop.f32.mrb[0].mxu0
        %v527 = vadd.f32 0.0, %v526
        %v528 = vpop.f32.mrb[0].mxu0
        %529 = vdwg.mxu0
        %vm530 = vcmask 130048
        %531 = vst.msk [vmem:[#allocation2] sm:$0xff] %vm530, %v468
        %532 = vst.msk [vmem:[#allocation2 + $0x8] sm:$0xff] %vm530, %v471
        %533 = vst.msk [vmem:[#allocation2 + $0x10] sm:$0xff] %vm530, %v476
        %534 = vst.msk [vmem:[#allocation2 + $0x18] sm:$0xff] %vm530, %v479
        %535 = vst.msk [vmem:[#allocation2 + $0x20] sm:$0xff] %vm530, %v484
        %536 = vst.msk [vmem:[#allocation2 + $0x28] sm:$0xff] %vm530, %v487
        %537 = vst.msk [vmem:[#allocation2 + $0x30] sm:$0xff] %vm530, %v492
        %538 = vst.msk [vmem:[#allocation2 + $0x38] sm:$0xff] %vm530, %v495
        %539 = vst.msk [vmem:[#allocation2 + $0x40] sm:$0xff] %vm530, %v500
        %540 = vst.msk [vmem:[#allocation2 + $0x48] sm:$0xff] %vm530, %v503
        %541 = vst.msk [vmem:[#allocation2 + $0x50] sm:$0xff] %vm530, %v508
        %542 = vst.msk [vmem:[#allocation2 + $0x58] sm:$0xff] %vm530, %v511
        %543 = vst.msk [vmem:[#allocation2 + $0x60] sm:$0xff] %vm530, %v516
        %544 = vst.msk [vmem:[#allocation2 + $0x68] sm:$0xff] %vm530, %v519
        %545 = vst.msk [vmem:[#allocation2 + $0x70] sm:$0xff] %vm530, %v524
        %546 = vst.msk [vmem:[#allocation2 + $0x78] sm:$0xff] %vm530, %v527
        %v547 = vld [vmem:[%s250] sm:$0xff]
        %v548 = vld [vmem:[%s250 + $0x8] sm:$0xff]
        %v549 = vld [vmem:[%s250 + $0x10] sm:$0xff]
        %v550 = vld [vmem:[%s250 + $0x18] sm:$0xff]
        %v551 = vld [vmem:[%s250 + $0x20] sm:$0xff]
        %v552 = vld [vmem:[%s250 + $0x28] sm:$0xff]
        %v553 = vld [vmem:[%s250 + $0x30] sm:$0xff]
        %v554 = vld [vmem:[%s250 + $0x38] sm:$0xff]
        %v555 = vld [vmem:[%s250 + $0x40] sm:$0xff]
        %v556 = vld [vmem:[%s250 + $0x48] sm:$0xff]
        %v557 = vld [vmem:[%s250 + $0x50] sm:$0xff]
        %v558 = vld [vmem:[%s250 + $0x58] sm:$0xff]
        %v559 = vld [vmem:[%s250 + $0x60] sm:$0xff]
        %v560 = vld [vmem:[%s250 + $0x68] sm:$0xff]
        %v561 = vld [vmem:[%s250 + $0x70] sm:$0xff]
        %v562 = vld [vmem:[%s250 + $0x78] sm:$0xff]
        %563 = vset.pattern.permute.xlu0 1
        %564 = vperm.xlu0 %563, %v547
        %v565 = vpop.permute.xlu0 %564
        %566 = vset.pattern.permute.xlu0 1
        %567 = vperm.xlu0 %566, %v548
        %v568 = vpop.permute.xlu0 %567
        %569 = vset.pattern.permute.xlu0 1
        %570 = vperm.xlu0 %569, %v549
        %v571 = vpop.permute.xlu0 %570
        %572 = vset.pattern.permute.xlu0 1
        %573 = vperm.xlu0 %572, %v550
        %v574 = vpop.permute.xlu0 %573
        %575 = vset.pattern.permute.xlu0 1
        %576 = vperm.xlu0 %575, %v551
        %v577 = vpop.permute.xlu0 %576
        %578 = vset.pattern.permute.xlu0 1
        %579 = vperm.xlu0 %578, %v552
        %v580 = vpop.permute.xlu0 %579
        %581 = vset.pattern.permute.xlu0 1
        %582 = vperm.xlu0 %581, %v553
        %v583 = vpop.permute.xlu0 %582
        %584 = vset.pattern.permute.xlu0 1
        %585 = vperm.xlu0 %584, %v554
        %v586 = vpop.permute.xlu0 %585
        %587 = vset.pattern.permute.xlu0 1
        %588 = vperm.xlu0 %587, %v555
        %v589 = vpop.permute.xlu0 %588
        %590 = vset.pattern.permute.xlu0 1
        %591 = vperm.xlu0 %590, %v556
        %v592 = vpop.permute.xlu0 %591
        %593 = vset.pattern.permute.xlu0 1
        %594 = vperm.xlu0 %593, %v557
        %v595 = vpop.permute.xlu0 %594
        %596 = vset.pattern.permute.xlu0 1
        %597 = vperm.xlu0 %596, %v558
        %v598 = vpop.permute.xlu0 %597
        %599 = vset.pattern.permute.xlu0 1
        %600 = vperm.xlu0 %599, %v559
        %v601 = vpop.permute.xlu0 %600
        %602 = vset.pattern.permute.xlu0 1
        %603 = vperm.xlu0 %602, %v560
        %v604 = vpop.permute.xlu0 %603
        %605 = vset.pattern.permute.xlu0 1
        %606 = vperm.xlu0 %605, %v561
        %v607 = vpop.permute.xlu0 %606
        %608 = vset.pattern.permute.xlu0 1
        %609 = vperm.xlu0 %608, %v562
        %v610 = vpop.permute.xlu0 %609
        %vm611 = vcmp.eq.s32.totalorder %v263, %v565
        %vm612 = vcmp.eq.s32.totalorder %v263, %v568
        %vm613 = vcmp.eq.s32.totalorder %v263, %v571
        %vm614 = vcmp.eq.s32.totalorder %v263, %v574
        %vm615 = vcmp.eq.s32.totalorder %v263, %v577
        %vm616 = vcmp.eq.s32.totalorder %v263, %v580
        %vm617 = vcmp.eq.s32.totalorder %v263, %v583
        %vm618 = vcmp.eq.s32.totalorder %v263, %v586
        %vm619 = vcmp.eq.s32.totalorder %v263, %v589
        %vm620 = vcmp.eq.s32.totalorder %v263, %v592
        %vm621 = vcmp.eq.s32.totalorder %v263, %v595
        %vm622 = vcmp.eq.s32.totalorder %v263, %v598
        %vm623 = vcmp.eq.s32.totalorder %v263, %v601
        %vm624 = vcmp.eq.s32.totalorder %v263, %v604
        %vm625 = vcmp.eq.s32.totalorder %v263, %v607
        %vm626 = vcmp.eq.s32.totalorder %v263, %v610
        %v627 = vsel %vm611, 1, 0
        %v628 = vsel %vm612, 1, 0
        %v629 = vsel %vm613, 1, 0
        %v630 = vsel %vm614, 1, 0
        %v631 = vsel %vm615, 1, 0
        %v632 = vsel %vm616, 1, 0
        %v633 = vsel %vm617, 1, 0
        %v634 = vsel %vm618, 1, 0
        %v635 = vsel %vm619, 1, 0
        %v636 = vsel %vm620, 1, 0
        %v637 = vsel %vm621, 1, 0
        %v638 = vsel %vm622, 1, 0
        %v639 = vsel %vm623, 1, 0
        %v640 = vsel %vm624, 1, 0
        %v641 = vsel %vm625, 1, 0
        %v642 = vsel %vm626, 1, 0
        %v643 = vcvt.s32.f32 %v627
        %v644 = vcvt.s32.f32 %v628
        %v645 = vcvt.s32.f32 %v629
        %v646 = vcvt.s32.f32 %v630
        %v647 = vcvt.s32.f32 %v631
        %v648 = vcvt.s32.f32 %v632
        %v649 = vcvt.s32.f32 %v633
        %v650 = vcvt.s32.f32 %v634
        %v651 = vcvt.s32.f32 %v635
        %v652 = vcvt.s32.f32 %v636
        %v653 = vcvt.s32.f32 %v637
        %v654 = vcvt.s32.f32 %v638
        %v655 = vcvt.s32.f32 %v639
        %v656 = vcvt.s32.f32 %v640
        %v657 = vcvt.s32.f32 %v641
        %v658 = vcvt.s32.f32 %v642
        %v659 = vpack.c.bf16 %v644, %v643
        %v660 = vpack.c.bf16 %v646, %v645
        %v661 = vpack.c.bf16 %v648, %v647
        %v662 = vpack.c.bf16 %v650, %v649
        %v663 = vpack.c.bf16 %v652, %v651
        %v664 = vpack.c.bf16 %v654, %v653
        %v665 = vpack.c.bf16 %v656, %v655
        %v666 = vpack.c.bf16 %v658, %v657
        %v668 = vsel %vm408, %v659, 0
        %v671 = vsel %vm408, %v660, 0
        %v674 = vsel %vm408, %v661, 0
        %v677 = vsel %vm408, %v662, 0
        %v680 = vsel %vm408, %v663, 0
        %v683 = vsel %vm408, %v664, 0
        %v686 = vsel %vm408, %v665, 0
        %v689 = vsel %vm408, %v666, 0
        %691 = vmatprep.subr.bf16.mxu0 0
        %692 = vmatpush1.bf16.msra.mxu0 %v400
        %693 = vmatprep.subr.bf16.mxu0 0
        %694 = vmatpush1.bf16.msra.mxu0 %v401
        %695 = vmatprep.subr.bf16.mxu0 0
        %696 = vmatpush1.bf16.msra.mxu0 %v402
        %697 = vmatprep.subr.bf16.mxu0 0
        %698 = vmatpush1.bf16.msra.mxu0 %v403
        %699 = vmatprep.subr.bf16.mxu0 0
        %700 = vmatpush1.bf16.msra.mxu0 0
        %701 = vmatprep.subr.bf16.mxu0 0
        %702 = vmatpush1.bf16.msra.mxu0 0
        %703 = vmatprep.subr.bf16.mxu0 0
        %704 = vmatpush1.bf16.msra.mxu0 0
        %705 = vmatprep.subr.bf16.mxu0 0
        %706 = vmatpush1.bf16.msra.mxu0 0
        %707 = vmatprep.subr.bf16.mxu0 0
        %708 = vmatpush1.bf16.msra.mxu0 0
        %709 = vmatprep.subr.bf16.mxu0 0
        %710 = vmatpush1.bf16.msra.mxu0 0
        %711 = vmatprep.subr.bf16.mxu0 0
        %712 = vmatpush1.bf16.msra.mxu0 0
        %713 = vmatprep.subr.bf16.mxu0 0
        %714 = vmatpush1.bf16.msra.mxu0 0
        %715 = vmatprep.subr.bf16.mxu0 0
        %716 = vmatpush1.bf16.msra.mxu0 0
        %717 = vmatprep.subr.bf16.mxu0 0
        %718 = vmatpush1.bf16.msra.mxu0 0
        %719 = vmatprep.subr.bf16.mxu0 0
        %720 = vmatpush1.bf16.msra.mxu0 0
        %721 = vmatprep.subr.bf16.mxu0 0
        %722 = vmatpush1.bf16.msra.mxu0 0
        %723 = vmatprep.mubr.bf16.mxu0 0
        %724 = vmatmul.mubr.bf16.gmra.mrb[0].mxu0 %v668
        %v725 = vpop.f32.mrb[0].mxu0
        %v726 = vadd.f32 0.0, %v725
        %v727 = vpop.f32.mrb[0].mxu0
        %v728 = vpop.f32.mrb[0].mxu0
        %v729 = vadd.f32 0.0, %v728
        %v730 = vpop.f32.mrb[0].mxu0
        %731 = vmatprep.mubr.bf16.mxu0 0
        %732 = vmatmul.mubr.bf16.gmra.mrb[0].mxu0 %v671
        %v733 = vpop.f32.mrb[0].mxu0
        %v734 = vadd.f32 0.0, %v733
        %v735 = vpop.f32.mrb[0].mxu0
        %v736 = vpop.f32.mrb[0].mxu0
        %v737 = vadd.f32 0.0, %v736
        %v738 = vpop.f32.mrb[0].mxu0
        %739 = vmatprep.mubr.bf16.mxu0 0
        %740 = vmatmul.mubr.bf16.gmra.mrb[0].mxu0 %v674
        %v741 = vpop.f32.mrb[0].mxu0
        %v742 = vadd.f32 0.0, %v741
        %v743 = vpop.f32.mrb[0].mxu0
        %v744 = vpop.f32.mrb[0].mxu0
        %v745 = vadd.f32 0.0, %v744
        %v746 = vpop.f32.mrb[0].mxu0
        %747 = vmatprep.mubr.bf16.mxu0 0
        %748 = vmatmul.mubr.bf16.gmra.mrb[0].mxu0 %v677
        %v749 = vpop.f32.mrb[0].mxu0
        %v750 = vadd.f32 0.0, %v749
        %v751 = vpop.f32.mrb[0].mxu0
        %v752 = vpop.f32.mrb[0].mxu0
        %v753 = vadd.f32 0.0, %v752
        %v754 = vpop.f32.mrb[0].mxu0
        %755 = vmatprep.mubr.bf16.mxu0 0
        %756 = vmatmul.mubr.bf16.gmra.mrb[0].mxu0 %v680
        %v757 = vpop.f32.mrb[0].mxu0
        %v758 = vadd.f32 0.0, %v757
        %v759 = vpop.f32.mrb[0].mxu0
        %v760 = vpop.f32.mrb[0].mxu0
        %v761 = vadd.f32 0.0, %v760
        %v762 = vpop.f32.mrb[0].mxu0
        %763 = vmatprep.mubr.bf16.mxu0 0
        %764 = vmatmul.mubr.bf16.gmra.mrb[0].mxu0 %v683
        %v765 = vpop.f32.mrb[0].mxu0
        %v766 = vadd.f32 0.0, %v765
        %v767 = vpop.f32.mrb[0].mxu0
        %v768 = vpop.f32.mrb[0].mxu0
        %v769 = vadd.f32 0.0, %v768
        %v770 = vpop.f32.mrb[0].mxu0
        %771 = vmatprep.mubr.bf16.mxu0 0
        %772 = vmatmul.mubr.bf16.gmra.mrb[0].mxu0 %v686
        %v773 = vpop.f32.mrb[0].mxu0
        %v774 = vadd.f32 0.0, %v773
        %v775 = vpop.f32.mrb[0].mxu0
        %v776 = vpop.f32.mrb[0].mxu0
        %v777 = vadd.f32 0.0, %v776
        %v778 = vpop.f32.mrb[0].mxu0
        %779 = vmatprep.mubr.bf16.mxu0 0
        %780 = vmatmul.mubr.bf16.gmra.mrb[0].mxu0 %v689
        %v781 = vpop.f32.mrb[0].mxu0
        %v782 = vadd.f32 0.0, %v781
        %v783 = vpop.f32.mrb[0].mxu0
        %v784 = vpop.f32.mrb[0].mxu0
        %v785 = vadd.f32 0.0, %v784
        %v786 = vpop.f32.mrb[0].mxu0
        %787 = vdwg.mxu0
        %804 = vrot.lane.b32.xlu0 %v726, 16
        %v805 = vpop.permute.xlu0 %804
        %806 = vrot.lane.b32.xlu0 %v729, 16
        %v807 = vpop.permute.xlu0 %806
        %808 = vrot.lane.b32.xlu0 %v734, 16
        %v809 = vpop.permute.xlu0 %808
        %810 = vrot.lane.b32.xlu0 %v737, 16
        %v811 = vpop.permute.xlu0 %810
        %812 = vrot.lane.b32.xlu0 %v742, 16
        %v813 = vpop.permute.xlu0 %812
        %814 = vrot.lane.b32.xlu0 %v745, 16
        %v815 = vpop.permute.xlu0 %814
        %816 = vrot.lane.b32.xlu0 %v750, 16
        %v817 = vpop.permute.xlu0 %816
        %818 = vrot.lane.b32.xlu0 %v753, 16
        %v819 = vpop.permute.xlu0 %818
        %820 = vrot.lane.b32.xlu0 %v758, 16
        %v821 = vpop.permute.xlu0 %820
        %822 = vrot.lane.b32.xlu0 %v761, 16
        %v823 = vpop.permute.xlu0 %822
        %824 = vrot.lane.b32.xlu0 %v766, 16
        %v825 = vpop.permute.xlu0 %824
        %826 = vrot.lane.b32.xlu0 %v769, 16
        %v827 = vpop.permute.xlu0 %826
        %828 = vrot.lane.b32.xlu0 %v774, 16
        %v829 = vpop.permute.xlu0 %828
        %830 = vrot.lane.b32.xlu0 %v777, 16
        %v831 = vpop.permute.xlu0 %830
        %832 = vrot.lane.b32.xlu0 %v782, 16
        %v833 = vpop.permute.xlu0 %832
        %834 = vrot.lane.b32.xlu0 %v785, 16
        %v835 = vpop.permute.xlu0 %834
        %vm852 = vcmask 261248
        %853 = vst.msk [vmem:[#allocation2] sm:$0xff] %vm852, %v805
        %854 = vst.msk [vmem:[#allocation2 + $0x8] sm:$0xff] %vm852, %v807
        %855 = vst.msk [vmem:[#allocation2 + $0x10] sm:$0xff] %vm852, %v809
        %856 = vst.msk [vmem:[#allocation2 + $0x18] sm:$0xff] %vm852, %v811
        %857 = vst.msk [vmem:[#allocation2 + $0x20] sm:$0xff] %vm852, %v813
        %858 = vst.msk [vmem:[#allocation2 + $0x28] sm:$0xff] %vm852, %v815
        %859 = vst.msk [vmem:[#allocation2 + $0x30] sm:$0xff] %vm852, %v817
        %860 = vst.msk [vmem:[#allocation2 + $0x38] sm:$0xff] %vm852, %v819
        %861 = vst.msk [vmem:[#allocation2 + $0x40] sm:$0xff] %vm852, %v821
        %862 = vst.msk [vmem:[#allocation2 + $0x48] sm:$0xff] %vm852, %v823
        %863 = vst.msk [vmem:[#allocation2 + $0x50] sm:$0xff] %vm852, %v825
        %864 = vst.msk [vmem:[#allocation2 + $0x58] sm:$0xff] %vm852, %v827
        %865 = vst.msk [vmem:[#allocation2 + $0x60] sm:$0xff] %vm852, %v829
        %866 = vst.msk [vmem:[#allocation2 + $0x68] sm:$0xff] %vm852, %v831
        %867 = vst.msk [vmem:[#allocation2 + $0x70] sm:$0xff] %vm852, %v833
        %868 = vst.msk [vmem:[#allocation2 + $0x78] sm:$0xff] %vm852, %v835
        %v869 = vld [vmem:[%s250] sm:$0xff]
        %v870 = vld [vmem:[%s250 + $0x8] sm:$0xff]
        %v871 = vld [vmem:[%s250 + $0x10] sm:$0xff]
        %v872 = vld [vmem:[%s250 + $0x18] sm:$0xff]
        %v873 = vld [vmem:[%s250 + $0x20] sm:$0xff]
        %v874 = vld [vmem:[%s250 + $0x28] sm:$0xff]
        %v875 = vld [vmem:[%s250 + $0x30] sm:$0xff]
        %v876 = vld [vmem:[%s250 + $0x38] sm:$0xff]
        %v877 = vld [vmem:[%s250 + $0x40] sm:$0xff]
        %v878 = vld [vmem:[%s250 + $0x48] sm:$0xff]
        %v879 = vld [vmem:[%s250 + $0x50] sm:$0xff]
        %v880 = vld [vmem:[%s250 + $0x58] sm:$0xff]
        %v881 = vld [vmem:[%s250 + $0x60] sm:$0xff]
        %v882 = vld [vmem:[%s250 + $0x68] sm:$0xff]
        %v883 = vld [vmem:[%s250 + $0x70] sm:$0xff]
        %v884 = vld [vmem:[%s250 + $0x78] sm:$0xff]
        %885 = vset.pattern.permute.xlu0 2
        %886 = vperm.xlu0 %885, %v869
        %v887 = vpop.permute.xlu0 %886
        %888 = vset.pattern.permute.xlu0 2
        %889 = vperm.xlu0 %888, %v870
        %v890 = vpop.permute.xlu0 %889
        %891 = vset.pattern.permute.xlu0 2
        %892 = vperm.xlu0 %891, %v871
        %v893 = vpop.permute.xlu0 %892
        %894 = vset.pattern.permute.xlu0 2
        %895 = vperm.xlu0 %894, %v872
        %v896 = vpop.permute.xlu0 %895
        %897 = vset.pattern.permute.xlu0 2
        %898 = vperm.xlu0 %897, %v873
        %v899 = vpop.permute.xlu0 %898
        %900 = vset.pattern.permute.xlu0 2
        %901 = vperm.xlu0 %900, %v874
        %v902 = vpop.permute.xlu0 %901
        %903 = vset.pattern.permute.xlu0 2
        %904 = vperm.xlu0 %903, %v875
        %v905 = vpop.permute.xlu0 %904
        %906 = vset.pattern.permute.xlu0 2
        %907 = vperm.xlu0 %906, %v876
        %v908 = vpop.permute.xlu0 %907
        %909 = vset.pattern.permute.xlu0 2
        %910 = vperm.xlu0 %909, %v877
        %v911 = vpop.permute.xlu0 %910
        %912 = vset.pattern.permute.xlu0 2
        %913 = vperm.xlu0 %912, %v878
        %v914 = vpop.permute.xlu0 %913
        %915 = vset.pattern.permute.xlu0 2
        %916 = vperm.xlu0 %915, %v879
        %v917 = vpop.permute.xlu0 %916
        %918 = vset.pattern.permute.xlu0 2
        %919 = vperm.xlu0 %918, %v880
        %v920 = vpop.permute.xlu0 %919
        %921 = vset.pattern.permute.xlu0 2
        %922 = vperm.xlu0 %921, %v881
        %v923 = vpop.permute.xlu0 %922
        %924 = vset.pattern.permute.xlu0 2
        %925 = vperm.xlu0 %924, %v882
        %v926 = vpop.permute.xlu0 %925
        %927 = vset.pattern.permute.xlu0 2
        %928 = vperm.xlu0 %927, %v883
        %v929 = vpop.permute.xlu0 %928
        %930 = vset.pattern.permute.xlu0 2
        %931 = vperm.xlu0 %930, %v884
        %v932 = vpop.permute.xlu0 %931
        %vm933 = vcmp.eq.s32.totalorder %v263, %v887
        %vm934 = vcmp.eq.s32.totalorder %v263, %v890
        %vm935 = vcmp.eq.s32.totalorder %v263, %v893
        %vm936 = vcmp.eq.s32.totalorder %v263, %v896
        %vm937 = vcmp.eq.s32.totalorder %v263, %v899
        %vm938 = vcmp.eq.s32.totalorder %v263, %v902
        %vm939 = vcmp.eq.s32.totalorder %v263, %v905
        %vm940 = vcmp.eq.s32.totalorder %v263, %v908
        %vm941 = vcmp.eq.s32.totalorder %v263, %v911
        %vm942 = vcmp.eq.s32.totalorder %v263, %v914
        %vm943 = vcmp.eq.s32.totalorder %v263, %v917
        %vm944 = vcmp.eq.s32.totalorder %v263, %v920
        %vm945 = vcmp.eq.s32.totalorder %v263, %v923
        %vm946 = vcmp.eq.s32.totalorder %v263, %v926
        %vm947 = vcmp.eq.s32.totalorder %v263, %v929
        %vm948 = vcmp.eq.s32.totalorder %v263, %v932
        %v949 = vsel %vm933, 1, 0
        %v950 = vsel %vm934, 1, 0
        %v951 = vsel %vm935, 1, 0
        %v952 = vsel %vm936, 1, 0
        %v953 = vsel %vm937, 1, 0
        %v954 = vsel %vm938, 1, 0
        %v955 = vsel %vm939, 1, 0
        %v956 = vsel %vm940, 1, 0
        %v957 = vsel %vm941, 1, 0
        %v958 = vsel %vm942, 1, 0
        %v959 = vsel %vm943, 1, 0
        %v960 = vsel %vm944, 1, 0
        %v961 = vsel %vm945, 1, 0
        %v962 = vsel %vm946, 1, 0
        %v963 = vsel %vm947, 1, 0
        %v964 = vsel %vm948, 1, 0
        %v965 = vcvt.s32.f32 %v949
        %v966 = vcvt.s32.f32 %v950
        %v967 = vcvt.s32.f32 %v951
        %v968 = vcvt.s32.f32 %v952
        %v969 = vcvt.s32.f32 %v953
        %v970 = vcvt.s32.f32 %v954
        %v971 = vcvt.s32.f32 %v955
        %v972 = vcvt.s32.f32 %v956
        %v973 = vcvt.s32.f32 %v957
        %v974 = vcvt.s32.f32 %v958
        %v975 = vcvt.s32.f32 %v959
        %v976 = vcvt.s32.f32 %v960
        %v977 = vcvt.s32.f32 %v961
        %v978 = vcvt.s32.f32 %v962
        %v979 = vcvt.s32.f32 %v963
        %v980 = vcvt.s32.f32 %v964
        %v981 = vpack.c.bf16 %v966, %v965
        %v982 = vpack.c.bf16 %v968, %v967
        %v983 = vpack.c.bf16 %v970, %v969
        %v984 = vpack.c.bf16 %v972, %v971
        %v985 = vpack.c.bf16 %v974, %v973
        %v986 = vpack.c.bf16 %v976, %v975
        %v987 = vpack.c.bf16 %v978, %v977
        %v988 = vpack.c.bf16 %v980, %v979
        %v990 = vsel %vm408, %v981, 0
        %v993 = vsel %vm408, %v982, 0
        %v996 = vsel %vm408, %v983, 0
        %v999 = vsel %vm408, %v984, 0
        %v1002 = vsel %vm408, %v985, 0
        %v1005 = vsel %vm408, %v986, 0
        %v1008 = vsel %vm408, %v987, 0
        %v1011 = vsel %vm408, %v988, 0
        %1013 = vmatprep.subr.bf16.mxu0 0
        %1014 = vmatpush1.bf16.msra.mxu0 %v400
        %1015 = vmatprep.subr.bf16.mxu0 0
        %1016 = vmatpush1.bf16.msra.mxu0 %v401
        %1017 = vmatprep.subr.bf16.mxu0 0
        %1018 = vmatpush1.bf16.msra.mxu0 %v402
        %1019 = vmatprep.subr.bf16.mxu0 0
        %1020 = vmatpush1.bf16.msra.mxu0 %v403
        %1021 = vmatprep.subr.bf16.mxu0 0
        %1022 = vmatpush1.bf16.msra.mxu0 0
        %1023 = vmatprep.subr.bf16.mxu0 0
        %1024 = vmatpush1.bf16.msra.mxu0 0
        %1025 = vmatprep.subr.bf16.mxu0 0
        %1026 = vmatpush1.bf16.msra.mxu0 0
        %1027 = vmatprep.subr.bf16.mxu0 0
        %1028 = vmatpush1.bf16.msra.mxu0 0
        %1029 = vmatprep.subr.bf16.mxu0 0
        %1030 = vmatpush1.bf16.msra.mxu0 0
        %1031 = vmatprep.subr.bf16.mxu0 0
        %1032 = vmatpush1.bf16.msra.mxu0 0
        %1033 = vmatprep.subr.bf16.mxu0 0
        %1034 = vmatpush1.bf16.msra.mxu0 0
        %1035 = vmatprep.subr.bf16.mxu0 0
        %1036 = vmatpush1.bf16.msra.mxu0 0
        %1037 = vmatprep.subr.bf16.mxu0 0
        %1038 = vmatpush1.bf16.msra.mxu0 0
        %1039 = vmatprep.subr.bf16.mxu0 0
        %1040 = vmatpush1.bf16.msra.mxu0 0
        %1041 = vmatprep.subr.bf16.mxu0 0
        %1042 = vmatpush1.bf16.msra.mxu0 0
        %1043 = vmatprep.subr.bf16.mxu0 0
        %1044 = vmatpush1.bf16.msra.mxu0 0
        %1045 = vmatprep.mubr.bf16.mxu0 0
        %1046 = vmatmul.mubr.bf16.gmra.mrb[0].mxu0 %v990
        %v1047 = vpop.f32.mrb[0].mxu0
        %v1048 = vadd.f32 0.0, %v1047
        %v1049 = vpop.f32.mrb[0].mxu0
        %v1050 = vpop.f32.mrb[0].mxu0
        %v1051 = vadd.f32 0.0, %v1050
        %v1052 = vpop.f32.mrb[0].mxu0
        %1053 = vmatprep.mubr.bf16.mxu0 0
        %1054 = vmatmul.mubr.bf16.gmra.mrb[0].mxu0 %v993
        %v1055 = vpop.f32.mrb[0].mxu0
        %v1056 = vadd.f32 0.0, %v1055
        %v1057 = vpop.f32.mrb[0].mxu0
        %v1058 = vpop.f32.mrb[0].mxu0
        %v1059 = vadd.f32 0.0, %v1058
        %v1060 = vpop.f32.mrb[0].mxu0
        %1061 = vmatprep.mubr.bf16.mxu0 0
        %1062 = vmatmul.mubr.bf16.gmra.mrb[0].mxu0 %v996
        %v1063 = vpop.f32.mrb[0].mxu0
        %v1064 = vadd.f32 0.0, %v1063
        %v1065 = vpop.f32.mrb[0].mxu0
        %v1066 = vpop.f32.mrb[0].mxu0
        %v1067 = vadd.f32 0.0, %v1066
        %v1068 = vpop.f32.mrb[0].mxu0
        %1069 = vmatprep.mubr.bf16.mxu0 0
        %1070 = vmatmul.mubr.bf16.gmra.mrb[0].mxu0 %v999
        %v1071 = vpop.f32.mrb[0].mxu0
        %v1072 = vadd.f32 0.0, %v1071
        %v1073 = vpop.f32.mrb[0].mxu0
        %v1074 = vpop.f32.mrb[0].mxu0
        %v1075 = vadd.f32 0.0, %v1074
        %v1076 = vpop.f32.mrb[0].mxu0
        %1077 = vmatprep.mubr.bf16.mxu0 0
        %1078 = vmatmul.mubr.bf16.gmra.mrb[0].mxu0 %v1002
        %v1079 = vpop.f32.mrb[0].mxu0
        %v1080 = vadd.f32 0.0, %v1079
        %v1081 = vpop.f32.mrb[0].mxu0
        %v1082 = vpop.f32.mrb[0].mxu0
        %v1083 = vadd.f32 0.0, %v1082
        %v1084 = vpop.f32.mrb[0].mxu0
        %1085 = vmatprep.mubr.bf16.mxu0 0
        %1086 = vmatmul.mubr.bf16.gmra.mrb[0].mxu0 %v1005
        %v1087 = vpop.f32.mrb[0].mxu0
        %v1088 = vadd.f32 0.0, %v1087
        %v1089 = vpop.f32.mrb[0].mxu0
        %v1090 = vpop.f32.mrb[0].mxu0
        %v1091 = vadd.f32 0.0, %v1090
        %v1092 = vpop.f32.mrb[0].mxu0
        %1093 = vmatprep.mubr.bf16.mxu0 0
        %1094 = vmatmul.mubr.bf16.gmra.mrb[0].mxu0 %v1008
        %v1095 = vpop.f32.mrb[0].mxu0
        %v1096 = vadd.f32 0.0, %v1095
        %v1097 = vpop.f32.mrb[0].mxu0
        %v1098 = vpop.f32.mrb[0].mxu0
        %v1099 = vadd.f32 0.0, %v1098
        %v1100 = vpop.f32.mrb[0].mxu0
        %1101 = vmatprep.mubr.bf16.mxu0 0
        %1102 = vmatmul.mubr.bf16.gmra.mrb[0].mxu0 %v1011
        %v1103 = vpop.f32.mrb[0].mxu0
        %v1104 = vadd.f32 0.0, %v1103
        %v1105 = vpop.f32.mrb[0].mxu0
        %v1106 = vpop.f32.mrb[0].mxu0
        %v1107 = vadd.f32 0.0, %v1106
        %v1108 = vpop.f32.mrb[0].mxu0
        %1109 = vdwg.mxu0
        %1126 = vrot.lane.b32.xlu0 %v1048, 32
        %v1127 = vpop.permute.xlu0 %1126
        %1128 = vrot.lane.b32.xlu0 %v1051, 32
        %v1129 = vpop.permute.xlu0 %1128
        %1130 = vrot.lane.b32.xlu0 %v1056, 32
        %v1131 = vpop.permute.xlu0 %1130
        %1132 = vrot.lane.b32.xlu0 %v1059, 32
        %v1133 = vpop.permute.xlu0 %1132
        %1134 = vrot.lane.b32.xlu0 %v1064, 32
        %v1135 = vpop.permute.xlu0 %1134
        %1136 = vrot.lane.b32.xlu0 %v1067, 32
        %v1137 = vpop.permute.xlu0 %1136
        %1138 = vrot.lane.b32.xlu0 %v1072, 32
        %v1139 = vpop.permute.xlu0 %1138
        %1140 = vrot.lane.b32.xlu0 %v1075, 32
        %v1141 = vpop.permute.xlu0 %1140
        %1142 = vrot.lane.b32.xlu0 %v1080, 32
        %v1143 = vpop.permute.xlu0 %1142
        %1144 = vrot.lane.b32.xlu0 %v1083, 32
        %v1145 = vpop.permute.xlu0 %1144
        %1146 = vrot.lane.b32.xlu0 %v1088, 32
        %v1147 = vpop.permute.xlu0 %1146
        %1148 = vrot.lane.b32.xlu0 %v1091, 32
        %v1149 = vpop.permute.xlu0 %1148
        %1150 = vrot.lane.b32.xlu0 %v1096, 32
        %v1151 = vpop.permute.xlu0 %1150
        %1152 = vrot.lane.b32.xlu0 %v1099, 32
        %v1153 = vpop.permute.xlu0 %1152
        %1154 = vrot.lane.b32.xlu0 %v1104, 32
        %v1155 = vpop.permute.xlu0 %1154
        %1156 = vrot.lane.b32.xlu0 %v1107, 32
        %v1157 = vpop.permute.xlu0 %1156
        %vm1174 = vcmask 392448
        %1175 = vst.msk [vmem:[#allocation2] sm:$0xff] %vm1174, %v1127
        %1176 = vst.msk [vmem:[#allocation2 + $0x8] sm:$0xff] %vm1174, %v1129
        %1177 = vst.msk [vmem:[#allocation2 + $0x10] sm:$0xff] %vm1174, %v1131
        %1178 = vst.msk [vmem:[#allocation2 + $0x18] sm:$0xff] %vm1174, %v1133
        %1179 = vst.msk [vmem:[#allocation2 + $0x20] sm:$0xff] %vm1174, %v1135
        %1180 = vst.msk [vmem:[#allocation2 + $0x28] sm:$0xff] %vm1174, %v1137
        %1181 = vst.msk [vmem:[#allocation2 + $0x30] sm:$0xff] %vm1174, %v1139
        %1182 = vst.msk [vmem:[#allocation2 + $0x38] sm:$0xff] %vm1174, %v1141
        %1183 = vst.msk [vmem:[#allocation2 + $0x40] sm:$0xff] %vm1174, %v1143
        %1184 = vst.msk [vmem:[#allocation2 + $0x48] sm:$0xff] %vm1174, %v1145
        %1185 = vst.msk [vmem:[#allocation2 + $0x50] sm:$0xff] %vm1174, %v1147
        %1186 = vst.msk [vmem:[#allocation2 + $0x58] sm:$0xff] %vm1174, %v1149
        %1187 = vst.msk [vmem:[#allocation2 + $0x60] sm:$0xff] %vm1174, %v1151
        %1188 = vst.msk [vmem:[#allocation2 + $0x68] sm:$0xff] %vm1174, %v1153
        %1189 = vst.msk [vmem:[#allocation2 + $0x70] sm:$0xff] %vm1174, %v1155
        %1190 = vst.msk [vmem:[#allocation2 + $0x78] sm:$0xff] %vm1174, %v1157
        %v1191 = vld [vmem:[%s250] sm:$0xff]
        %v1192 = vld [vmem:[%s250 + $0x8] sm:$0xff]
        %v1193 = vld [vmem:[%s250 + $0x10] sm:$0xff]
        %v1194 = vld [vmem:[%s250 + $0x18] sm:$0xff]
        %v1195 = vld [vmem:[%s250 + $0x20] sm:$0xff]
        %v1196 = vld [vmem:[%s250 + $0x28] sm:$0xff]
        %v1197 = vld [vmem:[%s250 + $0x30] sm:$0xff]
        %v1198 = vld [vmem:[%s250 + $0x38] sm:$0xff]
        %v1199 = vld [vmem:[%s250 + $0x40] sm:$0xff]
        %v1200 = vld [vmem:[%s250 + $0x48] sm:$0xff]
        %v1201 = vld [vmem:[%s250 + $0x50] sm:$0xff]
        %v1202 = vld [vmem:[%s250 + $0x58] sm:$0xff]
        %v1203 = vld [vmem:[%s250 + $0x60] sm:$0xff]
        %v1204 = vld [vmem:[%s250 + $0x68] sm:$0xff]
        %v1205 = vld [vmem:[%s250 + $0x70] sm:$0xff]
        %v1206 = vld [vmem:[%s250 + $0x78] sm:$0xff]
        %1207 = vset.pattern.permute.xlu0 3
        %1208 = vperm.xlu0 %1207, %v1191
        %v1209 = vpop.permute.xlu0 %1208
        %1210 = vset.pattern.permute.xlu0 3
        %1211 = vperm.xlu0 %1210, %v1192
        %v1212 = vpop.permute.xlu0 %1211
        %1213 = vset.pattern.permute.xlu0 3
        %1214 = vperm.xlu0 %1213, %v1193
        %v1215 = vpop.permute.xlu0 %1214
        %1216 = vset.pattern.permute.xlu0 3
        %1217 = vperm.xlu0 %1216, %v1194
        %v1218 = vpop.permute.xlu0 %1217
        %1219 = vset.pattern.permute.xlu0 3
        %1220 = vperm.xlu0 %1219, %v1195
        %v1221 = vpop.permute.xlu0 %1220
        %1222 = vset.pattern.permute.xlu0 3
        %1223 = vperm.xlu0 %1222, %v1196
        %v1224 = vpop.permute.xlu0 %1223
        %1225 = vset.pattern.permute.xlu0 3
        %1226 = vperm.xlu0 %1225, %v1197
        %v1227 = vpop.permute.xlu0 %1226
        %1228 = vset.pattern.permute.xlu0 3
        %1229 = vperm.xlu0 %1228, %v1198
        %v1230 = vpop.permute.xlu0 %1229
        %1231 = vset.pattern.permute.xlu0 3
        %1232 = vperm.xlu0 %1231, %v1199
        %v1233 = vpop.permute.xlu0 %1232
        %1234 = vset.pattern.permute.xlu0 3
        %1235 = vperm.xlu0 %1234, %v1200
        %v1236 = vpop.permute.xlu0 %1235
        %1237 = vset.pattern.permute.xlu0 3
        %1238 = vperm.xlu0 %1237, %v1201
        %v1239 = vpop.permute.xlu0 %1238
        %1240 = vset.pattern.permute.xlu0 3
        %1241 = vperm.xlu0 %1240, %v1202
        %v1242 = vpop.permute.xlu0 %1241
        %1243 = vset.pattern.permute.xlu0 3
        %1244 = vperm.xlu0 %1243, %v1203
        %v1245 = vpop.permute.xlu0 %1244
        %1246 = vset.pattern.permute.xlu0 3
        %1247 = vperm.xlu0 %1246, %v1204
        %v1248 = vpop.permute.xlu0 %1247
        %1249 = vset.pattern.permute.xlu0 3
        %1250 = vperm.xlu0 %1249, %v1205
        %v1251 = vpop.permute.xlu0 %1250
        %1252 = vset.pattern.permute.xlu0 3
        %1253 = vperm.xlu0 %1252, %v1206
        %v1254 = vpop.permute.xlu0 %1253
        %vm1255 = vcmp.eq.s32.totalorder %v263, %v1209
        %vm1256 = vcmp.eq.s32.totalorder %v263, %v1212
        %vm1257 = vcmp.eq.s32.totalorder %v263, %v1215
        %vm1258 = vcmp.eq.s32.totalorder %v263, %v1218
        %vm1259 = vcmp.eq.s32.totalorder %v263, %v1221
        %vm1260 = vcmp.eq.s32.totalorder %v263, %v1224
        %vm1261 = vcmp.eq.s32.totalorder %v263, %v1227
        %vm1262 = vcmp.eq.s32.totalorder %v263, %v1230
        %vm1263 = vcmp.eq.s32.totalorder %v263, %v1233
        %vm1264 = vcmp.eq.s32.totalorder %v263, %v1236
        %vm1265 = vcmp.eq.s32.totalorder %v263, %v1239
        %vm1266 = vcmp.eq.s32.totalorder %v263, %v1242
        %vm1267 = vcmp.eq.s32.totalorder %v263, %v1245
        %vm1268 = vcmp.eq.s32.totalorder %v263, %v1248
        %vm1269 = vcmp.eq.s32.totalorder %v263, %v1251
        %vm1270 = vcmp.eq.s32.totalorder %v263, %v1254
        %v1271 = vsel %vm1255, 1, 0
        %v1272 = vsel %vm1256, 1, 0
        %v1273 = vsel %vm1257, 1, 0
        %v1274 = vsel %vm1258, 1, 0
        %v1275 = vsel %vm1259, 1, 0
        %v1276 = vsel %vm1260, 1, 0
        %v1277 = vsel %vm1261, 1, 0
        %v1278 = vsel %vm1262, 1, 0
        %v1279 = vsel %vm1263, 1, 0
        %v1280 = vsel %vm1264, 1, 0
        %v1281 = vsel %vm1265, 1, 0
        %v1282 = vsel %vm1266, 1, 0
        %v1283 = vsel %vm1267, 1, 0
        %v1284 = vsel %vm1268, 1, 0
        %v1285 = vsel %vm1269, 1, 0
        %v1286 = vsel %vm1270, 1, 0
        %v1287 = vcvt.s32.f32 %v1271
        %v1288 = vcvt.s32.f32 %v1272
        %v1289 = vcvt.s32.f32 %v1273
        %v1290 = vcvt.s32.f32 %v1274
        %v1291 = vcvt.s32.f32 %v1275
        %v1292 = vcvt.s32.f32 %v1276
        %v1293 = vcvt.s32.f32 %v1277
        %v1294 = vcvt.s32.f32 %v1278
        %v1295 = vcvt.s32.f32 %v1279
        %v1296 = vcvt.s32.f32 %v1280
        %v1297 = vcvt.s32.f32 %v1281
        %v1298 = vcvt.s32.f32 %v1282
        %v1299 = vcvt.s32.f32 %v1283
        %v1300 = vcvt.s32.f32 %v1284
        %v1301 = vcvt.s32.f32 %v1285
        %v1302 = vcvt.s32.f32 %v1286
        %v1303 = vpack.c.bf16 %v1288, %v1287
        %v1304 = vpack.c.bf16 %v1290, %v1289
        %v1305 = vpack.c.bf16 %v1292, %v1291
        %v1306 = vpack.c.bf16 %v1294, %v1293
        %v1307 = vpack.c.bf16 %v1296, %v1295
        %v1308 = vpack.c.bf16 %v1298, %v1297
        %v1309 = vpack.c.bf16 %v1300, %v1299
        %v1310 = vpack.c.bf16 %v1302, %v1301
        %v1312 = vsel %vm408, %v1303, 0
        %v1315 = vsel %vm408, %v1304, 0
        %v1318 = vsel %vm408, %v1305, 0
        %v1321 = vsel %vm408, %v1306, 0
        %v1324 = vsel %vm408, %v1307, 0
        %v1327 = vsel %vm408, %v1308, 0
        %v1330 = vsel %vm408, %v1309, 0
        %v1333 = vsel %vm408, %v1310, 0
        %1335 = vmatprep.subr.bf16.mxu0 0
        %1336 = vmatpush1.bf16.msra.mxu0 %v400
        %1337 = vmatprep.subr.bf16.mxu0 0
        %1338 = vmatpush1.bf16.msra.mxu0 %v401
        %1339 = vmatprep.subr.bf16.mxu0 0
        %1340 = vmatpush1.bf16.msra.mxu0 %v402
        %1341 = vmatprep.subr.bf16.mxu0 0
        %1342 = vmatpush1.bf16.msra.mxu0 %v403
        %1343 = vmatprep.subr.bf16.mxu0 0
        %1344 = vmatpush1.bf16.msra.mxu0 0
        %1345 = vmatprep.subr.bf16.mxu0 0
        %1346 = vmatpush1.bf16.msra.mxu0 0
        %1347 = vmatprep.subr.bf16.mxu0 0
        %1348 = vmatpush1.bf16.msra.mxu0 0
        %1349 = vmatprep.subr.bf16.mxu0 0
        %1350 = vmatpush1.bf16.msra.mxu0 0
        %1351 = vmatprep.subr.bf16.mxu0 0
        %1352 = vmatpush1.bf16.msra.mxu0 0
        %1353 = vmatprep.subr.bf16.mxu0 0
        %1354 = vmatpush1.bf16.msra.mxu0 0
        %1355 = vmatprep.subr.bf16.mxu0 0
        %1356 = vmatpush1.bf16.msra.mxu0 0
        %1357 = vmatprep.subr.bf16.mxu0 0
        %1358 = vmatpush1.bf16.msra.mxu0 0
        %1359 = vmatprep.subr.bf16.mxu0 0
        %1360 = vmatpush1.bf16.msra.mxu0 0
        %1361 = vmatprep.subr.bf16.mxu0 0
        %1362 = vmatpush1.bf16.msra.mxu0 0
        %1363 = vmatprep.subr.bf16.mxu0 0
        %1364 = vmatpush1.bf16.msra.mxu0 0
        %1365 = vmatprep.subr.bf16.mxu0 0
        %1366 = vmatpush1.bf16.msra.mxu0 0
        %1367 = vmatprep.mubr.bf16.mxu0 0
        %1368 = vmatmul.mubr.bf16.gmra.mrb[0].mxu0 %v1312
        %v1369 = vpop.f32.mrb[0].mxu0
        %v1370 = vadd.f32 0.0, %v1369
        %v1371 = vpop.f32.mrb[0].mxu0
        %v1372 = vpop.f32.mrb[0].mxu0
        %v1373 = vadd.f32 0.0, %v1372
        %v1374 = vpop.f32.mrb[0].mxu0
        %1375 = vmatprep.mubr.bf16.mxu0 0
        %1376 = vmatmul.mubr.bf16.gmra.mrb[0].mxu0 %v1315
        %v1377 = vpop.f32.mrb[0].mxu0
        %v1378 = vadd.f32 0.0, %v1377
        %v1379 = vpop.f32.mrb[0].mxu0
        %v1380 = vpop.f32.mrb[0].mxu0
        %v1381 = vadd.f32 0.0, %v1380
        %v1382 = vpop.f32.mrb[0].mxu0
        %1383 = vmatprep.mubr.bf16.mxu0 0
        %1384 = vmatmul.mubr.bf16.gmra.mrb[0].mxu0 %v1318
        %v1385 = vpop.f32.mrb[0].mxu0
        %v1386 = vadd.f32 0.0, %v1385
        %v1387 = vpop.f32.mrb[0].mxu0
        %v1388 = vpop.f32.mrb[0].mxu0
        %v1389 = vadd.f32 0.0, %v1388
        %v1390 = vpop.f32.mrb[0].mxu0
        %1391 = vmatprep.mubr.bf16.mxu0 0
        %1392 = vmatmul.mubr.bf16.gmra.mrb[0].mxu0 %v1321
        %v1393 = vpop.f32.mrb[0].mxu0
        %v1394 = vadd.f32 0.0, %v1393
        %v1395 = vpop.f32.mrb[0].mxu0
        %v1396 = vpop.f32.mrb[0].mxu0
        %v1397 = vadd.f32 0.0, %v1396
        %v1398 = vpop.f32.mrb[0].mxu0
        %1399 = vmatprep.mubr.bf16.mxu0 0
        %1400 = vmatmul.mubr.bf16.gmra.mrb[0].mxu0 %v1324
        %v1401 = vpop.f32.mrb[0].mxu0
        %v1402 = vadd.f32 0.0, %v1401
        %v1403 = vpop.f32.mrb[0].mxu0
        %v1404 = vpop.f32.mrb[0].mxu0
        %v1405 = vadd.f32 0.0, %v1404
        %v1406 = vpop.f32.mrb[0].mxu0
        %1407 = vmatprep.mubr.bf16.mxu0 0
        %1408 = vmatmul.mubr.bf16.gmra.mrb[0].mxu0 %v1327
        %v1409 = vpop.f32.mrb[0].mxu0
        %v1410 = vadd.f32 0.0, %v1409
        %v1411 = vpop.f32.mrb[0].mxu0
        %v1412 = vpop.f32.mrb[0].mxu0
        %v1413 = vadd.f32 0.0, %v1412
        %v1414 = vpop.f32.mrb[0].mxu0
        %1415 = vmatprep.mubr.bf16.mxu0 0
        %1416 = vmatmul.mubr.bf16.gmra.mrb[0].mxu0 %v1330
        %v1417 = vpop.f32.mrb[0].mxu0
        %v1418 = vadd.f32 0.0, %v1417
        %v1419 = vpop.f32.mrb[0].mxu0
        %v1420 = vpop.f32.mrb[0].mxu0
        %v1421 = vadd.f32 0.0, %v1420
        %v1422 = vpop.f32.mrb[0].mxu0
        %1423 = vmatprep.mubr.bf16.mxu0 0
        %1424 = vmatmul.mubr.bf16.gmra.mrb[0].mxu0 %v1333
        %v1425 = vpop.f32.mrb[0].mxu0
        %v1426 = vadd.f32 0.0, %v1425
        %v1427 = vpop.f32.mrb[0].mxu0
        %v1428 = vpop.f32.mrb[0].mxu0
        %v1429 = vadd.f32 0.0, %v1428
        %v1430 = vpop.f32.mrb[0].mxu0
        %1431 = vdwg.mxu0
        %1448 = vrot.lane.b32.xlu0 %v1370, 48
        %v1449 = vpop.permute.xlu0 %1448
        %1450 = vrot.lane.b32.xlu0 %v1373, 48
        %v1451 = vpop.permute.xlu0 %1450
        %1452 = vrot.lane.b32.xlu0 %v1378, 48
        %v1453 = vpop.permute.xlu0 %1452
        %1454 = vrot.lane.b32.xlu0 %v1381, 48
        %v1455 = vpop.permute.xlu0 %1454
        %1456 = vrot.lane.b32.xlu0 %v1386, 48
        %v1457 = vpop.permute.xlu0 %1456
        %1458 = vrot.lane.b32.xlu0 %v1389, 48
        %v1459 = vpop.permute.xlu0 %1458
        %1460 = vrot.lane.b32.xlu0 %v1394, 48
        %v1461 = vpop.permute.xlu0 %1460
        %1462 = vrot.lane.b32.xlu0 %v1397, 48
        %v1463 = vpop.permute.xlu0 %1462
        %1464 = vrot.lane.b32.xlu0 %v1402, 48
        %v1465 = vpop.permute.xlu0 %1464
        %1466 = vrot.lane.b32.xlu0 %v1405, 48
        %v1467 = vpop.permute.xlu0 %1466
        %1468 = vrot.lane.b32.xlu0 %v1410, 48
        %v1469 = vpop.permute.xlu0 %1468
        %1470 = vrot.lane.b32.xlu0 %v1413, 48
        %v1471 = vpop.permute.xlu0 %1470
        %1472 = vrot.lane.b32.xlu0 %v1418, 48
        %v1473 = vpop.permute.xlu0 %1472
        %1474 = vrot.lane.b32.xlu0 %v1421, 48
        %v1475 = vpop.permute.xlu0 %1474
        %1476 = vrot.lane.b32.xlu0 %v1426, 48
        %v1477 = vpop.permute.xlu0 %1476
        %1478 = vrot.lane.b32.xlu0 %v1429, 48
        %v1479 = vpop.permute.xlu0 %1478
        %vm1496 = vcmask 523648
        %1497 = vst.msk [vmem:[#allocation2] sm:$0xff] %vm1496, %v1449
        %1498 = vst.msk [vmem:[#allocation2 + $0x8] sm:$0xff] %vm1496, %v1451
        %1499 = vst.msk [vmem:[#allocation2 + $0x10] sm:$0xff] %vm1496, %v1453
        %1500 = vst.msk [vmem:[#allocation2 + $0x18] sm:$0xff] %vm1496, %v1455
        %1501 = vst.msk [vmem:[#allocation2 + $0x20] sm:$0xff] %vm1496, %v1457
        %1502 = vst.msk [vmem:[#allocation2 + $0x28] sm:$0xff] %vm1496, %v1459
        %1503 = vst.msk [vmem:[#allocation2 + $0x30] sm:$0xff] %vm1496, %v1461
        %1504 = vst.msk [vmem:[#allocation2 + $0x38] sm:$0xff] %vm1496, %v1463
        %1505 = vst.msk [vmem:[#allocation2 + $0x40] sm:$0xff] %vm1496, %v1465
        %1506 = vst.msk [vmem:[#allocation2 + $0x48] sm:$0xff] %vm1496, %v1467
        %1507 = vst.msk [vmem:[#allocation2 + $0x50] sm:$0xff] %vm1496, %v1469
        %1508 = vst.msk [vmem:[#allocation2 + $0x58] sm:$0xff] %vm1496, %v1471
        %1509 = vst.msk [vmem:[#allocation2 + $0x60] sm:$0xff] %vm1496, %v1473
        %1510 = vst.msk [vmem:[#allocation2 + $0x68] sm:$0xff] %vm1496, %v1475
        %1511 = vst.msk [vmem:[#allocation2 + $0x70] sm:$0xff] %vm1496, %v1477
        %1512 = vst.msk [vmem:[#allocation2 + $0x78] sm:$0xff] %vm1496, %v1479
        %v1513 = vld [vmem:[%s250] sm:$0xff]
        %v1514 = vld [vmem:[%s250 + $0x8] sm:$0xff]
        %v1515 = vld [vmem:[%s250 + $0x10] sm:$0xff]
        %v1516 = vld [vmem:[%s250 + $0x18] sm:$0xff]
        %v1517 = vld [vmem:[%s250 + $0x20] sm:$0xff]
        %v1518 = vld [vmem:[%s250 + $0x28] sm:$0xff]
        %v1519 = vld [vmem:[%s250 + $0x30] sm:$0xff]
        %v1520 = vld [vmem:[%s250 + $0x38] sm:$0xff]
        %v1521 = vld [vmem:[%s250 + $0x40] sm:$0xff]
        %v1522 = vld [vmem:[%s250 + $0x48] sm:$0xff]
        %v1523 = vld [vmem:[%s250 + $0x50] sm:$0xff]
        %v1524 = vld [vmem:[%s250 + $0x58] sm:$0xff]
        %v1525 = vld [vmem:[%s250 + $0x60] sm:$0xff]
        %v1526 = vld [vmem:[%s250 + $0x68] sm:$0xff]
        %v1527 = vld [vmem:[%s250 + $0x70] sm:$0xff]
        %v1528 = vld [vmem:[%s250 + $0x78] sm:$0xff]
        %1529 = vset.pattern.permute.xlu0 4
        %1530 = vperm.xlu0 %1529, %v1513
        %v1531 = vpop.permute.xlu0 %1530
        %1532 = vset.pattern.permute.xlu0 4
        %1533 = vperm.xlu0 %1532, %v1514
        %v1534 = vpop.permute.xlu0 %1533
        %1535 = vset.pattern.permute.xlu0 4
        %1536 = vperm.xlu0 %1535, %v1515
        %v1537 = vpop.permute.xlu0 %1536
        %1538 = vset.pattern.permute.xlu0 4
        %1539 = vperm.xlu0 %1538, %v1516
        %v1540 = vpop.permute.xlu0 %1539
        %1541 = vset.pattern.permute.xlu0 4
        %1542 = vperm.xlu0 %1541, %v1517
        %v1543 = vpop.permute.xlu0 %1542
        %1544 = vset.pattern.permute.xlu0 4
        %1545 = vperm.xlu0 %1544, %v1518
        %v1546 = vpop.permute.xlu0 %1545
        %1547 = vset.pattern.permute.xlu0 4
        %1548 = vperm.xlu0 %1547, %v1519
        %v1549 = vpop.permute.xlu0 %1548
        %1550 = vset.pattern.permute.xlu0 4
        %1551 = vperm.xlu0 %1550, %v1520
        %v1552 = vpop.permute.xlu0 %1551
        %1553 = vset.pattern.permute.xlu0 4
        %1554 = vperm.xlu0 %1553, %v1521
        %v1555 = vpop.permute.xlu0 %1554
        %1556 = vset.pattern.permute.xlu0 4
        %1557 = vperm.xlu0 %1556, %v1522
        %v1558 = vpop.permute.xlu0 %1557
        %1559 = vset.pattern.permute.xlu0 4
        %1560 = vperm.xlu0 %1559, %v1523
        %v1561 = vpop.permute.xlu0 %1560
        %1562 = vset.pattern.permute.xlu0 4
        %1563 = vperm.xlu0 %1562, %v1524
        %v1564 = vpop.permute.xlu0 %1563
        %1565 = vset.pattern.permute.xlu0 4
        %1566 = vperm.xlu0 %1565, %v1525
        %v1567 = vpop.permute.xlu0 %1566
        %1568 = vset.pattern.permute.xlu0 4
        %1569 = vperm.xlu0 %1568, %v1526
        %v1570 = vpop.permute.xlu0 %1569
        %1571 = vset.pattern.permute.xlu0 4
        %1572 = vperm.xlu0 %1571, %v1527
        %v1573 = vpop.permute.xlu0 %1572
        %1574 = vset.pattern.permute.xlu0 4
        %1575 = vperm.xlu0 %1574, %v1528
        %v1576 = vpop.permute.xlu0 %1575
        %vm1577 = vcmp.eq.s32.totalorder %v263, %v1531
        %vm1578 = vcmp.eq.s32.totalorder %v263, %v1534
        %vm1579 = vcmp.eq.s32.totalorder %v263, %v1537
        %vm1580 = vcmp.eq.s32.totalorder %v263, %v1540
        %vm1581 = vcmp.eq.s32.totalorder %v263, %v1543
        %vm1582 = vcmp.eq.s32.totalorder %v263, %v1546
        %vm1583 = vcmp.eq.s32.totalorder %v263, %v1549
        %vm1584 = vcmp.eq.s32.totalorder %v263, %v1552
        %vm1585 = vcmp.eq.s32.totalorder %v263, %v1555
        %vm1586 = vcmp.eq.s32.totalorder %v263, %v1558
        %vm1587 = vcmp.eq.s32.totalorder %v263, %v1561
        %vm1588 = vcmp.eq.s32.totalorder %v263, %v1564
        %vm1589 = vcmp.eq.s32.totalorder %v263, %v1567
        %vm1590 = vcmp.eq.s32.totalorder %v263, %v1570
        %vm1591 = vcmp.eq.s32.totalorder %v263, %v1573
        %vm1592 = vcmp.eq.s32.totalorder %v263, %v1576
        %v1593 = vsel %vm1577, 1, 0
        %v1594 = vsel %vm1578, 1, 0
        %v1595 = vsel %vm1579, 1, 0
        %v1596 = vsel %vm1580, 1, 0
        %v1597 = vsel %vm1581, 1, 0
        %v1598 = vsel %vm1582, 1, 0
        %v1599 = vsel %vm1583, 1, 0
        %v1600 = vsel %vm1584, 1, 0
        %v1601 = vsel %vm1585, 1, 0
        %v1602 = vsel %vm1586, 1, 0
        %v1603 = vsel %vm1587, 1, 0
        %v1604 = vsel %vm1588, 1, 0
        %v1605 = vsel %vm1589, 1, 0
        %v1606 = vsel %vm1590, 1, 0
        %v1607 = vsel %vm1591, 1, 0
        %v1608 = vsel %vm1592, 1, 0
        %v1609 = vcvt.s32.f32 %v1593
        %v1610 = vcvt.s32.f32 %v1594
        %v1611 = vcvt.s32.f32 %v1595
        %v1612 = vcvt.s32.f32 %v1596
        %v1613 = vcvt.s32.f32 %v1597
        %v1614 = vcvt.s32.f32 %v1598
        %v1615 = vcvt.s32.f32 %v1599
        %v1616 = vcvt.s32.f32 %v1600
        %v1617 = vcvt.s32.f32 %v1601
        %v1618 = vcvt.s32.f32 %v1602
        %v1619 = vcvt.s32.f32 %v1603
        %v1620 = vcvt.s32.f32 %v1604
        %v1621 = vcvt.s32.f32 %v1605
        %v1622 = vcvt.s32.f32 %v1606
        %v1623 = vcvt.s32.f32 %v1607
        %v1624 = vcvt.s32.f32 %v1608
        %v1625 = vpack.c.bf16 %v1610, %v1609
        %v1626 = vpack.c.bf16 %v1612, %v1611
        %v1627 = vpack.c.bf16 %v1614, %v1613
        %v1628 = vpack.c.bf16 %v1616, %v1615
        %v1629 = vpack.c.bf16 %v1618, %v1617
        %v1630 = vpack.c.bf16 %v1620, %v1619
        %v1631 = vpack.c.bf16 %v1622, %v1621
        %v1632 = vpack.c.bf16 %v1624, %v1623
        %v1634 = vsel %vm408, %v1625, 0
        %v1637 = vsel %vm408, %v1626, 0
        %v1640 = vsel %vm408, %v1627, 0
        %v1643 = vsel %vm408, %v1628, 0
        %v1646 = vsel %vm408, %v1629, 0
        %v1649 = vsel %vm408, %v1630, 0
        %v1652 = vsel %vm408, %v1631, 0
        %v1655 = vsel %vm408, %v1632, 0
        %1657 = vmatprep.subr.bf16.mxu0 0
        %1658 = vmatpush1.bf16.msra.mxu0 %v400
        %1659 = vmatprep.subr.bf16.mxu0 0
        %1660 = vmatpush1.bf16.msra.mxu0 %v401
        %1661 = vmatprep.subr.bf16.mxu0 0
        %1662 = vmatpush1.bf16.msra.mxu0 %v402
        %1663 = vmatprep.subr.bf16.mxu0 0
        %1664 = vmatpush1.bf16.msra.mxu0 %v403
        %1665 = vmatprep.subr.bf16.mxu0 0
        %1666 = vmatpush1.bf16.msra.mxu0 0
        %1667 = vmatprep.subr.bf16.mxu0 0
        %1668 = vmatpush1.bf16.msra.mxu0 0
        %1669 = vmatprep.subr.bf16.mxu0 0
        %1670 = vmatpush1.bf16.msra.mxu0 0
        %1671 = vmatprep.subr.bf16.mxu0 0
        %1672 = vmatpush1.bf16.msra.mxu0 0
        %1673 = vmatprep.subr.bf16.mxu0 0
        %1674 = vmatpush1.bf16.msra.mxu0 0
        %1675 = vmatprep.subr.bf16.mxu0 0
        %1676 = vmatpush1.bf16.msra.mxu0 0
        %1677 = vmatprep.subr.bf16.mxu0 0
        %1678 = vmatpush1.bf16.msra.mxu0 0
        %1679 = vmatprep.subr.bf16.mxu0 0
        %1680 = vmatpush1.bf16.msra.mxu0 0
        %1681 = vmatprep.subr.bf16.mxu0 0
        %1682 = vmatpush1.bf16.msra.mxu0 0
        %1683 = vmatprep.subr.bf16.mxu0 0
        %1684 = vmatpush1.bf16.msra.mxu0 0
        %1685 = vmatprep.subr.bf16.mxu0 0
        %1686 = vmatpush1.bf16.msra.mxu0 0
        %1687 = vmatprep.subr.bf16.mxu0 0
        %1688 = vmatpush1.bf16.msra.mxu0 0
        %1689 = vmatprep.mubr.bf16.mxu0 0
        %1690 = vmatmul.mubr.bf16.gmra.mrb[0].mxu0 %v1634
        %v1691 = vpop.f32.mrb[0].mxu0
        %v1692 = vadd.f32 0.0, %v1691
        %v1693 = vpop.f32.mrb[0].mxu0
        %v1694 = vpop.f32.mrb[0].mxu0
        %v1695 = vadd.f32 0.0, %v1694
        %v1696 = vpop.f32.mrb[0].mxu0
        %1697 = vmatprep.mubr.bf16.mxu0 0
        %1698 = vmatmul.mubr.bf16.gmra.mrb[0].mxu0 %v1637
        %v1699 = vpop.f32.mrb[0].mxu0
        %v1700 = vadd.f32 0.0, %v1699
        %v1701 = vpop.f32.mrb[0].mxu0
        %v1702 = vpop.f32.mrb[0].mxu0
        %v1703 = vadd.f32 0.0, %v1702
        %v1704 = vpop.f32.mrb[0].mxu0
        %1705 = vmatprep.mubr.bf16.mxu0 0
        %1706 = vmatmul.mubr.bf16.gmra.mrb[0].mxu0 %v1640
        %v1707 = vpop.f32.mrb[0].mxu0
        %v1708 = vadd.f32 0.0, %v1707
        %v1709 = vpop.f32.mrb[0].mxu0
        %v1710 = vpop.f32.mrb[0].mxu0
        %v1711 = vadd.f32 0.0, %v1710
        %v1712 = vpop.f32.mrb[0].mxu0
        %1713 = vmatprep.mubr.bf16.mxu0 0
        %1714 = vmatmul.mubr.bf16.gmra.mrb[0].mxu0 %v1643
        %v1715 = vpop.f32.mrb[0].mxu0
        %v1716 = vadd.f32 0.0, %v1715
        %v1717 = vpop.f32.mrb[0].mxu0
        %v1718 = vpop.f32.mrb[0].mxu0
        %v1719 = vadd.f32 0.0, %v1718
        %v1720 = vpop.f32.mrb[0].mxu0
        %1721 = vmatprep.mubr.bf16.mxu0 0
        %1722 = vmatmul.mubr.bf16.gmra.mrb[0].mxu0 %v1646
        %v1723 = vpop.f32.mrb[0].mxu0
        %v1724 = vadd.f32 0.0, %v1723
        %v1725 = vpop.f32.mrb[0].mxu0
        %v1726 = vpop.f32.mrb[0].mxu0
        %v1727 = vadd.f32 0.0, %v1726
        %v1728 = vpop.f32.mrb[0].mxu0
        %1729 = vmatprep.mubr.bf16.mxu0 0
        %1730 = vmatmul.mubr.bf16.gmra.mrb[0].mxu0 %v1649
        %v1731 = vpop.f32.mrb[0].mxu0
        %v1732 = vadd.f32 0.0, %v1731
        %v1733 = vpop.f32.mrb[0].mxu0
        %v1734 = vpop.f32.mrb[0].mxu0
        %v1735 = vadd.f32 0.0, %v1734
        %v1736 = vpop.f32.mrb[0].mxu0
        %1737 = vmatprep.mubr.bf16.mxu0 0
        %1738 = vmatmul.mubr.bf16.gmra.mrb[0].mxu0 %v1652
        %v1739 = vpop.f32.mrb[0].mxu0
        %v1740 = vadd.f32 0.0, %v1739
        %v1741 = vpop.f32.mrb[0].mxu0
        %v1742 = vpop.f32.mrb[0].mxu0
        %v1743 = vadd.f32 0.0, %v1742
        %v1744 = vpop.f32.mrb[0].mxu0
        %1745 = vmatprep.mubr.bf16.mxu0 0
        %1746 = vmatmul.mubr.bf16.gmra.mrb[0].mxu0 %v1655
        %v1747 = vpop.f32.mrb[0].mxu0
        %v1748 = vadd.f32 0.0, %v1747
        %v1749 = vpop.f32.mrb[0].mxu0
        %v1750 = vpop.f32.mrb[0].mxu0
        %v1751 = vadd.f32 0.0, %v1750
        %v1752 = vpop.f32.mrb[0].mxu0
        %1753 = vdwg.mxu0
        %1770 = vrot.lane.b32.xlu0 %v1692, 64
        %v1771 = vpop.permute.xlu0 %1770
        %1772 = vrot.lane.b32.xlu0 %v1695, 64
        %v1773 = vpop.permute.xlu0 %1772
        %1774 = vrot.lane.b32.xlu0 %v1700, 64
        %v1775 = vpop.permute.xlu0 %1774
        %1776 = vrot.lane.b32.xlu0 %v1703, 64
        %v1777 = vpop.permute.xlu0 %1776
        %1778 = vrot.lane.b32.xlu0 %v1708, 64
        %v1779 = vpop.permute.xlu0 %1778
        %1780 = vrot.lane.b32.xlu0 %v1711, 64
        %v1781 = vpop.permute.xlu0 %1780
        %1782 = vrot.lane.b32.xlu0 %v1716, 64
        %v1783 = vpop.permute.xlu0 %1782
        %1784 = vrot.lane.b32.xlu0 %v1719, 64
        %v1785 = vpop.permute.xlu0 %1784
        %1786 = vrot.lane.b32.xlu0 %v1724, 64
        %v1787 = vpop.permute.xlu0 %1786
        %1788 = vrot.lane.b32.xlu0 %v1727, 64
        %v1789 = vpop.permute.xlu0 %1788
        %1790 = vrot.lane.b32.xlu0 %v1732, 64
        %v1791 = vpop.permute.xlu0 %1790
        %1792 = vrot.lane.b32.xlu0 %v1735, 64
        %v1793 = vpop.permute.xlu0 %1792
        %1794 = vrot.lane.b32.xlu0 %v1740, 64
        %v1795 = vpop.permute.xlu0 %1794
        %1796 = vrot.lane.b32.xlu0 %v1743, 64
        %v1797 = vpop.permute.xlu0 %1796
        %1798 = vrot.lane.b32.xlu0 %v1748, 64
        %v1799 = vpop.permute.xlu0 %1798
        %1800 = vrot.lane.b32.xlu0 %v1751, 64
        %v1801 = vpop.permute.xlu0 %1800
        %vm1818 = vcmask 654848
        %1819 = vst.msk [vmem:[#allocation2] sm:$0xff] %vm1818, %v1771
        %1820 = vst.msk [vmem:[#allocation2 + $0x8] sm:$0xff] %vm1818, %v1773
        %1821 = vst.msk [vmem:[#allocation2 + $0x10] sm:$0xff] %vm1818, %v1775
        %1822 = vst.msk [vmem:[#allocation2 + $0x18] sm:$0xff] %vm1818, %v1777
        %1823 = vst.msk [vmem:[#allocation2 + $0x20] sm:$0xff] %vm1818, %v1779
        %1824 = vst.msk [vmem:[#allocation2 + $0x28] sm:$0xff] %vm1818, %v1781
        %1825 = vst.msk [vmem:[#allocation2 + $0x30] sm:$0xff] %vm1818, %v1783
        %1826 = vst.msk [vmem:[#allocation2 + $0x38] sm:$0xff] %vm1818, %v1785
        %1827 = vst.msk [vmem:[#allocation2 + $0x40] sm:$0xff] %vm1818, %v1787
        %1828 = vst.msk [vmem:[#allocation2 + $0x48] sm:$0xff] %vm1818, %v1789
        %1829 = vst.msk [vmem:[#allocation2 + $0x50] sm:$0xff] %vm1818, %v1791
        %1830 = vst.msk [vmem:[#allocation2 + $0x58] sm:$0xff] %vm1818, %v1793
        %1831 = vst.msk [vmem:[#allocation2 + $0x60] sm:$0xff] %vm1818, %v1795
        %1832 = vst.msk [vmem:[#allocation2 + $0x68] sm:$0xff] %vm1818, %v1797
        %1833 = vst.msk [vmem:[#allocation2 + $0x70] sm:$0xff] %vm1818, %v1799
        %1834 = vst.msk [vmem:[#allocation2 + $0x78] sm:$0xff] %vm1818, %v1801
        %v1835 = vld [vmem:[%s250] sm:$0xff]
        %v1836 = vld [vmem:[%s250 + $0x8] sm:$0xff]
        %v1837 = vld [vmem:[%s250 + $0x10] sm:$0xff]
        %v1838 = vld [vmem:[%s250 + $0x18] sm:$0xff]
        %v1839 = vld [vmem:[%s250 + $0x20] sm:$0xff]
        %v1840 = vld [vmem:[%s250 + $0x28] sm:$0xff]
        %v1841 = vld [vmem:[%s250 + $0x30] sm:$0xff]
        %v1842 = vld [vmem:[%s250 + $0x38] sm:$0xff]
        %v1843 = vld [vmem:[%s250 + $0x40] sm:$0xff]
        %v1844 = vld [vmem:[%s250 + $0x48] sm:$0xff]
        %v1845 = vld [vmem:[%s250 + $0x50] sm:$0xff]
        %v1846 = vld [vmem:[%s250 + $0x58] sm:$0xff]
        %v1847 = vld [vmem:[%s250 + $0x60] sm:$0xff]
        %v1848 = vld [vmem:[%s250 + $0x68] sm:$0xff]
        %v1849 = vld [vmem:[%s250 + $0x70] sm:$0xff]
        %v1850 = vld [vmem:[%s250 + $0x78] sm:$0xff]
        %1851 = vset.pattern.permute.xlu0 5
        %1852 = vperm.xlu0 %1851, %v1835
        %v1853 = vpop.permute.xlu0 %1852
        %1854 = vset.pattern.permute.xlu0 5
        %1855 = vperm.xlu0 %1854, %v1836
        %v1856 = vpop.permute.xlu0 %1855
        %1857 = vset.pattern.permute.xlu0 5
        %1858 = vperm.xlu0 %1857, %v1837
        %v1859 = vpop.permute.xlu0 %1858
        %1860 = vset.pattern.permute.xlu0 5
        %1861 = vperm.xlu0 %1860, %v1838
        %v1862 = vpop.permute.xlu0 %1861
        %1863 = vset.pattern.permute.xlu0 5
        %1864 = vperm.xlu0 %1863, %v1839
        %v1865 = vpop.permute.xlu0 %1864
        %1866 = vset.pattern.permute.xlu0 5
        %1867 = vperm.xlu0 %1866, %v1840
        %v1868 = vpop.permute.xlu0 %1867
        %1869 = vset.pattern.permute.xlu0 5
        %1870 = vperm.xlu0 %1869, %v1841
        %v1871 = vpop.permute.xlu0 %1870
        %1872 = vset.pattern.permute.xlu0 5
        %1873 = vperm.xlu0 %1872, %v1842
        %v1874 = vpop.permute.xlu0 %1873
        %1875 = vset.pattern.permute.xlu0 5
        %1876 = vperm.xlu0 %1875, %v1843
        %v1877 = vpop.permute.xlu0 %1876
        %1878 = vset.pattern.permute.xlu0 5
        %1879 = vperm.xlu0 %1878, %v1844
        %v1880 = vpop.permute.xlu0 %1879
        %1881 = vset.pattern.permute.xlu0 5
        %1882 = vperm.xlu0 %1881, %v1845
        %v1883 = vpop.permute.xlu0 %1882
        %1884 = vset.pattern.permute.xlu0 5
        %1885 = vperm.xlu0 %1884, %v1846
        %v1886 = vpop.permute.xlu0 %1885
        %1887 = vset.pattern.permute.xlu0 5
        %1888 = vperm.xlu0 %1887, %v1847
        %v1889 = vpop.permute.xlu0 %1888
        %1890 = vset.pattern.permute.xlu0 5
        %1891 = vperm.xlu0 %1890, %v1848
        %v1892 = vpop.permute.xlu0 %1891
        %1893 = vset.pattern.permute.xlu0 5
        %1894 = vperm.xlu0 %1893, %v1849
        %v1895 = vpop.permute.xlu0 %1894
        %1896 = vset.pattern.permute.xlu0 5
        %1897 = vperm.xlu0 %1896, %v1850
        %v1898 = vpop.permute.xlu0 %1897
        %vm1899 = vcmp.eq.s32.totalorder %v263, %v1853
        %vm1900 = vcmp.eq.s32.totalorder %v263, %v1856
        %vm1901 = vcmp.eq.s32.totalorder %v263, %v1859
        %vm1902 = vcmp.eq.s32.totalorder %v263, %v1862
        %vm1903 = vcmp.eq.s32.totalorder %v263, %v1865
        %vm1904 = vcmp.eq.s32.totalorder %v263, %v1868
        %vm1905 = vcmp.eq.s32.totalorder %v263, %v1871
        %vm1906 = vcmp.eq.s32.totalorder %v263, %v1874
        %vm1907 = vcmp.eq.s32.totalorder %v263, %v1877
        %vm1908 = vcmp.eq.s32.totalorder %v263, %v1880
        %vm1909 = vcmp.eq.s32.totalorder %v263, %v1883
        %vm1910 = vcmp.eq.s32.totalorder %v263, %v1886
        %vm1911 = vcmp.eq.s32.totalorder %v263, %v1889
        %vm1912 = vcmp.eq.s32.totalorder %v263, %v1892
        %vm1913 = vcmp.eq.s32.totalorder %v263, %v1895
        %vm1914 = vcmp.eq.s32.totalorder %v263, %v1898
        %v1915 = vsel %vm1899, 1, 0
        %v1916 = vsel %vm1900, 1, 0
        %v1917 = vsel %vm1901, 1, 0
        %v1918 = vsel %vm1902, 1, 0
        %v1919 = vsel %vm1903, 1, 0
        %v1920 = vsel %vm1904, 1, 0
        %v1921 = vsel %vm1905, 1, 0
        %v1922 = vsel %vm1906, 1, 0
        %v1923 = vsel %vm1907, 1, 0
        %v1924 = vsel %vm1908, 1, 0
        %v1925 = vsel %vm1909, 1, 0
        %v1926 = vsel %vm1910, 1, 0
        %v1927 = vsel %vm1911, 1, 0
        %v1928 = vsel %vm1912, 1, 0
        %v1929 = vsel %vm1913, 1, 0
        %v1930 = vsel %vm1914, 1, 0
        %v1931 = vcvt.s32.f32 %v1915
        %v1932 = vcvt.s32.f32 %v1916
        %v1933 = vcvt.s32.f32 %v1917
        %v1934 = vcvt.s32.f32 %v1918
        %v1935 = vcvt.s32.f32 %v1919
        %v1936 = vcvt.s32.f32 %v1920
        %v1937 = vcvt.s32.f32 %v1921
        %v1938 = vcvt.s32.f32 %v1922
        %v1939 = vcvt.s32.f32 %v1923
        %v1940 = vcvt.s32.f32 %v1924
        %v1941 = vcvt.s32.f32 %v1925
        %v1942 = vcvt.s32.f32 %v1926
        %v1943 = vcvt.s32.f32 %v1927
        %v1944 = vcvt.s32.f32 %v1928
        %v1945 = vcvt.s32.f32 %v1929
        %v1946 = vcvt.s32.f32 %v1930
        %v1947 = vpack.c.bf16 %v1932, %v1931
        %v1948 = vpack.c.bf16 %v1934, %v1933
        %v1949 = vpack.c.bf16 %v1936, %v1935
        %v1950 = vpack.c.bf16 %v1938, %v1937
        %v1951 = vpack.c.bf16 %v1940, %v1939
        %v1952 = vpack.c.bf16 %v1942, %v1941
        %v1953 = vpack.c.bf16 %v1944, %v1943
        %v1954 = vpack.c.bf16 %v1946, %v1945
        %v1956 = vsel %vm408, %v1947, 0
        %v1959 = vsel %vm408, %v1948, 0
        %v1962 = vsel %vm408, %v1949, 0
        %v1965 = vsel %vm408, %v1950, 0
        %v1968 = vsel %vm408, %v1951, 0
        %v1971 = vsel %vm408, %v1952, 0
        %v1974 = vsel %vm408, %v1953, 0
        %v1977 = vsel %vm408, %v1954, 0
        %1979 = vmatprep.subr.bf16.mxu0 0
        %1980 = vmatpush1.bf16.msra.mxu0 %v400
        %1981 = vmatprep.subr.bf16.mxu0 0
        %1982 = vmatpush1.bf16.msra.mxu0 %v401
        %1983 = vmatprep.subr.bf16.mxu0 0
        %1984 = vmatpush1.bf16.msra.mxu0 %v402
        %1985 = vmatprep.subr.bf16.mxu0 0
        %1986 = vmatpush1.bf16.msra.mxu0 %v403
        %1987 = vmatprep.subr.bf16.mxu0 0
        %1988 = vmatpush1.bf16.msra.mxu0 0
        %1989 = vmatprep.subr.bf16.mxu0 0
        %1990 = vmatpush1.bf16.msra.mxu0 0
        %1991 = vmatprep.subr.bf16.mxu0 0
        %1992 = vmatpush1.bf16.msra.mxu0 0
        %1993 = vmatprep.subr.bf16.mxu0 0
        %1994 = vmatpush1.bf16.msra.mxu0 0
        %1995 = vmatprep.subr.bf16.mxu0 0
        %1996 = vmatpush1.bf16.msra.mxu0 0
        %1997 = vmatprep.subr.bf16.mxu0 0
        %1998 = vmatpush1.bf16.msra.mxu0 0
        %1999 = vmatprep.subr.bf16.mxu0 0
        %2000 = vmatpush1.bf16.msra.mxu0 0
        %2001 = vmatprep.subr.bf16.mxu0 0
        %2002 = vmatpush1.bf16.msra.mxu0 0
        %2003 = vmatprep.subr.bf16.mxu0 0
        %2004 = vmatpush1.bf16.msra.mxu0 0
        %2005 = vmatprep.subr.bf16.mxu0 0
        %2006 = vmatpush1.bf16.msra.mxu0 0
        %2007 = vmatprep.subr.bf16.mxu0 0
        %2008 = vmatpush1.bf16.msra.mxu0 0
        %2009 = vmatprep.subr.bf16.mxu0 0
        %2010 = vmatpush1.bf16.msra.mxu0 0
        %2011 = vmatprep.mubr.bf16.mxu0 0
        %2012 = vmatmul.mubr.bf16.gmra.mrb[0].mxu0 %v1956
        %v2013 = vpop.f32.mrb[0].mxu0
        %v2014 = vadd.f32 0.0, %v2013
        %v2015 = vpop.f32.mrb[0].mxu0
        %v2016 = vpop.f32.mrb[0].mxu0
        %v2017 = vadd.f32 0.0, %v2016
        %v2018 = vpop.f32.mrb[0].mxu0
        %2019 = vmatprep.mubr.bf16.mxu0 0
        %2020 = vmatmul.mubr.bf16.gmra.mrb[0].mxu0 %v1959
        %v2021 = vpop.f32.mrb[0].mxu0
        %v2022 = vadd.f32 0.0, %v2021
        %v2023 = vpop.f32.mrb[0].mxu0
        %v2024 = vpop.f32.mrb[0].mxu0
        %v2025 = vadd.f32 0.0, %v2024
        %v2026 = vpop.f32.mrb[0].mxu0
        %2027 = vmatprep.mubr.bf16.mxu0 0
        %2028 = vmatmul.mubr.bf16.gmra.mrb[0].mxu0 %v1962
        %v2029 = vpop.f32.mrb[0].mxu0
        %v2030 = vadd.f32 0.0, %v2029
        %v2031 = vpop.f32.mrb[0].mxu0
        %v2032 = vpop.f32.mrb[0].mxu0
        %v2033 = vadd.f32 0.0, %v2032
        %v2034 = vpop.f32.mrb[0].mxu0
        %2035 = vmatprep.mubr.bf16.mxu0 0
        %2036 = vmatmul.mubr.bf16.gmra.mrb[0].mxu0 %v1965
        %v2037 = vpop.f32.mrb[0].mxu0
        %v2038 = vadd.f32 0.0, %v2037
        %v2039 = vpop.f32.mrb[0].mxu0
        %v2040 = vpop.f32.mrb[0].mxu0
        %v2041 = vadd.f32 0.0, %v2040
        %v2042 = vpop.f32.mrb[0].mxu0
        %2043 = vmatprep.mubr.bf16.mxu0 0
        %2044 = vmatmul.mubr.bf16.gmra.mrb[0].mxu0 %v1968
        %v2045 = vpop.f32.mrb[0].mxu0
        %v2046 = vadd.f32 0.0, %v2045
        %v2047 = vpop.f32.mrb[0].mxu0
        %v2048 = vpop.f32.mrb[0].mxu0
        %v2049 = vadd.f32 0.0, %v2048
        %v2050 = vpop.f32.mrb[0].mxu0
        %2051 = vmatprep.mubr.bf16.mxu0 0
        %2052 = vmatmul.mubr.bf16.gmra.mrb[0].mxu0 %v1971
        %v2053 = vpop.f32.mrb[0].mxu0
        %v2054 = vadd.f32 0.0, %v2053
        %v2055 = vpop.f32.mrb[0].mxu0
        %v2056 = vpop.f32.mrb[0].mxu0
        %v2057 = vadd.f32 0.0, %v2056
        %v2058 = vpop.f32.mrb[0].mxu0
        %2059 = vmatprep.mubr.bf16.mxu0 0
        %2060 = vmatmul.mubr.bf16.gmra.mrb[0].mxu0 %v1974
        %v2061 = vpop.f32.mrb[0].mxu0
        %v2062 = vadd.f32 0.0, %v2061
        %v2063 = vpop.f32.mrb[0].mxu0
        %v2064 = vpop.f32.mrb[0].mxu0
        %v2065 = vadd.f32 0.0, %v2064
        %v2066 = vpop.f32.mrb[0].mxu0
        %2067 = vmatprep.mubr.bf16.mxu0 0
        %2068 = vmatmul.mubr.bf16.gmra.mrb[0].mxu0 %v1977
        %v2069 = vpop.f32.mrb[0].mxu0
        %v2070 = vadd.f32 0.0, %v2069
        %v2071 = vpop.f32.mrb[0].mxu0
        %v2072 = vpop.f32.mrb[0].mxu0
        %v2073 = vadd.f32 0.0, %v2072
        %v2074 = vpop.f32.mrb[0].mxu0
        %2075 = vdwg.mxu0
        %2092 = vrot.lane.b32.xlu0 %v2014, 80
        %v2093 = vpop.permute.xlu0 %2092
        %2094 = vrot.lane.b32.xlu0 %v2017, 80
        %v2095 = vpop.permute.xlu0 %2094
        %2096 = vrot.lane.b32.xlu0 %v2022, 80
        %v2097 = vpop.permute.xlu0 %2096
        %2098 = vrot.lane.b32.xlu0 %v2025, 80
        %v2099 = vpop.permute.xlu0 %2098
        %2100 = vrot.lane.b32.xlu0 %v2030, 80
        %v2101 = vpop.permute.xlu0 %2100
        %2102 = vrot.lane.b32.xlu0 %v2033, 80
        %v2103 = vpop.permute.xlu0 %2102
        %2104 = vrot.lane.b32.xlu0 %v2038, 80
        %v2105 = vpop.permute.xlu0 %2104
        %2106 = vrot.lane.b32.xlu0 %v2041, 80
        %v2107 = vpop.permute.xlu0 %2106
        %2108 = vrot.lane.b32.xlu0 %v2046, 80
        %v2109 = vpop.permute.xlu0 %2108
        %2110 = vrot.lane.b32.xlu0 %v2049, 80
        %v2111 = vpop.permute.xlu0 %2110
        %2112 = vrot.lane.b32.xlu0 %v2054, 80
        %v2113 = vpop.permute.xlu0 %2112
        %2114 = vrot.lane.b32.xlu0 %v2057, 80
        %v2115 = vpop.permute.xlu0 %2114
        %2116 = vrot.lane.b32.xlu0 %v2062, 80
        %v2117 = vpop.permute.xlu0 %2116
        %2118 = vrot.lane.b32.xlu0 %v2065, 80
        %v2119 = vpop.permute.xlu0 %2118
        %2120 = vrot.lane.b32.xlu0 %v2070, 80
        %v2121 = vpop.permute.xlu0 %2120
        %2122 = vrot.lane.b32.xlu0 %v2073, 80
        %v2123 = vpop.permute.xlu0 %2122
        %vm2140 = vcmask 786048
        %2141 = vst.msk [vmem:[#allocation2] sm:$0xff] %vm2140, %v2093
        %2142 = vst.msk [vmem:[#allocation2 + $0x8] sm:$0xff] %vm2140, %v2095
        %2143 = vst.msk [vmem:[#allocation2 + $0x10] sm:$0xff] %vm2140, %v2097
        %2144 = vst.msk [vmem:[#allocation2 + $0x18] sm:$0xff] %vm2140, %v2099
        %2145 = vst.msk [vmem:[#allocation2 + $0x20] sm:$0xff] %vm2140, %v2101
        %2146 = vst.msk [vmem:[#allocation2 + $0x28] sm:$0xff] %vm2140, %v2103
        %2147 = vst.msk [vmem:[#allocation2 + $0x30] sm:$0xff] %vm2140, %v2105
        %2148 = vst.msk [vmem:[#allocation2 + $0x38] sm:$0xff] %vm2140, %v2107
        %2149 = vst.msk [vmem:[#allocation2 + $0x40] sm:$0xff] %vm2140, %v2109
        %2150 = vst.msk [vmem:[#allocation2 + $0x48] sm:$0xff] %vm2140, %v2111
        %2151 = vst.msk [vmem:[#allocation2 + $0x50] sm:$0xff] %vm2140, %v2113
        %2152 = vst.msk [vmem:[#allocation2 + $0x58] sm:$0xff] %vm2140, %v2115
        %2153 = vst.msk [vmem:[#allocation2 + $0x60] sm:$0xff] %vm2140, %v2117
        %2154 = vst.msk [vmem:[#allocation2 + $0x68] sm:$0xff] %vm2140, %v2119
        %2155 = vst.msk [vmem:[#allocation2 + $0x70] sm:$0xff] %vm2140, %v2121
        %2156 = vst.msk [vmem:[#allocation2 + $0x78] sm:$0xff] %vm2140, %v2123
        %v2157 = vld [vmem:[%s250] sm:$0xff]
        %v2158 = vld [vmem:[%s250 + $0x8] sm:$0xff]
        %v2159 = vld [vmem:[%s250 + $0x10] sm:$0xff]
        %v2160 = vld [vmem:[%s250 + $0x18] sm:$0xff]
        %v2161 = vld [vmem:[%s250 + $0x20] sm:$0xff]
        %v2162 = vld [vmem:[%s250 + $0x28] sm:$0xff]
        %v2163 = vld [vmem:[%s250 + $0x30] sm:$0xff]
        %v2164 = vld [vmem:[%s250 + $0x38] sm:$0xff]
        %v2165 = vld [vmem:[%s250 + $0x40] sm:$0xff]
        %v2166 = vld [vmem:[%s250 + $0x48] sm:$0xff]
        %v2167 = vld [vmem:[%s250 + $0x50] sm:$0xff]
        %v2168 = vld [vmem:[%s250 + $0x58] sm:$0xff]
        %v2169 = vld [vmem:[%s250 + $0x60] sm:$0xff]
        %v2170 = vld [vmem:[%s250 + $0x68] sm:$0xff]
        %v2171 = vld [vmem:[%s250 + $0x70] sm:$0xff]
        %v2172 = vld [vmem:[%s250 + $0x78] sm:$0xff]
        %2173 = vset.pattern.permute.xlu0 6
        %2174 = vperm.xlu0 %2173, %v2157
        %v2175 = vpop.permute.xlu0 %2174
        %2176 = vset.pattern.permute.xlu0 6
        %2177 = vperm.xlu0 %2176, %v2158
        %v2178 = vpop.permute.xlu0 %2177
        %2179 = vset.pattern.permute.xlu0 6
        %2180 = vperm.xlu0 %2179, %v2159
        %v2181 = vpop.permute.xlu0 %2180
        %2182 = vset.pattern.permute.xlu0 6
        %2183 = vperm.xlu0 %2182, %v2160
        %v2184 = vpop.permute.xlu0 %2183
        %2185 = vset.pattern.permute.xlu0 6
        %2186 = vperm.xlu0 %2185, %v2161
        %v2187 = vpop.permute.xlu0 %2186
        %2188 = vset.pattern.permute.xlu0 6
        %2189 = vperm.xlu0 %2188, %v2162
        %v2190 = vpop.permute.xlu0 %2189
        %2191 = vset.pattern.permute.xlu0 6
        %2192 = vperm.xlu0 %2191, %v2163
        %v2193 = vpop.permute.xlu0 %2192
        %2194 = vset.pattern.permute.xlu0 6
        %2195 = vperm.xlu0 %2194, %v2164
        %v2196 = vpop.permute.xlu0 %2195
        %2197 = vset.pattern.permute.xlu0 6
        %2198 = vperm.xlu0 %2197, %v2165
        %v2199 = vpop.permute.xlu0 %2198
        %2200 = vset.pattern.permute.xlu0 6
        %2201 = vperm.xlu0 %2200, %v2166
        %v2202 = vpop.permute.xlu0 %2201
        %2203 = vset.pattern.permute.xlu0 6
        %2204 = vperm.xlu0 %2203, %v2167
        %v2205 = vpop.permute.xlu0 %2204
        %2206 = vset.pattern.permute.xlu0 6
        %2207 = vperm.xlu0 %2206, %v2168
        %v2208 = vpop.permute.xlu0 %2207
        %2209 = vset.pattern.permute.xlu0 6
        %2210 = vperm.xlu0 %2209, %v2169
        %v2211 = vpop.permute.xlu0 %2210
        %2212 = vset.pattern.permute.xlu0 6
        %2213 = vperm.xlu0 %2212, %v2170
        %v2214 = vpop.permute.xlu0 %2213
        %2215 = vset.pattern.permute.xlu0 6
        %2216 = vperm.xlu0 %2215, %v2171
        %v2217 = vpop.permute.xlu0 %2216
        %2218 = vset.pattern.permute.xlu0 6
        %2219 = vperm.xlu0 %2218, %v2172
        %v2220 = vpop.permute.xlu0 %2219
        %vm2221 = vcmp.eq.s32.totalorder %v263, %v2175
        %vm2222 = vcmp.eq.s32.totalorder %v263, %v2178
        %vm2223 = vcmp.eq.s32.totalorder %v263, %v2181
        %vm2224 = vcmp.eq.s32.totalorder %v263, %v2184
        %vm2225 = vcmp.eq.s32.totalorder %v263, %v2187
        %vm2226 = vcmp.eq.s32.totalorder %v263, %v2190
        %vm2227 = vcmp.eq.s32.totalorder %v263, %v2193
        %vm2228 = vcmp.eq.s32.totalorder %v263, %v2196
        %vm2229 = vcmp.eq.s32.totalorder %v263, %v2199
        %vm2230 = vcmp.eq.s32.totalorder %v263, %v2202
        %vm2231 = vcmp.eq.s32.totalorder %v263, %v2205
        %vm2232 = vcmp.eq.s32.totalorder %v263, %v2208
        %vm2233 = vcmp.eq.s32.totalorder %v263, %v2211
        %vm2234 = vcmp.eq.s32.totalorder %v263, %v2214
        %vm2235 = vcmp.eq.s32.totalorder %v263, %v2217
        %vm2236 = vcmp.eq.s32.totalorder %v263, %v2220
        %v2237 = vsel %vm2221, 1, 0
        %v2238 = vsel %vm2222, 1, 0
        %v2239 = vsel %vm2223, 1, 0
        %v2240 = vsel %vm2224, 1, 0
        %v2241 = vsel %vm2225, 1, 0
        %v2242 = vsel %vm2226, 1, 0
        %v2243 = vsel %vm2227, 1, 0
        %v2244 = vsel %vm2228, 1, 0
        %v2245 = vsel %vm2229, 1, 0
        %v2246 = vsel %vm2230, 1, 0
        %v2247 = vsel %vm2231, 1, 0
        %v2248 = vsel %vm2232, 1, 0
        %v2249 = vsel %vm2233, 1, 0
        %v2250 = vsel %vm2234, 1, 0
        %v2251 = vsel %vm2235, 1, 0
        %v2252 = vsel %vm2236, 1, 0
        %v2253 = vcvt.s32.f32 %v2237
        %v2254 = vcvt.s32.f32 %v2238
        %v2255 = vcvt.s32.f32 %v2239
        %v2256 = vcvt.s32.f32 %v2240
        %v2257 = vcvt.s32.f32 %v2241
        %v2258 = vcvt.s32.f32 %v2242
        %v2259 = vcvt.s32.f32 %v2243
        %v2260 = vcvt.s32.f32 %v2244
        %v2261 = vcvt.s32.f32 %v2245
        %v2262 = vcvt.s32.f32 %v2246
        %v2263 = vcvt.s32.f32 %v2247
        %v2264 = vcvt.s32.f32 %v2248
        %v2265 = vcvt.s32.f32 %v2249
        %v2266 = vcvt.s32.f32 %v2250
        %v2267 = vcvt.s32.f32 %v2251
        %v2268 = vcvt.s32.f32 %v2252
        %v2269 = vpack.c.bf16 %v2254, %v2253
        %v2270 = vpack.c.bf16 %v2256, %v2255
        %v2271 = vpack.c.bf16 %v2258, %v2257
        %v2272 = vpack.c.bf16 %v2260, %v2259
        %v2273 = vpack.c.bf16 %v2262, %v2261
        %v2274 = vpack.c.bf16 %v2264, %v2263
        %v2275 = vpack.c.bf16 %v2266, %v2265
        %v2276 = vpack.c.bf16 %v2268, %v2267
        %v2278 = vsel %vm408, %v2269, 0
        %v2281 = vsel %vm408, %v2270, 0
        %v2284 = vsel %vm408, %v2271, 0
        %v2287 = vsel %vm408, %v2272, 0
        %v2290 = vsel %vm408, %v2273, 0
        %v2293 = vsel %vm408, %v2274, 0
        %v2296 = vsel %vm408, %v2275, 0
        %v2299 = vsel %vm408, %v2276, 0
        %2301 = vmatprep.subr.bf16.mxu0 0
        %2302 = vmatpush1.bf16.msra.mxu0 %v400
        %2303 = vmatprep.subr.bf16.mxu0 0
        %2304 = vmatpush1.bf16.msra.mxu0 %v401
        %2305 = vmatprep.subr.bf16.mxu0 0
        %2306 = vmatpush1.bf16.msra.mxu0 %v402
        %2307 = vmatprep.subr.bf16.mxu0 0
        %2308 = vmatpush1.bf16.msra.mxu0 %v403
        %2309 = vmatprep.subr.bf16.mxu0 0
        %2310 = vmatpush1.bf16.msra.mxu0 0
        %2311 = vmatprep.subr.bf16.mxu0 0
        %2312 = vmatpush1.bf16.msra.mxu0 0
        %2313 = vmatprep.subr.bf16.mxu0 0
        %2314 = vmatpush1.bf16.msra.mxu0 0
        %2315 = vmatprep.subr.bf16.mxu0 0
        %2316 = vmatpush1.bf16.msra.mxu0 0
        %2317 = vmatprep.subr.bf16.mxu0 0
        %2318 = vmatpush1.bf16.msra.mxu0 0
        %2319 = vmatprep.subr.bf16.mxu0 0
        %2320 = vmatpush1.bf16.msra.mxu0 0
        %2321 = vmatprep.subr.bf16.mxu0 0
        %2322 = vmatpush1.bf16.msra.mxu0 0
        %2323 = vmatprep.subr.bf16.mxu0 0
        %2324 = vmatpush1.bf16.msra.mxu0 0
        %2325 = vmatprep.subr.bf16.mxu0 0
        %2326 = vmatpush1.bf16.msra.mxu0 0
        %2327 = vmatprep.subr.bf16.mxu0 0
        %2328 = vmatpush1.bf16.msra.mxu0 0
        %2329 = vmatprep.subr.bf16.mxu0 0
        %2330 = vmatpush1.bf16.msra.mxu0 0
        %2331 = vmatprep.subr.bf16.mxu0 0
        %2332 = vmatpush1.bf16.msra.mxu0 0
        %2333 = vmatprep.mubr.bf16.mxu0 0
        %2334 = vmatmul.mubr.bf16.gmra.mrb[0].mxu0 %v2278
        %v2335 = vpop.f32.mrb[0].mxu0
        %v2336 = vadd.f32 0.0, %v2335
        %v2337 = vpop.f32.mrb[0].mxu0
        %v2338 = vpop.f32.mrb[0].mxu0
        %v2339 = vadd.f32 0.0, %v2338
        %v2340 = vpop.f32.mrb[0].mxu0
        %2341 = vmatprep.mubr.bf16.mxu0 0
        %2342 = vmatmul.mubr.bf16.gmra.mrb[0].mxu0 %v2281
        %v2343 = vpop.f32.mrb[0].mxu0
        %v2344 = vadd.f32 0.0, %v2343
        %v2345 = vpop.f32.mrb[0].mxu0
        %v2346 = vpop.f32.mrb[0].mxu0
        %v2347 = vadd.f32 0.0, %v2346
        %v2348 = vpop.f32.mrb[0].mxu0
        %2349 = vmatprep.mubr.bf16.mxu0 0
        %2350 = vmatmul.mubr.bf16.gmra.mrb[0].mxu0 %v2284
        %v2351 = vpop.f32.mrb[0].mxu0
        %v2352 = vadd.f32 0.0, %v2351
        %v2353 = vpop.f32.mrb[0].mxu0
        %v2354 = vpop.f32.mrb[0].mxu0
        %v2355 = vadd.f32 0.0, %v2354
        %v2356 = vpop.f32.mrb[0].mxu0
        %2357 = vmatprep.mubr.bf16.mxu0 0
        %2358 = vmatmul.mubr.bf16.gmra.mrb[0].mxu0 %v2287
        %v2359 = vpop.f32.mrb[0].mxu0
        %v2360 = vadd.f32 0.0, %v2359
        %v2361 = vpop.f32.mrb[0].mxu0
        %v2362 = vpop.f32.mrb[0].mxu0
        %v2363 = vadd.f32 0.0, %v2362
        %v2364 = vpop.f32.mrb[0].mxu0
        %2365 = vmatprep.mubr.bf16.mxu0 0
        %2366 = vmatmul.mubr.bf16.gmra.mrb[0].mxu0 %v2290
        %v2367 = vpop.f32.mrb[0].mxu0
        %v2368 = vadd.f32 0.0, %v2367
        %v2369 = vpop.f32.mrb[0].mxu0
        %v2370 = vpop.f32.mrb[0].mxu0
        %v2371 = vadd.f32 0.0, %v2370
        %v2372 = vpop.f32.mrb[0].mxu0
        %2373 = vmatprep.mubr.bf16.mxu0 0
        %2374 = vmatmul.mubr.bf16.gmra.mrb[0].mxu0 %v2293
        %v2375 = vpop.f32.mrb[0].mxu0
        %v2376 = vadd.f32 0.0, %v2375
        %v2377 = vpop.f32.mrb[0].mxu0
        %v2378 = vpop.f32.mrb[0].mxu0
        %v2379 = vadd.f32 0.0, %v2378
        %v2380 = vpop.f32.mrb[0].mxu0
        %2381 = vmatprep.mubr.bf16.mxu0 0
        %2382 = vmatmul.mubr.bf16.gmra.mrb[0].mxu0 %v2296
        %v2383 = vpop.f32.mrb[0].mxu0
        %v2384 = vadd.f32 0.0, %v2383
        %v2385 = vpop.f32.mrb[0].mxu0
        %v2386 = vpop.f32.mrb[0].mxu0
        %v2387 = vadd.f32 0.0, %v2386
        %v2388 = vpop.f32.mrb[0].mxu0
        %2389 = vmatprep.mubr.bf16.mxu0 0
        %2390 = vmatmul.mubr.bf16.gmra.mrb[0].mxu0 %v2299
        %v2391 = vpop.f32.mrb[0].mxu0
        %v2392 = vadd.f32 0.0, %v2391
        %v2393 = vpop.f32.mrb[0].mxu0
        %v2394 = vpop.f32.mrb[0].mxu0
        %v2395 = vadd.f32 0.0, %v2394
        %v2396 = vpop.f32.mrb[0].mxu0
        %2397 = vdwg.mxu0
        %2414 = vrot.lane.b32.xlu0 %v2336, 96
        %v2415 = vpop.permute.xlu0 %2414
        %2416 = vrot.lane.b32.xlu0 %v2339, 96
        %v2417 = vpop.permute.xlu0 %2416
        %2418 = vrot.lane.b32.xlu0 %v2344, 96
        %v2419 = vpop.permute.xlu0 %2418
        %2420 = vrot.lane.b32.xlu0 %v2347, 96
        %v2421 = vpop.permute.xlu0 %2420
        %2422 = vrot.lane.b32.xlu0 %v2352, 96
        %v2423 = vpop.permute.xlu0 %2422
        %2424 = vrot.lane.b32.xlu0 %v2355, 96
        %v2425 = vpop.permute.xlu0 %2424
        %2426 = vrot.lane.b32.xlu0 %v2360, 96
        %v2427 = vpop.permute.xlu0 %2426
        %2428 = vrot.lane.b32.xlu0 %v2363, 96
        %v2429 = vpop.permute.xlu0 %2428
        %2430 = vrot.lane.b32.xlu0 %v2368, 96
        %v2431 = vpop.permute.xlu0 %2430
        %2432 = vrot.lane.b32.xlu0 %v2371, 96
        %v2433 = vpop.permute.xlu0 %2432
        %2434 = vrot.lane.b32.xlu0 %v2376, 96
        %v2435 = vpop.permute.xlu0 %2434
        %2436 = vrot.lane.b32.xlu0 %v2379, 96
        %v2437 = vpop.permute.xlu0 %2436
        %2438 = vrot.lane.b32.xlu0 %v2384, 96
        %v2439 = vpop.permute.xlu0 %2438
        %2440 = vrot.lane.b32.xlu0 %v2387, 96
        %v2441 = vpop.permute.xlu0 %2440
        %2442 = vrot.lane.b32.xlu0 %v2392, 96
        %v2443 = vpop.permute.xlu0 %2442
        %2444 = vrot.lane.b32.xlu0 %v2395, 96
        %v2445 = vpop.permute.xlu0 %2444
        %vm2462 = vcmask 917248
        %2463 = vst.msk [vmem:[#allocation2] sm:$0xff] %vm2462, %v2415
        %2464 = vst.msk [vmem:[#allocation2 + $0x8] sm:$0xff] %vm2462, %v2417
        %2465 = vst.msk [vmem:[#allocation2 + $0x10] sm:$0xff] %vm2462, %v2419
        %2466 = vst.msk [vmem:[#allocation2 + $0x18] sm:$0xff] %vm2462, %v2421
        %2467 = vst.msk [vmem:[#allocation2 + $0x20] sm:$0xff] %vm2462, %v2423
        %2468 = vst.msk [vmem:[#allocation2 + $0x28] sm:$0xff] %vm2462, %v2425
        %2469 = vst.msk [vmem:[#allocation2 + $0x30] sm:$0xff] %vm2462, %v2427
        %2470 = vst.msk [vmem:[#allocation2 + $0x38] sm:$0xff] %vm2462, %v2429
        %2471 = vst.msk [vmem:[#allocation2 + $0x40] sm:$0xff] %vm2462, %v2431
        %2472 = vst.msk [vmem:[#allocation2 + $0x48] sm:$0xff] %vm2462, %v2433
        %2473 = vst.msk [vmem:[#allocation2 + $0x50] sm:$0xff] %vm2462, %v2435
        %2474 = vst.msk [vmem:[#allocation2 + $0x58] sm:$0xff] %vm2462, %v2437
        %2475 = vst.msk [vmem:[#allocation2 + $0x60] sm:$0xff] %vm2462, %v2439
        %2476 = vst.msk [vmem:[#allocation2 + $0x68] sm:$0xff] %vm2462, %v2441
        %2477 = vst.msk [vmem:[#allocation2 + $0x70] sm:$0xff] %vm2462, %v2443
        %2478 = vst.msk [vmem:[#allocation2 + $0x78] sm:$0xff] %vm2462, %v2445
        %v2479 = vld [vmem:[%s250] sm:$0xff]
        %v2480 = vld [vmem:[%s250 + $0x8] sm:$0xff]
        %v2481 = vld [vmem:[%s250 + $0x10] sm:$0xff]
        %v2482 = vld [vmem:[%s250 + $0x18] sm:$0xff]
        %v2483 = vld [vmem:[%s250 + $0x20] sm:$0xff]
        %v2484 = vld [vmem:[%s250 + $0x28] sm:$0xff]
        %v2485 = vld [vmem:[%s250 + $0x30] sm:$0xff]
        %v2486 = vld [vmem:[%s250 + $0x38] sm:$0xff]
        %v2487 = vld [vmem:[%s250 + $0x40] sm:$0xff]
        %v2488 = vld [vmem:[%s250 + $0x48] sm:$0xff]
        %v2489 = vld [vmem:[%s250 + $0x50] sm:$0xff]
        %v2490 = vld [vmem:[%s250 + $0x58] sm:$0xff]
        %v2491 = vld [vmem:[%s250 + $0x60] sm:$0xff]
        %v2492 = vld [vmem:[%s250 + $0x68] sm:$0xff]
        %v2493 = vld [vmem:[%s250 + $0x70] sm:$0xff]
        %v2494 = vld [vmem:[%s250 + $0x78] sm:$0xff]
        %2495 = vset.pattern.permute.xlu0 7
        %2496 = vperm.xlu0 %2495, %v2479
        %v2497 = vpop.permute.xlu0 %2496
        %2498 = vset.pattern.permute.xlu0 7
        %2499 = vperm.xlu0 %2498, %v2480
        %v2500 = vpop.permute.xlu0 %2499
        %2501 = vset.pattern.permute.xlu0 7
        %2502 = vperm.xlu0 %2501, %v2481
        %v2503 = vpop.permute.xlu0 %2502
        %2504 = vset.pattern.permute.xlu0 7
        %2505 = vperm.xlu0 %2504, %v2482
        %v2506 = vpop.permute.xlu0 %2505
        %2507 = vset.pattern.permute.xlu0 7
        %2508 = vperm.xlu0 %2507, %v2483
        %v2509 = vpop.permute.xlu0 %2508
        %2510 = vset.pattern.permute.xlu0 7
        %2511 = vperm.xlu0 %2510, %v2484
        %v2512 = vpop.permute.xlu0 %2511
        %2513 = vset.pattern.permute.xlu0 7
        %2514 = vperm.xlu0 %2513, %v2485
        %v2515 = vpop.permute.xlu0 %2514
        %2516 = vset.pattern.permute.xlu0 7
        %2517 = vperm.xlu0 %2516, %v2486
        %v2518 = vpop.permute.xlu0 %2517
        %2519 = vset.pattern.permute.xlu0 7
        %2520 = vperm.xlu0 %2519, %v2487
        %v2521 = vpop.permute.xlu0 %2520
        %2522 = vset.pattern.permute.xlu0 7
        %2523 = vperm.xlu0 %2522, %v2488
        %v2524 = vpop.permute.xlu0 %2523
        %2525 = vset.pattern.permute.xlu0 7
        %2526 = vperm.xlu0 %2525, %v2489
        %v2527 = vpop.permute.xlu0 %2526
        %2528 = vset.pattern.permute.xlu0 7
        %2529 = vperm.xlu0 %2528, %v2490
        %v2530 = vpop.permute.xlu0 %2529
        %2531 = vset.pattern.permute.xlu0 7
        %2532 = vperm.xlu0 %2531, %v2491
        %v2533 = vpop.permute.xlu0 %2532
        %2534 = vset.pattern.permute.xlu0 7
        %2535 = vperm.xlu0 %2534, %v2492
        %v2536 = vpop.permute.xlu0 %2535
        %2537 = vset.pattern.permute.xlu0 7
        %2538 = vperm.xlu0 %2537, %v2493
        %v2539 = vpop.permute.xlu0 %2538
        %2540 = vset.pattern.permute.xlu0 7
        %2541 = vperm.xlu0 %2540, %v2494
        %v2542 = vpop.permute.xlu0 %2541
        %vm2543 = vcmp.eq.s32.totalorder %v263, %v2497
        %vm2544 = vcmp.eq.s32.totalorder %v263, %v2500
        %vm2545 = vcmp.eq.s32.totalorder %v263, %v2503
        %vm2546 = vcmp.eq.s32.totalorder %v263, %v2506
        %vm2547 = vcmp.eq.s32.totalorder %v263, %v2509
        %vm2548 = vcmp.eq.s32.totalorder %v263, %v2512
        %vm2549 = vcmp.eq.s32.totalorder %v263, %v2515
        %vm2550 = vcmp.eq.s32.totalorder %v263, %v2518
        %vm2551 = vcmp.eq.s32.totalorder %v263, %v2521
        %vm2552 = vcmp.eq.s32.totalorder %v263, %v2524
        %vm2553 = vcmp.eq.s32.totalorder %v263, %v2527
        %vm2554 = vcmp.eq.s32.totalorder %v263, %v2530
        %vm2555 = vcmp.eq.s32.totalorder %v263, %v2533
        %vm2556 = vcmp.eq.s32.totalorder %v263, %v2536
        %vm2557 = vcmp.eq.s32.totalorder %v263, %v2539
        %vm2558 = vcmp.eq.s32.totalorder %v263, %v2542
        %v2559 = vsel %vm2543, 1, 0
        %v2560 = vsel %vm2544, 1, 0
        %v2561 = vsel %vm2545, 1, 0
        %v2562 = vsel %vm2546, 1, 0
        %v2563 = vsel %vm2547, 1, 0
        %v2564 = vsel %vm2548, 1, 0
        %v2565 = vsel %vm2549, 1, 0
        %v2566 = vsel %vm2550, 1, 0
        %v2567 = vsel %vm2551, 1, 0
        %v2568 = vsel %vm2552, 1, 0
        %v2569 = vsel %vm2553, 1, 0
        %v2570 = vsel %vm2554, 1, 0
        %v2571 = vsel %vm2555, 1, 0
        %v2572 = vsel %vm2556, 1, 0
        %v2573 = vsel %vm2557, 1, 0
        %v2574 = vsel %vm2558, 1, 0
        %v2575 = vcvt.s32.f32 %v2559
        %v2576 = vcvt.s32.f32 %v2560
        %v2577 = vcvt.s32.f32 %v2561
        %v2578 = vcvt.s32.f32 %v2562
        %v2579 = vcvt.s32.f32 %v2563
        %v2580 = vcvt.s32.f32 %v2564
        %v2581 = vcvt.s32.f32 %v2565
        %v2582 = vcvt.s32.f32 %v2566
        %v2583 = vcvt.s32.f32 %v2567
        %v2584 = vcvt.s32.f32 %v2568
        %v2585 = vcvt.s32.f32 %v2569
        %v2586 = vcvt.s32.f32 %v2570
        %v2587 = vcvt.s32.f32 %v2571
        %v2588 = vcvt.s32.f32 %v2572
        %v2589 = vcvt.s32.f32 %v2573
        %v2590 = vcvt.s32.f32 %v2574
        %v2591 = vpack.c.bf16 %v2576, %v2575
        %v2592 = vpack.c.bf16 %v2578, %v2577
        %v2593 = vpack.c.bf16 %v2580, %v2579
        %v2594 = vpack.c.bf16 %v2582, %v2581
        %v2595 = vpack.c.bf16 %v2584, %v2583
        %v2596 = vpack.c.bf16 %v2586, %v2585
        %v2597 = vpack.c.bf16 %v2588, %v2587
        %v2598 = vpack.c.bf16 %v2590, %v2589
        %v2600 = vsel %vm408, %v2591, 0
        %v2603 = vsel %vm408, %v2592, 0
        %v2606 = vsel %vm408, %v2593, 0
        %v2609 = vsel %vm408, %v2594, 0
        %v2612 = vsel %vm408, %v2595, 0
        %v2615 = vsel %vm408, %v2596, 0
        %v2618 = vsel %vm408, %v2597, 0
        %v2621 = vsel %vm408, %v2598, 0
        %2623 = vmatprep.subr.bf16.mxu0 0
        %2624 = vmatpush1.bf16.msra.mxu0 %v400
        %2625 = vmatprep.subr.bf16.mxu0 0
        %2626 = vmatpush1.bf16.msra.mxu0 %v401
        %2627 = vmatprep.subr.bf16.mxu0 0
        %2628 = vmatpush1.bf16.msra.mxu0 %v402
        %2629 = vmatprep.subr.bf16.mxu0 0
        %2630 = vmatpush1.bf16.msra.mxu0 %v403
        %2631 = vmatprep.subr.bf16.mxu0 0
        %2632 = vmatpush1.bf16.msra.mxu0 0
        %2633 = vmatprep.subr.bf16.mxu0 0
        %2634 = vmatpush1.bf16.msra.mxu0 0
        %2635 = vmatprep.subr.bf16.mxu0 0
        %2636 = vmatpush1.bf16.msra.mxu0 0
        %2637 = vmatprep.subr.bf16.mxu0 0
        %2638 = vmatpush1.bf16.msra.mxu0 0
        %2639 = vmatprep.subr.bf16.mxu0 0
        %2640 = vmatpush1.bf16.msra.mxu0 0
        %2641 = vmatprep.subr.bf16.mxu0 0
        %2642 = vmatpush1.bf16.msra.mxu0 0
        %2643 = vmatprep.subr.bf16.mxu0 0
        %2644 = vmatpush1.bf16.msra.mxu0 0
        %2645 = vmatprep.subr.bf16.mxu0 0
        %2646 = vmatpush1.bf16.msra.mxu0 0
        %2647 = vmatprep.subr.bf16.mxu0 0
        %2648 = vmatpush1.bf16.msra.mxu0 0
        %2649 = vmatprep.subr.bf16.mxu0 0
        %2650 = vmatpush1.bf16.msra.mxu0 0
        %2651 = vmatprep.subr.bf16.mxu0 0
        %2652 = vmatpush1.bf16.msra.mxu0 0
        %2653 = vmatprep.subr.bf16.mxu0 0
        %2654 = vmatpush1.bf16.msra.mxu0 0
        %2655 = vmatprep.mubr.bf16.mxu0 0
        %2656 = vmatmul.mubr.bf16.gmra.mrb[0].mxu0 %v2600
        %v2657 = vpop.f32.mrb[0].mxu0
        %v2658 = vadd.f32 0.0, %v2657
        %v2659 = vpop.f32.mrb[0].mxu0
        %v2660 = vpop.f32.mrb[0].mxu0
        %v2661 = vadd.f32 0.0, %v2660
        %v2662 = vpop.f32.mrb[0].mxu0
        %2663 = vmatprep.mubr.bf16.mxu0 0
        %2664 = vmatmul.mubr.bf16.gmra.mrb[0].mxu0 %v2603
        %v2665 = vpop.f32.mrb[0].mxu0
        %v2666 = vadd.f32 0.0, %v2665
        %v2667 = vpop.f32.mrb[0].mxu0
        %v2668 = vpop.f32.mrb[0].mxu0
        %v2669 = vadd.f32 0.0, %v2668
        %v2670 = vpop.f32.mrb[0].mxu0
        %2671 = vmatprep.mubr.bf16.mxu0 0
        %2672 = vmatmul.mubr.bf16.gmra.mrb[0].mxu0 %v2606
        %v2673 = vpop.f32.mrb[0].mxu0
        %v2674 = vadd.f32 0.0, %v2673
        %v2675 = vpop.f32.mrb[0].mxu0
        %v2676 = vpop.f32.mrb[0].mxu0
        %v2677 = vadd.f32 0.0, %v2676
        %v2678 = vpop.f32.mrb[0].mxu0
        %2679 = vmatprep.mubr.bf16.mxu0 0
        %2680 = vmatmul.mubr.bf16.gmra.mrb[0].mxu0 %v2609
        %v2681 = vpop.f32.mrb[0].mxu0
        %v2682 = vadd.f32 0.0, %v2681
        %v2683 = vpop.f32.mrb[0].mxu0
        %v2684 = vpop.f32.mrb[0].mxu0
        %v2685 = vadd.f32 0.0, %v2684
        %v2686 = vpop.f32.mrb[0].mxu0
        %2687 = vmatprep.mubr.bf16.mxu0 0
        %2688 = vmatmul.mubr.bf16.gmra.mrb[0].mxu0 %v2612
        %v2689 = vpop.f32.mrb[0].mxu0
        %v2690 = vadd.f32 0.0, %v2689
        %v2691 = vpop.f32.mrb[0].mxu0
        %v2692 = vpop.f32.mrb[0].mxu0
        %v2693 = vadd.f32 0.0, %v2692
        %v2694 = vpop.f32.mrb[0].mxu0
        %2695 = vmatprep.mubr.bf16.mxu0 0
        %2696 = vmatmul.mubr.bf16.gmra.mrb[0].mxu0 %v2615
        %v2697 = vpop.f32.mrb[0].mxu0
        %v2698 = vadd.f32 0.0, %v2697
        %v2699 = vpop.f32.mrb[0].mxu0
        %v2700 = vpop.f32.mrb[0].mxu0
        %v2701 = vadd.f32 0.0, %v2700
        %v2702 = vpop.f32.mrb[0].mxu0
        %2703 = vmatprep.mubr.bf16.mxu0 0
        %2704 = vmatmul.mubr.bf16.gmra.mrb[0].mxu0 %v2618
        %v2705 = vpop.f32.mrb[0].mxu0
        %v2706 = vadd.f32 0.0, %v2705
        %v2707 = vpop.f32.mrb[0].mxu0
        %v2708 = vpop.f32.mrb[0].mxu0
        %v2709 = vadd.f32 0.0, %v2708
        %v2710 = vpop.f32.mrb[0].mxu0
        %2711 = vmatprep.mubr.bf16.mxu0 0
        %2712 = vmatmul.mubr.bf16.gmra.mrb[0].mxu0 %v2621
        %v2713 = vpop.f32.mrb[0].mxu0
        %v2714 = vadd.f32 0.0, %v2713
        %v2715 = vpop.f32.mrb[0].mxu0
        %v2716 = vpop.f32.mrb[0].mxu0
        %v2717 = vadd.f32 0.0, %v2716
        %v2718 = vpop.f32.mrb[0].mxu0
        %2719 = vdwg.mxu0
        %2736 = vrot.lane.b32.xlu0 %v2658, 112
        %v2737 = vpop.permute.xlu0 %2736
        %2738 = vrot.lane.b32.xlu0 %v2661, 112
        %v2739 = vpop.permute.xlu0 %2738
        %2740 = vrot.lane.b32.xlu0 %v2666, 112
        %v2741 = vpop.permute.xlu0 %2740
        %2742 = vrot.lane.b32.xlu0 %v2669, 112
        %v2743 = vpop.permute.xlu0 %2742
        %2744 = vrot.lane.b32.xlu0 %v2674, 112
        %v2745 = vpop.permute.xlu0 %2744
        %2746 = vrot.lane.b32.xlu0 %v2677, 112
        %v2747 = vpop.permute.xlu0 %2746
        %2748 = vrot.lane.b32.xlu0 %v2682, 112
        %v2749 = vpop.permute.xlu0 %2748
        %2750 = vrot.lane.b32.xlu0 %v2685, 112
        %v2751 = vpop.permute.xlu0 %2750
        %2752 = vrot.lane.b32.xlu0 %v2690, 112
        %v2753 = vpop.permute.xlu0 %2752
        %2754 = vrot.lane.b32.xlu0 %v2693, 112
        %v2755 = vpop.permute.xlu0 %2754
        %2756 = vrot.lane.b32.xlu0 %v2698, 112
        %v2757 = vpop.permute.xlu0 %2756
        %2758 = vrot.lane.b32.xlu0 %v2701, 112
        %v2759 = vpop.permute.xlu0 %2758
        %2760 = vrot.lane.b32.xlu0 %v2706, 112
        %v2761 = vpop.permute.xlu0 %2760
        %2762 = vrot.lane.b32.xlu0 %v2709, 112
        %v2763 = vpop.permute.xlu0 %2762
        %2764 = vrot.lane.b32.xlu0 %v2714, 112
        %v2765 = vpop.permute.xlu0 %2764
        %2766 = vrot.lane.b32.xlu0 %v2717, 112
        %v2767 = vpop.permute.xlu0 %2766
        %vm2784 = vcmask 1048448
        %2785 = vst.msk [vmem:[#allocation2] sm:$0xff] %vm2784, %v2737
        %2786 = vst.msk [vmem:[#allocation2 + $0x8] sm:$0xff] %vm2784, %v2739
        %2787 = vst.msk [vmem:[#allocation2 + $0x10] sm:$0xff] %vm2784, %v2741
        %2788 = vst.msk [vmem:[#allocation2 + $0x18] sm:$0xff] %vm2784, %v2743
        %2789 = vst.msk [vmem:[#allocation2 + $0x20] sm:$0xff] %vm2784, %v2745
        %2790 = vst.msk [vmem:[#allocation2 + $0x28] sm:$0xff] %vm2784, %v2747
        %2791 = vst.msk [vmem:[#allocation2 + $0x30] sm:$0xff] %vm2784, %v2749
        %2792 = vst.msk [vmem:[#allocation2 + $0x38] sm:$0xff] %vm2784, %v2751
        %2793 = vst.msk [vmem:[#allocation2 + $0x40] sm:$0xff] %vm2784, %v2753
        %2794 = vst.msk [vmem:[#allocation2 + $0x48] sm:$0xff] %vm2784, %v2755
        %2795 = vst.msk [vmem:[#allocation2 + $0x50] sm:$0xff] %vm2784, %v2757
        %2796 = vst.msk [vmem:[#allocation2 + $0x58] sm:$0xff] %vm2784, %v2759
        %2797 = vst.msk [vmem:[#allocation2 + $0x60] sm:$0xff] %vm2784, %v2761
        %2798 = vst.msk [vmem:[#allocation2 + $0x68] sm:$0xff] %vm2784, %v2763
        %2799 = vst.msk [vmem:[#allocation2 + $0x70] sm:$0xff] %vm2784, %v2765
        %2800 = vst.msk [vmem:[#allocation2 + $0x78] sm:$0xff] %vm2784, %v2767
        %v2801 = vld [vmem:[#allocation2] sm:$0xff]
        %v2802 = vld [vmem:[#allocation2 + $0x8] sm:$0xff]
        %v2803 = vld [vmem:[#allocation2 + $0x10] sm:$0xff]
        %v2804 = vld [vmem:[#allocation2 + $0x18] sm:$0xff]
        %v2805 = vld [vmem:[#allocation2 + $0x20] sm:$0xff]
        %v2806 = vld [vmem:[#allocation2 + $0x28] sm:$0xff]
        %v2807 = vld [vmem:[#allocation2 + $0x30] sm:$0xff]
        %v2808 = vld [vmem:[#allocation2 + $0x38] sm:$0xff]
        %v2809 = vld [vmem:[#allocation2 + $0x40] sm:$0xff]
        %v2810 = vld [vmem:[#allocation2 + $0x48] sm:$0xff]
        %v2811 = vld [vmem:[#allocation2 + $0x50] sm:$0xff]
        %v2812 = vld [vmem:[#allocation2 + $0x58] sm:$0xff]
        %v2813 = vld [vmem:[#allocation2 + $0x60] sm:$0xff]
        %v2814 = vld [vmem:[#allocation2 + $0x68] sm:$0xff]
        %v2815 = vld [vmem:[#allocation2 + $0x70] sm:$0xff]
        %v2816 = vld [vmem:[#allocation2 + $0x78] sm:$0xff]
        %v2817 = vpack.c.bf16 %v2802, %v2801
        %v2818 = vpack.c.bf16 %v2804, %v2803
        %v2819 = vpack.c.bf16 %v2806, %v2805
        %v2820 = vpack.c.bf16 %v2808, %v2807
        %v2821 = vpack.c.bf16 %v2810, %v2809
        %v2822 = vpack.c.bf16 %v2812, %v2811
        %v2823 = vpack.c.bf16 %v2814, %v2813
        %v2824 = vpack.c.bf16 %v2816, %v2815
        %v2825 = vld [vmem:[%s2] sm:$0xf]
        %v2826 = vld [vmem:[%s2 + $0x4] sm:$0xf]
        %v2827 = vld [vmem:[%s2 + $0x8] sm:$0xf]
        %v2828 = vld [vmem:[%s2 + $0xc] sm:$0xf]
        %v2829 = vld [vmem:[%s2 + $0x10] sm:$0xf]
        %v2830 = vld [vmem:[%s2 + $0x14] sm:$0xf]
        %v2831 = vld [vmem:[%s2 + $0x18] sm:$0xf]
        %v2832 = vld [vmem:[%s2 + $0x1c] sm:$0xf]
        %v2833 = vld [vmem:[%s2 + $0x20] sm:$0xf]
        %v2834 = vld [vmem:[%s2 + $0x24] sm:$0xf]
        %v2835 = vld [vmem:[%s2 + $0x28] sm:$0xf]
        %v2836 = vld [vmem:[%s2 + $0x2c] sm:$0xf]
        %v2837 = vld [vmem:[%s2 + $0x30] sm:$0xf]
        %v2838 = vld [vmem:[%s2 + $0x34] sm:$0xf]
        %v2839 = vld [vmem:[%s2 + $0x38] sm:$0xf]
        %v2840 = vld [vmem:[%s2 + $0x3c] sm:$0xf]
        %v2841 = vld [vmem:[%s3] sm:$0x1]
        %v2843 = vlaneseq
        %v2844 = vshrl.u32 %v2843, 7
        %v2845 = vsub.s32 0, %v2844
        %v2846 = vrot.slane %v2841, %v2845
        %v2864 = vunpack.c.l.b16 %v2825
        %v2865 = vunpack.c.l.b16 %v2826
        %v2866 = vunpack.c.l.b16 %v2827
        %v2867 = vunpack.c.l.b16 %v2828
        %v2868 = vunpack.c.l.b16 %v2829
        %v2869 = vunpack.c.l.b16 %v2830
        %v2870 = vunpack.c.l.b16 %v2831
        %v2871 = vunpack.c.l.b16 %v2832
        %v2872 = vunpack.c.l.b16 %v2833
        %v2873 = vunpack.c.l.b16 %v2834
        %v2874 = vunpack.c.l.b16 %v2835
        %v2875 = vunpack.c.l.b16 %v2836
        %v2876 = vunpack.c.l.b16 %v2837
        %v2877 = vunpack.c.l.b16 %v2838
        %v2878 = vunpack.c.l.b16 %v2839
        %v2879 = vunpack.c.l.b16 %v2840
        %v2880 = vpack.c.b16 %v2865, %v2864
        %v2881 = vpack.c.b16 %v2867, %v2866
        %v2882 = vpack.c.b16 %v2869, %v2868
        %v2883 = vpack.c.b16 %v2871, %v2870
        %v2884 = vpack.c.b16 %v2873, %v2872
        %v2885 = vpack.c.b16 %v2875, %v2874
        %v2886 = vpack.c.b16 %v2877, %v2876
        %v2887 = vpack.c.b16 %v2879, %v2878
        %2896 = vmatprep.subr.bf16.mxu0 0
        %2897 = vmatpush1.bf16.msra.mxu0 %v2880
        %2898 = vmatprep.subr.bf16.mxu0 0
        %2899 = vmatpush1.bf16.msra.mxu0 %v2881
        %2900 = vmatprep.subr.bf16.mxu0 0
        %2901 = vmatpush1.bf16.msra.mxu0 %v2882
        %2902 = vmatprep.subr.bf16.mxu0 0
        %2903 = vmatpush1.bf16.msra.mxu0 %v2883
        %2904 = vmatprep.subr.bf16.mxu0 0
        %2905 = vmatpush1.bf16.msra.mxu0 %v2884
        %2906 = vmatprep.subr.bf16.mxu0 0
        %2907 = vmatpush1.bf16.msra.mxu0 %v2885
        %2908 = vmatprep.subr.bf16.mxu0 0
        %2909 = vmatpush1.bf16.msra.mxu0 %v2886
        %2910 = vmatprep.subr.bf16.mxu0 0
        %2911 = vmatpush1.bf16.msra.mxu0 %v2887
        %2912 = vmatprep.subr.bf16.mxu0 0
        %2913 = vmatpush1.bf16.msra.mxu0 0
        %2914 = vmatprep.subr.bf16.mxu0 0
        %2915 = vmatpush1.bf16.msra.mxu0 0
        %2916 = vmatprep.subr.bf16.mxu0 0
        %2917 = vmatpush1.bf16.msra.mxu0 0
        %2918 = vmatprep.subr.bf16.mxu0 0
        %2919 = vmatpush1.bf16.msra.mxu0 0
        %2920 = vmatprep.subr.bf16.mxu0 0
        %2921 = vmatpush1.bf16.msra.mxu0 0
        %2922 = vmatprep.subr.bf16.mxu0 0
        %2923 = vmatpush1.bf16.msra.mxu0 0
        %2924 = vmatprep.subr.bf16.mxu0 0
        %2925 = vmatpush1.bf16.msra.mxu0 0
        %2926 = vmatprep.subr.bf16.mxu0 0
        %2927 = vmatpush1.bf16.msra.mxu0 0
        %2928 = vmatprep.mubr.bf16.mxu0 0
        %2929 = vmatmul.mubr.bf16.gmra.mrb[0].mxu0 %v2817
        %v2930 = vpop.f32.mrb[0].mxu0
        %v2931 = vadd.f32 %v2846, %v2930
        %v2932 = vpop.f32.mrb[0].mxu0
        %v2933 = vpop.f32.mrb[0].mxu0
        %v2934 = vadd.f32 %v2846, %v2933
        %v2935 = vpop.f32.mrb[0].mxu0
        %2936 = vmatprep.mubr.bf16.mxu0 0
        %2937 = vmatmul.mubr.bf16.gmra.mrb[0].mxu0 %v2818
        %v2938 = vpop.f32.mrb[0].mxu0
        %v2939 = vadd.f32 %v2846, %v2938
        %v2940 = vpop.f32.mrb[0].mxu0
        %v2941 = vpop.f32.mrb[0].mxu0
        %v2942 = vadd.f32 %v2846, %v2941
        %v2943 = vpop.f32.mrb[0].mxu0
        %2944 = vmatprep.mubr.bf16.mxu0 0
        %2945 = vmatmul.mubr.bf16.gmra.mrb[0].mxu0 %v2819
        %v2946 = vpop.f32.mrb[0].mxu0
        %v2947 = vadd.f32 %v2846, %v2946
        %v2948 = vpop.f32.mrb[0].mxu0
        %v2949 = vpop.f32.mrb[0].mxu0
        %v2950 = vadd.f32 %v2846, %v2949
        %v2951 = vpop.f32.mrb[0].mxu0
        %2952 = vmatprep.mubr.bf16.mxu0 0
        %2953 = vmatmul.mubr.bf16.gmra.mrb[0].mxu0 %v2820
        %v2954 = vpop.f32.mrb[0].mxu0
        %v2955 = vadd.f32 %v2846, %v2954
        %v2956 = vpop.f32.mrb[0].mxu0
        %v2957 = vpop.f32.mrb[0].mxu0
        %v2958 = vadd.f32 %v2846, %v2957
        %v2959 = vpop.f32.mrb[0].mxu0
        %2960 = vmatprep.mubr.bf16.mxu0 0
        %2961 = vmatmul.mubr.bf16.gmra.mrb[0].mxu0 %v2821
        %v2962 = vpop.f32.mrb[0].mxu0
        %v2963 = vadd.f32 %v2846, %v2962
        %v2964 = vpop.f32.mrb[0].mxu0
        %v2965 = vpop.f32.mrb[0].mxu0
        %v2966 = vadd.f32 %v2846, %v2965
        %v2967 = vpop.f32.mrb[0].mxu0
        %2968 = vmatprep.mubr.bf16.mxu0 0
        %2969 = vmatmul.mubr.bf16.gmra.mrb[0].mxu0 %v2822
        %v2970 = vpop.f32.mrb[0].mxu0
        %v2971 = vadd.f32 %v2846, %v2970
        %v2972 = vpop.f32.mrb[0].mxu0
        %v2973 = vpop.f32.mrb[0].mxu0
        %v2974 = vadd.f32 %v2846, %v2973
        %v2975 = vpop.f32.mrb[0].mxu0
        %2976 = vmatprep.mubr.bf16.mxu0 0
        %2977 = vmatmul.mubr.bf16.gmra.mrb[0].mxu0 %v2823
        %v2978 = vpop.f32.mrb[0].mxu0
        %v2979 = vadd.f32 %v2846, %v2978
        %v2980 = vpop.f32.mrb[0].mxu0
        %v2981 = vpop.f32.mrb[0].mxu0
        %v2982 = vadd.f32 %v2846, %v2981
        %v2983 = vpop.f32.mrb[0].mxu0
        %2984 = vmatprep.mubr.bf16.mxu0 0
        %2985 = vmatmul.mubr.bf16.gmra.mrb[0].mxu0 %v2824
        %v2986 = vpop.f32.mrb[0].mxu0
        %v2987 = vadd.f32 %v2846, %v2986
        %v2988 = vpop.f32.mrb[0].mxu0
        %v2989 = vpop.f32.mrb[0].mxu0
        %v2990 = vadd.f32 %v2846, %v2989
        %v2991 = vpop.f32.mrb[0].mxu0
        %2992 = vdwg.mxu0
        %v2993 = vmax.f32 %v2931, 0.0
        %v2994 = vmax.f32 %v2934, 0.0
        %v2995 = vmax.f32 %v2939, 0.0
        %v2996 = vmax.f32 %v2942, 0.0
        %v2997 = vmax.f32 %v2947, 0.0
        %v2998 = vmax.f32 %v2950, 0.0
        %v2999 = vmax.f32 %v2955, 0.0
        %v3000 = vmax.f32 %v2958, 0.0
        %v3001 = vmax.f32 %v2963, 0.0
        %v3002 = vmax.f32 %v2966, 0.0
        %v3003 = vmax.f32 %v2971, 0.0
        %v3004 = vmax.f32 %v2974, 0.0
        %v3005 = vmax.f32 %v2979, 0.0
        %v3006 = vmax.f32 %v2982, 0.0
        %v3007 = vmax.f32 %v2987, 0.0
        %v3008 = vmax.f32 %v2990, 0.0
        %v3009 = vpack.c.bf16 %v2994, %v2993
        %v3010 = vpack.c.bf16 %v2996, %v2995
        %v3011 = vpack.c.bf16 %v2998, %v2997
        %v3012 = vpack.c.bf16 %v3000, %v2999
        %v3013 = vpack.c.bf16 %v3002, %v3001
        %v3014 = vpack.c.bf16 %v3004, %v3003
        %v3015 = vpack.c.bf16 %v3006, %v3005
        %v3016 = vpack.c.bf16 %v3008, %v3007
        %v3017 = vld [vmem:[%s4] sm:$0xf]
        %v3018 = vld [vmem:[%s4 + $0x4] sm:$0xf]
        %v3019 = vld [vmem:[%s4 + $0x8] sm:$0xf]
        %v3020 = vld [vmem:[%s4 + $0xc] sm:$0xf]
        %v3021 = vld [vmem:[%s5] sm:$0x1]
        %v3023 = vlaneseq
        %v3024 = vshrl.u32 %v3023, 7
        %v3025 = vsub.s32 0, %v3024
        %v3026 = vrot.slane %v3021, %v3025
        %v3032 = vunpack.c.l.b16 %v3017
        %v3033 = vunpack.c.l.b16 %v3018
        %v3034 = vunpack.c.l.b16 %v3019
        %v3035 = vunpack.c.l.b16 %v3020
        %v3036 = vpack.c.b16 %v3033, %v3032
        %v3037 = vpack.c.b16 %v3035, %v3034
        %vm3040 = vcmask 261120
        %v3042 = vsel %vm3040, %v3009, 0
        %v3045 = vsel %vm3040, %v3010, 0
        %v3048 = vsel %vm3040, %v3011, 0
        %v3051 = vsel %vm3040, %v3012, 0
        %v3054 = vsel %vm3040, %v3013, 0
        %v3057 = vsel %vm3040, %v3014, 0
        %v3060 = vsel %vm3040, %v3015, 0
        %v3063 = vsel %vm3040, %v3016, 0
        %3065 = vmatprep.subr.bf16.mxu0 0
        %3066 = vmatpush1.bf16.msra.mxu0 %v3036
        %3067 = vmatprep.subr.bf16.mxu0 0
        %3068 = vmatpush1.bf16.msra.mxu0 %v3037
        %3069 = vmatprep.subr.bf16.mxu0 0
        %3070 = vmatpush1.bf16.msra.mxu0 0
        %3071 = vmatprep.subr.bf16.mxu0 0
        %3072 = vmatpush1.bf16.msra.mxu0 0
        %3073 = vmatprep.subr.bf16.mxu0 0
        %3074 = vmatpush1.bf16.msra.mxu0 0
        %3075 = vmatprep.subr.bf16.mxu0 0
        %3076 = vmatpush1.bf16.msra.mxu0 0
        %3077 = vmatprep.subr.bf16.mxu0 0
        %3078 = vmatpush1.bf16.msra.mxu0 0
        %3079 = vmatprep.subr.bf16.mxu0 0
        %3080 = vmatpush1.bf16.msra.mxu0 0
        %3081 = vmatprep.subr.bf16.mxu0 0
        %3082 = vmatpush1.bf16.msra.mxu0 0
        %3083 = vmatprep.subr.bf16.mxu0 0
        %3084 = vmatpush1.bf16.msra.mxu0 0
        %3085 = vmatprep.subr.bf16.mxu0 0
        %3086 = vmatpush1.bf16.msra.mxu0 0
        %3087 = vmatprep.subr.bf16.mxu0 0
        %3088 = vmatpush1.bf16.msra.mxu0 0
        %3089 = vmatprep.subr.bf16.mxu0 0
        %3090 = vmatpush1.bf16.msra.mxu0 0
        %3091 = vmatprep.subr.bf16.mxu0 0
        %3092 = vmatpush1.bf16.msra.mxu0 0
        %3093 = vmatprep.subr.bf16.mxu0 0
        %3094 = vmatpush1.bf16.msra.mxu0 0
        %3095 = vmatprep.subr.bf16.mxu0 0
        %3096 = vmatpush1.bf16.msra.mxu0 0
        %3097 = vmatprep.mubr.bf16.mxu0 0
        %3098 = vmatmul.mubr.bf16.gmra.mrb[0].mxu0 %v3042
        %v3099 = vpop.f32.mrb[0].mxu0
        %v3100 = vadd.f32 %v3026, %v3099
        %v3101 = vpop.f32.mrb[0].mxu0
        %v3102 = vpop.f32.mrb[0].mxu0
        %v3103 = vadd.f32 %v3026, %v3102
        %v3104 = vpop.f32.mrb[0].mxu0
        %3105 = vmatprep.mubr.bf16.mxu0 0
        %3106 = vmatmul.mubr.bf16.gmra.mrb[0].mxu0 %v3045
        %v3107 = vpop.f32.mrb[0].mxu0
        %v3108 = vadd.f32 %v3026, %v3107
        %v3109 = vpop.f32.mrb[0].mxu0
        %v3110 = vpop.f32.mrb[0].mxu0
        %v3111 = vadd.f32 %v3026, %v3110
        %v3112 = vpop.f32.mrb[0].mxu0
        %3113 = vmatprep.mubr.bf16.mxu0 0
        %3114 = vmatmul.mubr.bf16.gmra.mrb[0].mxu0 %v3048
        %v3115 = vpop.f32.mrb[0].mxu0
        %v3116 = vadd.f32 %v3026, %v3115
        %v3117 = vpop.f32.mrb[0].mxu0
        %v3118 = vpop.f32.mrb[0].mxu0
        %v3119 = vadd.f32 %v3026, %v3118
        %v3120 = vpop.f32.mrb[0].mxu0
        %3121 = vmatprep.mubr.bf16.mxu0 0
        %3122 = vmatmul.mubr.bf16.gmra.mrb[0].mxu0 %v3051
        %v3123 = vpop.f32.mrb[0].mxu0
        %v3124 = vadd.f32 %v3026, %v3123
        %v3125 = vpop.f32.mrb[0].mxu0
        %v3126 = vpop.f32.mrb[0].mxu0
        %v3127 = vadd.f32 %v3026, %v3126
        %v3128 = vpop.f32.mrb[0].mxu0
        %3129 = vmatprep.mubr.bf16.mxu0 0
        %3130 = vmatmul.mubr.bf16.gmra.mrb[0].mxu0 %v3054
        %v3131 = vpop.f32.mrb[0].mxu0
        %v3132 = vadd.f32 %v3026, %v3131
        %v3133 = vpop.f32.mrb[0].mxu0
        %v3134 = vpop.f32.mrb[0].mxu0
        %v3135 = vadd.f32 %v3026, %v3134
        %v3136 = vpop.f32.mrb[0].mxu0
        %3137 = vmatprep.mubr.bf16.mxu0 0
        %3138 = vmatmul.mubr.bf16.gmra.mrb[0].mxu0 %v3057
        %v3139 = vpop.f32.mrb[0].mxu0
        %v3140 = vadd.f32 %v3026, %v3139
        %v3141 = vpop.f32.mrb[0].mxu0
        %v3142 = vpop.f32.mrb[0].mxu0
        %v3143 = vadd.f32 %v3026, %v3142
        %v3144 = vpop.f32.mrb[0].mxu0
        %3145 = vmatprep.mubr.bf16.mxu0 0
        %3146 = vmatmul.mubr.bf16.gmra.mrb[0].mxu0 %v3060
        %v3147 = vpop.f32.mrb[0].mxu0
        %v3148 = vadd.f32 %v3026, %v3147
        %v3149 = vpop.f32.mrb[0].mxu0
        %v3150 = vpop.f32.mrb[0].mxu0
        %v3151 = vadd.f32 %v3026, %v3150
        %v3152 = vpop.f32.mrb[0].mxu0
        %3153 = vmatprep.mubr.bf16.mxu0 0
        %3154 = vmatmul.mubr.bf16.gmra.mrb[0].mxu0 %v3063
        %v3155 = vpop.f32.mrb[0].mxu0
        %v3156 = vadd.f32 %v3026, %v3155
        %v3157 = vpop.f32.mrb[0].mxu0
        %v3158 = vpop.f32.mrb[0].mxu0
        %v3159 = vadd.f32 %v3026, %v3158
        %v3160 = vpop.f32.mrb[0].mxu0
        %3161 = vdwg.mxu0
        %3162 = vst [vmem:[%s245] sm:$0xff] %v3100
        %3163 = vst [vmem:[%s245 + $0x8] sm:$0xff] %v3103
        %3164 = vst [vmem:[%s245 + $0x10] sm:$0xff] %v3108
        %3165 = vst [vmem:[%s245 + $0x18] sm:$0xff] %v3111
        %3166 = vst [vmem:[%s245 + $0x20] sm:$0xff] %v3116
        %3167 = vst [vmem:[%s245 + $0x28] sm:$0xff] %v3119
        %3168 = vst [vmem:[%s245 + $0x30] sm:$0xff] %v3124
        %3169 = vst [vmem:[%s245 + $0x38] sm:$0xff] %v3127
        %3170 = vst [vmem:[%s245 + $0x40] sm:$0xff] %v3132
        %3171 = vst [vmem:[%s245 + $0x48] sm:$0xff] %v3135
        %3172 = vst [vmem:[%s245 + $0x50] sm:$0xff] %v3140
        %3173 = vst [vmem:[%s245 + $0x58] sm:$0xff] %v3143
        %3174 = vst [vmem:[%s245 + $0x60] sm:$0xff] %v3148
        %3175 = vst [vmem:[%s245 + $0x68] sm:$0xff] %v3151
        %3176 = vst [vmem:[%s245 + $0x70] sm:$0xff] %v3156
        %3177 = vst [vmem:[%s245 + $0x78] sm:$0xff] %v3159
        %s3178 = sand.u32 %s159, 1
        %s3179 = scalar_lea.sflag [#allocation4], %s3178
        %s3180 = sand.u32 %s159, 1
        %s3181 = smul.addr %s3180, 128
        %s3182 = scalar_lea.vmem [#allocation3], %s3181
        // Predicated region
        $region45: #{tpu_custom_call.1} parent=43 // pred_check
          %p3183 = pneg %p169
        $region46: #{tpu_custom_call.1} parent=43 // pred_check_branch
          %3185 = sbr.rel (%p3183) target = $region48
        $region47: #{tpu_custom_call.1} parent=43 // pred_region
          %s3186 = smul.u32 16, %s20
          %s3188 = ssub.s32 2048, 2048
          %3189 = vsyncadd %s3179, %s3188
          %s3190 = smul.addr %s3186, 128
          %s3191 = scalar_lea.hbm %s6, %s3190
          %s3192 = sshll.u32 %s3182, 4
          %s3193 = int_to_ptr.vmem [resolvable:$true] %s3192
          %3198 = dma.vmem_to_hbm [thread:$0]  %s3193, 2048, %s3191, %s3179, 128, 128, 8
        $region48: #{tpu_custom_call.1} parent=43 // pred_fallthru
          _
      $region44: #{tpu_custom_call.1} parent=5 // pred_fallthru
        _
      %p3199 = scmp.le.s32.totalorder 2, %s15
      // Predicated region
      $region49: #{tpu_custom_call.1} parent=5 // pred_check
        %p3200 = pneg %p3199
      $region50: #{tpu_custom_call.1} parent=5 // pred_check_branch
        %3202 = sbr.rel (%p3200) target = $region52
      $region51: #{tpu_custom_call.1} parent=5 // pred_region
        %s3203 = ssub.s32 %s15, 2
        // Predicated region
        $region53: #{tpu_custom_call.1} parent=51 // pred_check
          %p3204 = pneg %p175
        $region54: #{tpu_custom_call.1} parent=51 // pred_check_branch
          %3206 = sbr.rel (%p3204) target = $region56
        $region55: #{tpu_custom_call.1} parent=51 // pred_region
          %s3207 = sand.u32 %s160, 1
          %s3208 = scalar_lea.sflag [#allocation4], %s3207
          %s3209 = sand.u32 %s160, 1
          %s3210 = smul.addr %s3209, 128
          %s3211 = scalar_lea.vmem [#allocation3], %s3210
          %3212 = dma.done %s3208, 2048
        $region56: #{tpu_custom_call.1} parent=51 // pred_fallthru
          _
      $region52: #{tpu_custom_call.1} parent=5 // pred_fallthru
        _
    $region6: #{tpu_custom_call.1} parent=1 // loop_footer
      %s19 = sadd.s32 1, %s15
    $region7: #{tpu_custom_call.1} parent=1 // loop_footer_branch
      %14 = sbr.rel target = $region3
    $region8: #{tpu_custom_call.1} parent=1 // loop_exit
      _
    %3213 = vsyncpa [#allocation4], 1
    %s3214 = scalar_lea.sflag [#allocation4], 1
    %3215 = vsyncpa %s3214, 1

</llo_original>
